<compile_context>
chip_gen: v5e
topology: v5e:2x2
jax: 0.10.0
libtpu: 0.0.40
codegen_flags: <defaults>
</compile_context>

<pallas_src>
import functools
import math

import numpy as np
import jax
import jax.numpy as jnp
from jax import lax
from jax.experimental import pallas as pl
from jax.experimental.pallas import tpu as pltpu


def _vmem_spec():
    return pl.BlockSpec(memory_space=pltpu.MemorySpace.VMEM)


def _layernorm(x, g, b, eps=1e-5):
    mu = jnp.mean(x, axis=-1, keepdims=True)
    var = jnp.mean((x - mu) ** 2, axis=-1, keepdims=True)
    return (x - mu) * lax.rsqrt(var + eps) * g + b


def _gelu_tanh(x):
    # TODO(synk): PyTorch activation='gelu' is exact erf GELU; tanh approximation
    # is used here since erf lowering in Mosaic is not guaranteed.
    return 0.5 * x * (1.0 + jnp.tanh(0.7978845608028654 *
                                     (x + 0.044715 * x * x * x)))


# --------------------------------------------------------------------------
# Fused forward kernel
# --------------------------------------------------------------------------

def mdmp_fused_kernel(x_ref, pe_t_ref, pe_seq_ref,
                      tw1_ref, tb1_ref, tw2_ref, tb2_ref,
                      pw_ref, pb_ref,
                      wqkv_ref, bqkv_ref, wo_ref, bo_ref,
                      ln1g_ref, ln1b_ref,
                      w1_ref, b1_ref, w2_ref, b2_ref,
                      ln2g_ref, ln2b_ref,
                      fw_ref, fb_ref,
                      o_ref,
                      seq_buf, attn_buf,
                      *, num_heads):
    """Whole MDMP forward in one kernel.

    x_ref     : [bs*nframes, input_feats]   (rows batch-major: b*nframes + f)
    pe_t_ref  : [bs, D]        pe rows gathered at `timesteps`
    pe_seq_ref: [S, D]         positional encoding for positions 0..S-1
    Per-layer weights are stacked with a leading layer axis; all weights are
    pre-transposed to [in, out] so y = x @ W + b.
    o_ref     : [bs, nframes, input_feats]
    """
    bs = pe_t_ref.shape[0]
    nframes = x_ref.shape[0] // bs
    S = nframes + 1
    D = pw_ref.shape[1]
    num_layers = wqkv_ref.shape[0]
    hd = D // num_heads
    scale = 1.0 / math.sqrt(hd)

    # ---- TimestepEmbedder: Linear -> SiLU -> Linear, all batches at once ----
    t = jnp.dot(pe_t_ref[...], tw1_ref[...],
                preferred_element_type=jnp.float32) + tb1_ref[...]
    t = t * (1.0 / (1.0 + jnp.exp(-t)))                       # SiLU
    emb = jnp.dot(t, tw2_ref[...],
                  preferred_element_type=jnp.float32) + tb2_ref[...]   # [bs, D]

    # ---- InputProcess.poseEmbedding on flattened rows ----
    xe = jnp.dot(x_ref[...], pw_ref[...],
                 preferred_element_type=jnp.float32) + pb_ref[...]     # [bs*nframes, D]

    # ---- assemble [bs, S, D] = [timestep token, frames...] + PE (one add) ----
    seq_buf[:, 0:1, :] = emb.reshape(bs, 1, D)
    seq_buf[:, 1:, :] = xe.reshape(bs, nframes, D)
    h3 = seq_buf[...] + pe_seq_ref[...][None, :, :]            # [bs, S, D]
    h = h3.reshape(bs * S, D)                                   # flat rows

    # ---- Transformer encoder layers (post-norm, gelu, eval mode) ----
    for l in range(num_layers):
        Wqkv = wqkv_ref[l]; Bqkv = bqkv_ref[l]
        Wo = wo_ref[l];     Bo = bo_ref[l]
        G1 = ln1g_ref[l];   B1n = ln1b_ref[l]
        W1 = w1_ref[l];     Bf1 = b1_ref[l]
        W2 = w2_ref[l];     Bf2 = b2_ref[l]
        G2 = ln2g_ref[l];   B2n = ln2b_ref[l]

        # fused QKV projection: one matmul for all batches / heads
        qkv = jnp.dot(h, Wqkv, preferred_element_type=jnp.float32) + Bqkv  # [bs*S, 3D]
        qkv3 = qkv.reshape(bs, S, 3 * D)

        # attention core: static head loop, batched over batch via einsum
        for hh in range(num_heads):
            qh = qkv3[:, :, hh * hd:(hh + 1) * hd] * scale
            kh = qkv3[:, :, D + hh * hd:D + (hh + 1) * hd]
            vh = qkv3[:, :, 2 * D + hh * hd:2 * D + (hh + 1) * hd]
            s = jnp.einsum('bqd,bkd->bqk', qh, kh,
                           preferred_element_type=jnp.float32)              # [bs,S,S]
            s = s - jnp.max(s, axis=-1, keepdims=True)
            p = jnp.exp(s)
            p = p * pl.reciprocal(jnp.sum(p, axis=-1, keepdims=True), approx=True)
            oh = jnp.einsum('bqk,bkd->bqd', p, vh,
                            preferred_element_type=jnp.float32)             # [bs,S,hd]
            attn_buf[:, :, hh * hd:(hh + 1) * hd] = oh                      # one store/head

        # single output projection on the concatenated heads (flat rows)
        attn = attn_buf[...].reshape(bs * S, D)
        ao = jnp.dot(attn, Wo, preferred_element_type=jnp.float32) + Bo

        # residual + post-LayerNorm (norm_first=False)
        y1 = _layernorm(h + ao, G1, B1n)

        # feed-forward
        f1 = jnp.dot(y1, W1, preferred_element_type=jnp.float32) + Bf1
        g = _gelu_tanh(f1)
        f2 = jnp.dot(g, W2, preferred_element_type=jnp.float32) + Bf2
        h = _layernorm(y1 + f2, G2, B2n)

    # ---- OutputProcess.poseFinal (timestep-token rows dropped at the end) ----
    y = jnp.dot(h, fw_ref[...], preferred_element_type=jnp.float32) + fb_ref[...]
    o_ref[...] = y.reshape(bs, S, -1)[:, 1:, :]


# --------------------------------------------------------------------------
# Parameters (deterministic synthetic init)
# --------------------------------------------------------------------------

def init_params(key, *, njoints, nfeats, latent_dim, ff_size, num_layers, max_len=5000):
    input_feats = njoints * nfeats
    D, F = latent_dim, ff_size

    def lin(k, shape_w, shape_b, scale=0.02):
        kw, kb = jax.random.split(k)
        w = jax.random.normal(kw, shape_w, jnp.float32) * scale  # pre-transposed [in, out]
        b = jax.random.normal(kb, shape_b, jnp.float32) * scale
        return w, b

    keys = jax.random.split(key, 9)
    params = {}

    # PositionalEncoding buffer (same formula as the PyTorch module)
    position = np.arange(max_len, dtype=np.float32)[:, None]
    div_term = np.exp(np.arange(0, D, 2, dtype=np.float32) * (-np.log(10000.0) / D))
    pe = np.zeros((max_len, D), dtype=np.float32)
    pe[:, 0::2] = np.sin(position * div_term)
    pe[:, 1::2] = np.cos(position * div_term)
    params['pe'] = jnp.asarray(pe)                         # [max_len, D]

    params['time_w1'], params['time_b1'] = lin(keys[0], (D, D), (1, D))
    params['time_w2'], params['time_b2'] = lin(keys[1], (D, D), (1, D))
    params['pose_w'], params['pose_b'] = lin(keys[2], (input_feats, D), (1, D))
    params['final_w'], params['final_b'] = lin(keys[3], (D, input_feats), (1, input_feats))

    L = num_layers
    # Stacked per-layer transformer weights (leading layer axis); QKV fused.
    params['wqkv'], params['bqkv'] = lin(keys[4], (L, D, 3 * D), (L, 1, 3 * D))
    params['wo'], params['bo'] = lin(keys[5], (L, D, D), (L, 1, D))
    params['w1'], params['b1'] = lin(keys[6], (L, D, F), (L, 1, F))
    params['w2'], params['b2'] = lin(keys[7], (L, F, D), (L, 1, D))
    params['ln1g'] = jnp.ones((L, 1, D), jnp.float32)
    params['ln1b'] = jnp.zeros((L, 1, D), jnp.float32)
    params['ln2g'] = jnp.ones((L, 1, D), jnp.float32)
    params['ln2b'] = jnp.zeros((L, 1, D), jnp.float32)
    return params


# --------------------------------------------------------------------------
# MDMP forward (cond_mode='no_cond', eval mode)
# --------------------------------------------------------------------------

def mdmp_forward(params, x, timesteps, *, num_heads):
    bs, njoints, nfeats, nframes = x.shape
    input_feats = njoints * nfeats
    D = params['pose_w'].shape[1]
    F = params['w1'].shape[2]
    L = params['wqkv'].shape[0]
    S = nframes + 1

    pe2d = params['pe']                                   # [max_len, D]
    pe_t = pe2d[timesteps]                                # [bs, D] gather (tiny)
    pe_seq = pe2d[:S]                                     # [S, D]
    # InputProcess permute done once in the wrapper -> batch-major flat rows.
    x_flat = jnp.transpose(x, (0, 3, 1, 2)).reshape(bs * nframes, input_feats)

    args = (x_flat, pe_t, pe_seq,
            params['time_w1'], params['time_b1'], params['time_w2'], params['time_b2'],
            params['pose_w'], params['pose_b'],
            params['wqkv'], params['bqkv'], params['wo'], params['bo'],
            params['ln1g'], params['ln1b'],
            params['w1'], params['b1'], params['w2'], params['b2'],
            params['ln2g'], params['ln2b'],
            params['final_w'], params['final_b'])

    rows = bs * S
    flops = int(2 * bs * D * D * 2                       # time MLP
                + 2 * bs * nframes * input_feats * D     # pose embedding
                + L * (2 * rows * D * (3 * D)            # fused QKV
                       + 4 * bs * S * S * D              # scores + PV (all heads)
                       + 2 * rows * D * D                # out projection
                       + 2 * rows * D * F + 2 * rows * F * D)   # FFN
                + 2 * rows * D * input_feats)            # final linear
    transcendentals = int(bs * D + L * (bs * num_heads * S * S + rows * F))
    bytes_accessed = int(sum(int(a.size) * a.dtype.itemsize for a in args)
                         + bs * nframes * input_feats * 4)

    kernel = functools.partial(mdmp_fused_kernel, num_heads=num_heads)
    y = pl.pallas_call(
        kernel,
        out_shape=jax.ShapeDtypeStruct((bs, nframes, input_feats), jnp.float32),
        in_specs=[_vmem_spec() for _ in args],
        out_specs=_vmem_spec(),
        scratch_shapes=[pltpu.VMEM((bs, S, D), jnp.float32),     # sequence assembly
                        pltpu.VMEM((bs, S, D), jnp.float32)],    # concatenated heads
        cost_estimate=pl.CostEstimate(flops=flops,
                                      transcendentals=transcendentals,
                                      bytes_accessed=bytes_accessed),
    )(*args)

    # OutputProcess: reshape/permute back to [bs, njoints, nfeats, nframes]
    # (the reshape with nfeats matches the PyTorch code, which is only valid for nfeats==1)
    return jnp.transpose(y, (0, 2, 1)).reshape(bs, njoints, nfeats, nframes)


# --------------------------------------------------------------------------

if __name__ == "__main__":
    bs, njoints, nfeats, nframes = 2, 32, 1, 8
    latent_dim, ff_size, num_layers, num_heads = 32, 64, 2, 4

    key = jax.random.PRNGKey(0)
    kx, kt, kp = jax.random.split(key, 3)
    x = jax.random.normal(kx, (bs, njoints, nfeats, nframes), jnp.float32)
    timesteps = jax.random.randint(kt, (bs,), 0, 1000)

    params = init_params(kp, njoints=njoints, nfeats=nfeats, latent_dim=latent_dim,
                         ff_size=ff_size, num_layers=num_layers)

    out = mdmp_forward(params, x, timesteps, num_heads=num_heads)
    out = jax.block_until_ready(out)
    assert out.shape == (bs, njoints, nfeats, nframes), out.shape
    assert bool(jnp.all(jnp.isfinite(out)))
    print("KERNEL_OK")
</pallas_src>

<mosaic_0001>
module attributes {stable_mosaic.version = 11 : i64} {
  func.func @mdmp_fused_kernel(%arg0: memref<16x32xf32, #tpu.memory_space<vmem>>, %arg1: memref<2x32xf32, #tpu.memory_space<vmem>>, %arg2: memref<9x32xf32, #tpu.memory_space<vmem>>, %arg3: memref<32x32xf32, #tpu.memory_space<vmem>>, %arg4: memref<1x32xf32, #tpu.memory_space<vmem>>, %arg5: memref<32x32xf32, #tpu.memory_space<vmem>>, %arg6: memref<1x32xf32, #tpu.memory_space<vmem>>, %arg7: memref<32x32xf32, #tpu.memory_space<vmem>>, %arg8: memref<1x32xf32, #tpu.memory_space<vmem>>, %arg9: memref<2x32x96xf32, #tpu.memory_space<vmem>>, %arg10: memref<2x1x96xf32, #tpu.memory_space<vmem>>, %arg11: memref<2x32x32xf32, #tpu.memory_space<vmem>>, %arg12: memref<2x1x32xf32, #tpu.memory_space<vmem>>, %arg13: memref<2x1x32xf32, #tpu.memory_space<vmem>>, %arg14: memref<2x1x32xf32, #tpu.memory_space<vmem>>, %arg15: memref<2x32x64xf32, #tpu.memory_space<vmem>>, %arg16: memref<2x1x64xf32, #tpu.memory_space<vmem>>, %arg17: memref<2x64x32xf32, #tpu.memory_space<vmem>>, %arg18: memref<2x1x32xf32, #tpu.memory_space<vmem>>, %arg19: memref<2x1x32xf32, #tpu.memory_space<vmem>>, %arg20: memref<2x1x32xf32, #tpu.memory_space<vmem>>, %arg21: memref<32x32xf32, #tpu.memory_space<vmem>>, %arg22: memref<1x32xf32, #tpu.memory_space<vmem>>, %arg23: memref<2x8x32xf32, #tpu.memory_space<vmem>>, %arg24: memref<2x9x32xf32, #tpu.memory_space<vmem>>, %arg25: memref<2x9x32xf32, #tpu.memory_space<vmem>>) attributes {dimension_semantics = [], scalar_prefetch = 0 : i64, scratch_operands = 2 : i64, tpu.core_type = #tpu.core_type<tc>} {
    %c0 = arith.constant 0 : index
    %c0_0 = arith.constant 0 : index
    %0 = vector.load %arg1[%c0, %c0_0] : memref<2x32xf32, #tpu.memory_space<vmem>>, vector<2x32xf32>
    %c0_1 = arith.constant 0 : index
    %c0_2 = arith.constant 0 : index
    %1 = vector.load %arg3[%c0_1, %c0_2] : memref<32x32xf32, #tpu.memory_space<vmem>>, vector<32x32xf32>
    %cst = arith.constant dense<0.000000e+00> : vector<2x32xf32>
    %2 = tpu.matmul %0, %1, %cst {dimension_numbers = #tpu.dot_dimension_numbers<[1], [0], [0], [1], [0, 0, 1, 1], [], []>} : vector<2x32xf32>, vector<32x32xf32>, vector<2x32xf32> -> vector<2x32xf32>
    %c0_3 = arith.constant 0 : index
    %c0_4 = arith.constant 0 : index
    %3 = vector.load %arg4[%c0_3, %c0_4] : memref<1x32xf32, #tpu.memory_space<vmem>>, vector<1x32xf32>
    %4 = vector.broadcast %3 : vector<1x32xf32> to vector<2x32xf32>
    %5 = arith.addf %2, %4 : vector<2x32xf32>
    %cst_5 = arith.constant 0.000000e+00 : f32
    %6 = vector.broadcast %cst_5 : f32 to vector<2x32xf32>
    %7 = arith.subf %6, %5 : vector<2x32xf32>
    %8 = math.exp %7 : vector<2x32xf32>
    %cst_6 = arith.constant 1.000000e+00 : f32
    %9 = vector.broadcast %cst_6 : f32 to vector<2x32xf32>
    %10 = arith.addf %9, %8 : vector<2x32xf32>
    %cst_7 = arith.constant 1.000000e+00 : f32
    %11 = vector.broadcast %cst_7 : f32 to vector<2x32xf32>
    %12 = arith.divf %11, %10 : vector<2x32xf32>
    %13 = arith.mulf %5, %12 : vector<2x32xf32>
    %c0_8 = arith.constant 0 : index
    %c0_9 = arith.constant 0 : index
    %14 = vector.load %arg5[%c0_8, %c0_9] : memref<32x32xf32, #tpu.memory_space<vmem>>, vector<32x32xf32>
    %cst_10 = arith.constant dense<0.000000e+00> : vector<2x32xf32>
    %15 = tpu.matmul %13, %14, %cst_10 {dimension_numbers = #tpu.dot_dimension_numbers<[1], [0], [0], [1], [0, 0, 1, 1], [], []>} : vector<2x32xf32>, vector<32x32xf32>, vector<2x32xf32> -> vector<2x32xf32>
    %c0_11 = arith.constant 0 : index
    %c0_12 = arith.constant 0 : index
    %16 = vector.load %arg6[%c0_11, %c0_12] : memref<1x32xf32, #tpu.memory_space<vmem>>, vector<1x32xf32>
    %17 = vector.broadcast %16 : vector<1x32xf32> to vector<2x32xf32>
    %18 = arith.addf %15, %17 : vector<2x32xf32>
    %c0_13 = arith.constant 0 : index
    %c0_14 = arith.constant 0 : index
    %19 = vector.load %arg0[%c0_13, %c0_14] : memref<16x32xf32, #tpu.memory_space<vmem>>, vector<16x32xf32>
    %c0_15 = arith.constant 0 : index
    %c0_16 = arith.constant 0 : index
    %20 = vector.load %arg7[%c0_15, %c0_16] : memref<32x32xf32, #tpu.memory_space<vmem>>, vector<32x32xf32>
    %cst_17 = arith.constant dense<0.000000e+00> : vector<16x32xf32>
    %21 = tpu.matmul %19, %20, %cst_17 {dimension_numbers = #tpu.dot_dimension_numbers<[1], [0], [0], [1], [0, 0, 1, 1], [], []>} : vector<16x32xf32>, vector<32x32xf32>, vector<16x32xf32> -> vector<16x32xf32>
    %c0_18 = arith.constant 0 : index
    %c0_19 = arith.constant 0 : index
    %22 = vector.load %arg8[%c0_18, %c0_19] : memref<1x32xf32, #tpu.memory_space<vmem>>, vector<1x32xf32>
    %23 = vector.broadcast %22 : vector<1x32xf32> to vector<16x32xf32>
    %24 = arith.addf %21, %23 : vector<16x32xf32>
    %25 = vector.shape_cast %18 : vector<2x32xf32> to vector<2x1x32xf32>
    %c0_20 = arith.constant 0 : index
    %c0_21 = arith.constant 0 : index
    %c0_22 = arith.constant 0 : index
    %26 = vector.load %arg24[%c0_20, %c0_21, %c0_22] : memref<2x9x32xf32, #tpu.memory_space<vmem>>, vector<2x1x32xf32>
    tpu.vector_store %arg24[%c0_20, %c0_21, %c0_22], %25 {strides = array<i32>} : memref<2x9x32xf32, #tpu.memory_space<vmem>>, vector<2x1x32xf32>,
    %27 = vector.shape_cast %24 : vector<16x32xf32> to vector<2x8x32xf32>
    %c0_23 = arith.constant 0 : index
    %c1 = arith.constant 1 : index
    %c0_24 = arith.constant 0 : index
    %28 = vector.load %arg24[%c0_23, %c1, %c0_24] : memref<2x9x32xf32, #tpu.memory_space<vmem>>, vector<2x8x32xf32>
    tpu.vector_store %arg24[%c0_23, %c1, %c0_24], %27 {strides = array<i32>} : memref<2x9x32xf32, #tpu.memory_space<vmem>>, vector<2x8x32xf32>,
    %c0_25 = arith.constant 0 : index
    %c0_26 = arith.constant 0 : index
    %c0_27 = arith.constant 0 : index
    %29 = vector.load %arg24[%c0_25, %c0_26, %c0_27] : memref<2x9x32xf32, #tpu.memory_space<vmem>>, vector<2x9x32xf32>
    %c0_28 = arith.constant 0 : index
    %c0_29 = arith.constant 0 : index
    %30 = vector.load %arg2[%c0_28, %c0_29] : memref<9x32xf32, #tpu.memory_space<vmem>>, vector<9x32xf32>
    %31 = vector.shape_cast %30 : vector<9x32xf32> to vector<1x9x32xf32>
    %32 = vector.broadcast %31 : vector<1x9x32xf32> to vector<2x9x32xf32>
    %33 = arith.addf %29, %32 : vector<2x9x32xf32>
    %34 = vector.shape_cast %33 : vector<2x9x32xf32> to vector<18x32xf32>
    %c0_30 = arith.constant 0 : index
    %c0_31 = arith.constant 0 : index
    %c0_32 = arith.constant 0 : index
    %35 = vector.load %arg9[%c0_30, %c0_31, %c0_32] : memref<2x32x96xf32, #tpu.memory_space<vmem>>, vector<1x32x96xf32>
    %36 = vector.shape_cast %35 : vector<1x32x96xf32> to vector<32x96xf32>
    %c0_33 = arith.constant 0 : index
    %c0_34 = arith.constant 0 : index
    %c0_35 = arith.constant 0 : index
    %37 = vector.load %arg10[%c0_33, %c0_34, %c0_35] : memref<2x1x96xf32, #tpu.memory_space<vmem>>, vector<1x1x96xf32>
    %38 = vector.shape_cast %37 : vector<1x1x96xf32> to vector<1x96xf32>
    %c0_36 = arith.constant 0 : index
    %c0_37 = arith.constant 0 : index
    %c0_38 = arith.constant 0 : index
    %39 = vector.load %arg11[%c0_36, %c0_37, %c0_38] : memref<2x32x32xf32, #tpu.memory_space<vmem>>, vector<1x32x32xf32>
    %40 = vector.shape_cast %39 : vector<1x32x32xf32> to vector<32x32xf32>
    %c0_39 = arith.constant 0 : index
    %c0_40 = arith.constant 0 : index
    %c0_41 = arith.constant 0 : index
    %41 = vector.load %arg12[%c0_39, %c0_40, %c0_41] : memref<2x1x32xf32, #tpu.memory_space<vmem>>, vector<1x1x32xf32>
    %42 = vector.shape_cast %41 : vector<1x1x32xf32> to vector<1x32xf32>
    %c0_42 = arith.constant 0 : index
    %c0_43 = arith.constant 0 : index
    %c0_44 = arith.constant 0 : index
    %43 = vector.load %arg13[%c0_42, %c0_43, %c0_44] : memref<2x1x32xf32, #tpu.memory_space<vmem>>, vector<1x1x32xf32>
    %44 = vector.shape_cast %43 : vector<1x1x32xf32> to vector<1x32xf32>
    %c0_45 = arith.constant 0 : index
    %c0_46 = arith.constant 0 : index
    %c0_47 = arith.constant 0 : index
    %45 = vector.load %arg14[%c0_45, %c0_46, %c0_47] : memref<2x1x32xf32, #tpu.memory_space<vmem>>, vector<1x1x32xf32>
    %46 = vector.shape_cast %45 : vector<1x1x32xf32> to vector<1x32xf32>
    %c0_48 = arith.constant 0 : index
    %c0_49 = arith.constant 0 : index
    %c0_50 = arith.constant 0 : index
    %47 = vector.load %arg15[%c0_48, %c0_49, %c0_50] : memref<2x32x64xf32, #tpu.memory_space<vmem>>, vector<1x32x64xf32>
    %48 = vector.shape_cast %47 : vector<1x32x64xf32> to vector<32x64xf32>
    %c0_51 = arith.constant 0 : index
    %c0_52 = arith.constant 0 : index
    %c0_53 = arith.constant 0 : index
    %49 = vector.load %arg16[%c0_51, %c0_52, %c0_53] : memref<2x1x64xf32, #tpu.memory_space<vmem>>, vector<1x1x64xf32>
    %50 = vector.shape_cast %49 : vector<1x1x64xf32> to vector<1x64xf32>
    %c0_54 = arith.constant 0 : index
    %c0_55 = arith.constant 0 : index
    %c0_56 = arith.constant 0 : index
    %51 = vector.load %arg17[%c0_54, %c0_55, %c0_56] : memref<2x64x32xf32, #tpu.memory_space<vmem>>, vector<1x64x32xf32>
    %52 = vector.shape_cast %51 : vector<1x64x32xf32> to vector<64x32xf32>
    %c0_57 = arith.constant 0 : index
    %c0_58 = arith.constant 0 : index
    %c0_59 = arith.constant 0 : index
    %53 = vector.load %arg18[%c0_57, %c0_58, %c0_59] : memref<2x1x32xf32, #tpu.memory_space<vmem>>, vector<1x1x32xf32>
    %54 = vector.shape_cast %53 : vector<1x1x32xf32> to vector<1x32xf32>
    %c0_60 = arith.constant 0 : index
    %c0_61 = arith.constant 0 : index
    %c0_62 = arith.constant 0 : index
    %55 = vector.load %arg19[%c0_60, %c0_61, %c0_62] : memref<2x1x32xf32, #tpu.memory_space<vmem>>, vector<1x1x32xf32>
    %56 = vector.shape_cast %55 : vector<1x1x32xf32> to vector<1x32xf32>
    %c0_63 = arith.constant 0 : index
    %c0_64 = arith.constant 0 : index
    %c0_65 = arith.constant 0 : index
    %57 = vector.load %arg20[%c0_63, %c0_64, %c0_65] : memref<2x1x32xf32, #tpu.memory_space<vmem>>, vector<1x1x32xf32>
    %58 = vector.shape_cast %57 : vector<1x1x32xf32> to vector<1x32xf32>
    %cst_66 = arith.constant dense<0.000000e+00> : vector<18x96xf32>
    %59 = tpu.matmul %34, %36, %cst_66 {dimension_numbers = #tpu.dot_dimension_numbers<[1], [0], [0], [1], [0, 0, 1, 1], [], []>} : vector<18x32xf32>, vector<32x96xf32>, vector<18x96xf32> -> vector<18x96xf32>
    %60 = vector.broadcast %38 : vector<1x96xf32> to vector<18x96xf32>
    %61 = arith.addf %59, %60 : vector<18x96xf32>
    %62 = vector.shape_cast %61 : vector<18x96xf32> to vector<2x9x96xf32>
    %63 = vector.extract_strided_slice %62 {offsets = [0, 0, 0], sizes = [2, 9, 8], strides = [1, 1, 1]} : vector<2x9x96xf32> to vector<2x9x8xf32>
    %cst_67 = arith.constant 0.353553385 : f32
    %64 = vector.broadcast %cst_67 : f32 to vector<2x9x8xf32>
    %65 = arith.mulf %63, %64 : vector<2x9x8xf32>
    %66 = vector.extract_strided_slice %62 {offsets = [0, 0, 32], sizes = [2, 9, 8], strides = [1, 1, 1]} : vector<2x9x96xf32> to vector<2x9x8xf32>
    %67 = vector.extract_strided_slice %62 {offsets = [0, 0, 64], sizes = [2, 9, 8], strides = [1, 1, 1]} : vector<2x9x96xf32> to vector<2x9x8xf32>
    "tpu.trace_start"() <{level = 10 : i32, message = "bqd,bkd->bqk"}> : () -> ()
    %cst_68 = arith.constant dense<0.000000e+00> : vector<2x9x9xf32>
    %68 = tpu.matmul %65, %66, %cst_68 {dimension_numbers = #tpu.dot_dimension_numbers<[2], [2], [1], [1], [0, 0, 0, 1, 1, 1], [0], [0]>} : vector<2x9x8xf32>, vector<2x9x8xf32>, vector<2x9x9xf32> -> vector<2x9x9xf32>
    "tpu.trace_stop"() : () -> ()
    %cst_69 = arith.constant dense<0xFF800000> : vector<2x9xf32>
    %69 = vector.multi_reduction <maximumf>, %68, %cst_69 [2] : vector<2x9x9xf32> to vector<2x9xf32>
    %70 = vector.shape_cast %69 : vector<2x9xf32> to vector<2x9x1xf32>
    %71 = vector.broadcast %70 : vector<2x9x1xf32> to vector<2x9x9xf32>
    %72 = arith.subf %68, %71 : vector<2x9x9xf32>
    %73 = math.exp %72 : vector<2x9x9xf32>
    %cst_70 = arith.constant dense<0.000000e+00> : vector<2x9xf32>
    %74 = vector.multi_reduction <add>, %73, %cst_70 [2] : vector<2x9x9xf32> to vector<2x9xf32>
    %75 = vector.shape_cast %74 : vector<2x9xf32> to vector<2x9x1xf32>
    %76 = tpu.reciprocal %75 {approx = true} : vector<2x9x1xf32> -> vector<2x9x1xf32>
    %77 = vector.broadcast %76 : vector<2x9x1xf32> to vector<2x9x9xf32>
    %78 = arith.mulf %73, %77 : vector<2x9x9xf32>
    "tpu.trace_start"() <{level = 10 : i32, message = "bqk,bkd->bqd"}> : () -> ()
    %cst_71 = arith.constant dense<0.000000e+00> : vector<2x9x8xf32>
    %79 = tpu.matmul %78, %67, %cst_71 {dimension_numbers = #tpu.dot_dimension_numbers<[2], [1], [1], [2], [0, 0, 0, 1, 1, 2], [0], [0]>} : vector<2x9x9xf32>, vector<2x9x8xf32>, vector<2x9x8xf32> -> vector<2x9x8xf32>
    "tpu.trace_stop"() : () -> ()
    %c0_72 = arith.constant 0 : index
    %c0_73 = arith.constant 0 : index
    %c0_74 = arith.constant 0 : index
    %80 = vector.load %arg25[%c0_72, %c0_73, %c0_74] : memref<2x9x32xf32, #tpu.memory_space<vmem>>, vector<2x9x8xf32>
    tpu.vector_store %arg25[%c0_72, %c0_73, %c0_74], %79 {strides = array<i32>} : memref<2x9x32xf32, #tpu.memory_space<vmem>>, vector<2x9x8xf32>,
    %81 = vector.extract_strided_slice %62 {offsets = [0, 0, 8], sizes = [2, 9, 8], strides = [1, 1, 1]} : vector<2x9x96xf32> to vector<2x9x8xf32>
    %cst_75 = arith.constant 0.353553385 : f32
    %82 = vector.broadcast %cst_75 : f32 to vector<2x9x8xf32>
    %83 = arith.mulf %81, %82 : vector<2x9x8xf32>
    %84 = vector.extract_strided_slice %62 {offsets = [0, 0, 40], sizes = [2, 9, 8], strides = [1, 1, 1]} : vector<2x9x96xf32> to vector<2x9x8xf32>
    %85 = vector.extract_strided_slice %62 {offsets = [0, 0, 72], sizes = [2, 9, 8], strides = [1, 1, 1]} : vector<2x9x96xf32> to vector<2x9x8xf32>
    "tpu.trace_start"() <{level = 10 : i32, message = "bqd,bkd->bqk"}> : () -> ()
    %cst_76 = arith.constant dense<0.000000e+00> : vector<2x9x9xf32>
    %86 = tpu.matmul %83, %84, %cst_76 {dimension_numbers = #tpu.dot_dimension_numbers<[2], [2], [1], [1], [0, 0, 0, 1, 1, 1], [0], [0]>} : vector<2x9x8xf32>, vector<2x9x8xf32>, vector<2x9x9xf32> -> vector<2x9x9xf32>
    "tpu.trace_stop"() : () -> ()
    %cst_77 = arith.constant dense<0xFF800000> : vector<2x9xf32>
    %87 = vector.multi_reduction <maximumf>, %86, %cst_77 [2] : vector<2x9x9xf32> to vector<2x9xf32>
    %88 = vector.shape_cast %87 : vector<2x9xf32> to vector<2x9x1xf32>
    %89 = vector.broadcast %88 : vector<2x9x1xf32> to vector<2x9x9xf32>
    %90 = arith.subf %86, %89 : vector<2x9x9xf32>
    %91 = math.exp %90 : vector<2x9x9xf32>
    %cst_78 = arith.constant dense<0.000000e+00> : vector<2x9xf32>
    %92 = vector.multi_reduction <add>, %91, %cst_78 [2] : vector<2x9x9xf32> to vector<2x9xf32>
    %93 = vector.shape_cast %92 : vector<2x9xf32> to vector<2x9x1xf32>
    %94 = tpu.reciprocal %93 {approx = true} : vector<2x9x1xf32> -> vector<2x9x1xf32>
    %95 = vector.broadcast %94 : vector<2x9x1xf32> to vector<2x9x9xf32>
    %96 = arith.mulf %91, %95 : vector<2x9x9xf32>
    "tpu.trace_start"() <{level = 10 : i32, message = "bqk,bkd->bqd"}> : () -> ()
    %cst_79 = arith.constant dense<0.000000e+00> : vector<2x9x8xf32>
    %97 = tpu.matmul %96, %85, %cst_79 {dimension_numbers = #tpu.dot_dimension_numbers<[2], [1], [1], [2], [0, 0, 0, 1, 1, 2], [0], [0]>} : vector<2x9x9xf32>, vector<2x9x8xf32>, vector<2x9x8xf32> -> vector<2x9x8xf32>
    "tpu.trace_stop"() : () -> ()
    %c0_80 = arith.constant 0 : index
    %c0_81 = arith.constant 0 : index
    %c8 = arith.constant 8 : index
    %98 = vector.load %arg25[%c0_80, %c0_81, %c8] : memref<2x9x32xf32, #tpu.memory_space<vmem>>, vector<2x9x8xf32>
    tpu.vector_store %arg25[%c0_80, %c0_81, %c8], %97 {strides = array<i32>} : memref<2x9x32xf32, #tpu.memory_space<vmem>>, vector<2x9x8xf32>,
    %99 = vector.extract_strided_slice %62 {offsets = [0, 0, 16], sizes = [2, 9, 8], strides = [1, 1, 1]} : vector<2x9x96xf32> to vector<2x9x8xf32>
    %cst_82 = arith.constant 0.353553385 : f32
    %100 = vector.broadcast %cst_82 : f32 to vector<2x9x8xf32>
    %101 = arith.mulf %99, %100 : vector<2x9x8xf32>
    %102 = vector.extract_strided_slice %62 {offsets = [0, 0, 48], sizes = [2, 9, 8], strides = [1, 1, 1]} : vector<2x9x96xf32> to vector<2x9x8xf32>
    %103 = vector.extract_strided_slice %62 {offsets = [0, 0, 80], sizes = [2, 9, 8], strides = [1, 1, 1]} : vector<2x9x96xf32> to vector<2x9x8xf32>
    "tpu.trace_start"() <{level = 10 : i32, message = "bqd,bkd->bqk"}> : () -> ()
    %cst_83 = arith.constant dense<0.000000e+00> : vector<2x9x9xf32>
    %104 = tpu.matmul %101, %102, %cst_83 {dimension_numbers = #tpu.dot_dimension_numbers<[2], [2], [1], [1], [0, 0, 0, 1, 1, 1], [0], [0]>} : vector<2x9x8xf32>, vector<2x9x8xf32>, vector<2x9x9xf32> -> vector<2x9x9xf32>
    "tpu.trace_stop"() : () -> ()
    %cst_84 = arith.constant dense<0xFF800000> : vector<2x9xf32>
    %105 = vector.multi_reduction <maximumf>, %104, %cst_84 [2] : vector<2x9x9xf32> to vector<2x9xf32>
    %106 = vector.shape_cast %105 : vector<2x9xf32> to vector<2x9x1xf32>
    %107 = vector.broadcast %106 : vector<2x9x1xf32> to vector<2x9x9xf32>
    %108 = arith.subf %104, %107 : vector<2x9x9xf32>
    %109 = math.exp %108 : vector<2x9x9xf32>
    %cst_85 = arith.constant dense<0.000000e+00> : vector<2x9xf32>
    %110 = vector.multi_reduction <add>, %109, %cst_85 [2] : vector<2x9x9xf32> to vector<2x9xf32>
    %111 = vector.shape_cast %110 : vector<2x9xf32> to vector<2x9x1xf32>
    %112 = tpu.reciprocal %111 {approx = true} : vector<2x9x1xf32> -> vector<2x9x1xf32>
    %113 = vector.broadcast %112 : vector<2x9x1xf32> to vector<2x9x9xf32>
    %114 = arith.mulf %109, %113 : vector<2x9x9xf32>
    "tpu.trace_start"() <{level = 10 : i32, message = "bqk,bkd->bqd"}> : () -> ()
    %cst_86 = arith.constant dense<0.000000e+00> : vector<2x9x8xf32>
    %115 = tpu.matmul %114, %103, %cst_86 {dimension_numbers = #tpu.dot_dimension_numbers<[2], [1], [1], [2], [0, 0, 0, 1, 1, 2], [0], [0]>} : vector<2x9x9xf32>, vector<2x9x8xf32>, vector<2x9x8xf32> -> vector<2x9x8xf32>
    "tpu.trace_stop"() : () -> ()
    %c0_87 = arith.constant 0 : index
    %c0_88 = arith.constant 0 : index
    %c16 = arith.constant 16 : index
    %116 = vector.load %arg25[%c0_87, %c0_88, %c16] : memref<2x9x32xf32, #tpu.memory_space<vmem>>, vector<2x9x8xf32>
    tpu.vector_store %arg25[%c0_87, %c0_88, %c16], %115 {strides = array<i32>} : memref<2x9x32xf32, #tpu.memory_space<vmem>>, vector<2x9x8xf32>,
    %117 = vector.extract_strided_slice %62 {offsets = [0, 0, 24], sizes = [2, 9, 8], strides = [1, 1, 1]} : vector<2x9x96xf32> to vector<2x9x8xf32>
    %cst_89 = arith.constant 0.353553385 : f32
    %118 = vector.broadcast %cst_89 : f32 to vector<2x9x8xf32>
    %119 = arith.mulf %117, %118 : vector<2x9x8xf32>
    %120 = vector.extract_strided_slice %62 {offsets = [0, 0, 56], sizes = [2, 9, 8], strides = [1, 1, 1]} : vector<2x9x96xf32> to vector<2x9x8xf32>
    %121 = vector.extract_strided_slice %62 {offsets = [0, 0, 88], sizes = [2, 9, 8], strides = [1, 1, 1]} : vector<2x9x96xf32> to vector<2x9x8xf32>
    "tpu.trace_start"() <{level = 10 : i32, message = "bqd,bkd->bqk"}> : () -> ()
    %cst_90 = arith.constant dense<0.000000e+00> : vector<2x9x9xf32>
    %122 = tpu.matmul %119, %120, %cst_90 {dimension_numbers = #tpu.dot_dimension_numbers<[2], [2], [1], [1], [0, 0, 0, 1, 1, 1], [0], [0]>} : vector<2x9x8xf32>, vector<2x9x8xf32>, vector<2x9x9xf32> -> vector<2x9x9xf32>
    "tpu.trace_stop"() : () -> ()
    %cst_91 = arith.constant dense<0xFF800000> : vector<2x9xf32>
    %123 = vector.multi_reduction <maximumf>, %122, %cst_91 [2] : vector<2x9x9xf32> to vector<2x9xf32>
    %124 = vector.shape_cast %123 : vector<2x9xf32> to vector<2x9x1xf32>
    %125 = vector.broadcast %124 : vector<2x9x1xf32> to vector<2x9x9xf32>
    %126 = arith.subf %122, %125 : vector<2x9x9xf32>
    %127 = math.exp %126 : vector<2x9x9xf32>
    %cst_92 = arith.constant dense<0.000000e+00> : vector<2x9xf32>
    %128 = vector.multi_reduction <add>, %127, %cst_92 [2] : vector<2x9x9xf32> to vector<2x9xf32>
    %129 = vector.shape_cast %128 : vector<2x9xf32> to vector<2x9x1xf32>
    %130 = tpu.reciprocal %129 {approx = true} : vector<2x9x1xf32> -> vector<2x9x1xf32>
    %131 = vector.broadcast %130 : vector<2x9x1xf32> to vector<2x9x9xf32>
    %132 = arith.mulf %127, %131 : vector<2x9x9xf32>
    "tpu.trace_start"() <{level = 10 : i32, message = "bqk,bkd->bqd"}> : () -> ()
    %cst_93 = arith.constant dense<0.000000e+00> : vector<2x9x8xf32>
    %133 = tpu.matmul %132, %121, %cst_93 {dimension_numbers = #tpu.dot_dimension_numbers<[2], [1], [1], [2], [0, 0, 0, 1, 1, 2], [0], [0]>} : vector<2x9x9xf32>, vector<2x9x8xf32>, vector<2x9x8xf32> -> vector<2x9x8xf32>
    "tpu.trace_stop"() : () -> ()
    %c0_94 = arith.constant 0 : index
    %c0_95 = arith.constant 0 : index
    %c24 = arith.constant 24 : index
    %134 = vector.load %arg25[%c0_94, %c0_95, %c24] : memref<2x9x32xf32, #tpu.memory_space<vmem>>, vector<2x9x8xf32>
    tpu.vector_store %arg25[%c0_94, %c0_95, %c24], %133 {strides = array<i32>} : memref<2x9x32xf32, #tpu.memory_space<vmem>>, vector<2x9x8xf32>,
    %c0_96 = arith.constant 0 : index
    %c0_97 = arith.constant 0 : index
    %c0_98 = arith.constant 0 : index
    %135 = vector.load %arg25[%c0_96, %c0_97, %c0_98] : memref<2x9x32xf32, #tpu.memory_space<vmem>>, vector<2x9x32xf32>
    %136 = vector.shape_cast %135 : vector<2x9x32xf32> to vector<18x32xf32>
    %cst_99 = arith.constant dense<0.000000e+00> : vector<18x32xf32>
    %137 = tpu.matmul %136, %40, %cst_99 {dimension_numbers = #tpu.dot_dimension_numbers<[1], [0], [0], [1], [0, 0, 1, 1], [], []>} : vector<18x32xf32>, vector<32x32xf32>, vector<18x32xf32> -> vector<18x32xf32>
    %138 = vector.broadcast %42 : vector<1x32xf32> to vector<18x32xf32>
    %139 = arith.addf %137, %138 : vector<18x32xf32>
    %140 = arith.addf %34, %139 : vector<18x32xf32>
    %cst_100 = arith.constant dense<0.000000e+00> : vector<18xf32>
    %141 = vector.multi_reduction <add>, %140, %cst_100 [1] : vector<18x32xf32> to vector<18xf32>
    %142 = vector.shape_cast %141 : vector<18xf32> to vector<18x1xf32>
    %cst_101 = arith.constant 3.200000e+01 : f32
    %143 = vector.broadcast %cst_101 : f32 to vector<18x1xf32>
    %144 = arith.divf %142, %143 : vector<18x1xf32>
    %145 = vector.broadcast %144 : vector<18x1xf32> to vector<18x32xf32>
    %146 = arith.subf %140, %145 : vector<18x32xf32>
    %147 = arith.mulf %146, %146 : vector<18x32xf32>
    %cst_102 = arith.constant dense<0.000000e+00> : vector<18xf32>
    %148 = vector.multi_reduction <add>, %147, %cst_102 [1] : vector<18x32xf32> to vector<18xf32>
    %149 = vector.shape_cast %148 : vector<18xf32> to vector<18x1xf32>
    %cst_103 = arith.constant 3.200000e+01 : f32
    %150 = vector.broadcast %cst_103 : f32 to vector<18x1xf32>
    %151 = arith.divf %149, %150 : vector<18x1xf32>
    %152 = vector.broadcast %144 : vector<18x1xf32> to vector<18x32xf32>
    %153 = arith.subf %140, %152 : vector<18x32xf32>
    %cst_104 = arith.constant 9.99999974E-6 : f32
    %154 = vector.broadcast %cst_104 : f32 to vector<18x1xf32>
    %155 = arith.addf %151, %154 : vector<18x1xf32>
    %156 = math.rsqrt %155 : vector<18x1xf32>
    %157 = vector.broadcast %156 : vector<18x1xf32> to vector<18x32xf32>
    %158 = arith.mulf %153, %157 : vector<18x32xf32>
    %159 = vector.broadcast %44 : vector<1x32xf32> to vector<18x32xf32>
    %160 = arith.mulf %158, %159 : vector<18x32xf32>
    %161 = vector.broadcast %46 : vector<1x32xf32> to vector<18x32xf32>
    %162 = arith.addf %160, %161 : vector<18x32xf32>
    %cst_105 = arith.constant dense<0.000000e+00> : vector<18x64xf32>
    %163 = tpu.matmul %162, %48, %cst_105 {dimension_numbers = #tpu.dot_dimension_numbers<[1], [0], [0], [1], [0, 0, 1, 1], [], []>} : vector<18x32xf32>, vector<32x64xf32>, vector<18x64xf32> -> vector<18x64xf32>
    %164 = vector.broadcast %50 : vector<1x64xf32> to vector<18x64xf32>
    %165 = arith.addf %163, %164 : vector<18x64xf32>
    %cst_106 = arith.constant 5.000000e-01 : f32
    %166 = vector.broadcast %cst_106 : f32 to vector<18x64xf32>
    %167 = arith.mulf %166, %165 : vector<18x64xf32>
    %cst_107 = arith.constant 4.471500e-02 : f32
    %168 = vector.broadcast %cst_107 : f32 to vector<18x64xf32>
    %169 = arith.mulf %168, %165 : vector<18x64xf32>
    %170 = arith.mulf %169, %165 : vector<18x64xf32>
    %171 = arith.mulf %170, %165 : vector<18x64xf32>
    %172 = arith.addf %165, %171 : vector<18x64xf32>
    %cst_108 = arith.constant 0.797884583 : f32
    %173 = vector.broadcast %cst_108 : f32 to vector<18x64xf32>
    %174 = arith.mulf %173, %172 : vector<18x64xf32>
    %175 = math.tanh %174 : vector<18x64xf32>
    %cst_109 = arith.constant 1.000000e+00 : f32
    %176 = vector.broadcast %cst_109 : f32 to vector<18x64xf32>
    %177 = arith.addf %176, %175 : vector<18x64xf32>
    %178 = arith.mulf %167, %177 : vector<18x64xf32>
    %cst_110 = arith.constant dense<0.000000e+00> : vector<18x32xf32>
    %179 = tpu.matmul %178, %52, %cst_110 {dimension_numbers = #tpu.dot_dimension_numbers<[1], [0], [0], [1], [0, 0, 1, 1], [], []>} : vector<18x64xf32>, vector<64x32xf32>, vector<18x32xf32> -> vector<18x32xf32>
    %180 = vector.broadcast %54 : vector<1x32xf32> to vector<18x32xf32>
    %181 = arith.addf %179, %180 : vector<18x32xf32>
    %182 = arith.addf %162, %181 : vector<18x32xf32>
    %cst_111 = arith.constant dense<0.000000e+00> : vector<18xf32>
    %183 = vector.multi_reduction <add>, %182, %cst_111 [1] : vector<18x32xf32> to vector<18xf32>
    %184 = vector.shape_cast %183 : vector<18xf32> to vector<18x1xf32>
    %cst_112 = arith.constant 3.200000e+01 : f32
    %185 = vector.broadcast %cst_112 : f32 to vector<18x1xf32>
    %186 = arith.divf %184, %185 : vector<18x1xf32>
    %187 = vector.broadcast %186 : vector<18x1xf32> to vector<18x32xf32>
    %188 = arith.subf %182, %187 : vector<18x32xf32>
    %189 = arith.mulf %188, %188 : vector<18x32xf32>
    %cst_113 = arith.constant dense<0.000000e+00> : vector<18xf32>
    %190 = vector.multi_reduction <add>, %189, %cst_113 [1] : vector<18x32xf32> to vector<18xf32>
    %191 = vector.shape_cast %190 : vector<18xf32> to vector<18x1xf32>
    %cst_114 = arith.constant 3.200000e+01 : f32
    %192 = vector.broadcast %cst_114 : f32 to vector<18x1xf32>
    %193 = arith.divf %191, %192 : vector<18x1xf32>
    %194 = vector.broadcast %186 : vector<18x1xf32> to vector<18x32xf32>
    %195 = arith.subf %182, %194 : vector<18x32xf32>
    %cst_115 = arith.constant 9.99999974E-6 : f32
    %196 = vector.broadcast %cst_115 : f32 to vector<18x1xf32>
    %197 = arith.addf %193, %196 : vector<18x1xf32>
    %198 = math.rsqrt %197 : vector<18x1xf32>
    %199 = vector.broadcast %198 : vector<18x1xf32> to vector<18x32xf32>
    %200 = arith.mulf %195, %199 : vector<18x32xf32>
    %201 = vector.broadcast %56 : vector<1x32xf32> to vector<18x32xf32>
    %202 = arith.mulf %200, %201 : vector<18x32xf32>
    %203 = vector.broadcast %58 : vector<1x32xf32> to vector<18x32xf32>
    %204 = arith.addf %202, %203 : vector<18x32xf32>
    %c1_116 = arith.constant 1 : index
    %c0_117 = arith.constant 0 : index
    %c0_118 = arith.constant 0 : index
    %205 = vector.load %arg9[%c1_116, %c0_117, %c0_118] : memref<2x32x96xf32, #tpu.memory_space<vmem>>, vector<1x32x96xf32>
    %206 = vector.shape_cast %205 : vector<1x32x96xf32> to vector<32x96xf32>
    %c1_119 = arith.constant 1 : index
    %c0_120 = arith.constant 0 : index
    %c0_121 = arith.constant 0 : index
    %207 = vector.load %arg10[%c1_119, %c0_120, %c0_121] : memref<2x1x96xf32, #tpu.memory_space<vmem>>, vector<1x1x96xf32>
    %208 = vector.shape_cast %207 : vector<1x1x96xf32> to vector<1x96xf32>
    %c1_122 = arith.constant 1 : index
    %c0_123 = arith.constant 0 : index
    %c0_124 = arith.constant 0 : index
    %209 = vector.load %arg11[%c1_122, %c0_123, %c0_124] : memref<2x32x32xf32, #tpu.memory_space<vmem>>, vector<1x32x32xf32>
    %210 = vector.shape_cast %209 : vector<1x32x32xf32> to vector<32x32xf32>
    %c1_125 = arith.constant 1 : index
    %c0_126 = arith.constant 0 : index
    %c0_127 = arith.constant 0 : index
    %211 = vector.load %arg12[%c1_125, %c0_126, %c0_127] : memref<2x1x32xf32, #tpu.memory_space<vmem>>, vector<1x1x32xf32>
    %212 = vector.shape_cast %211 : vector<1x1x32xf32> to vector<1x32xf32>
    %c1_128 = arith.constant 1 : index
    %c0_129 = arith.constant 0 : index
    %c0_130 = arith.constant 0 : index
    %213 = vector.load %arg13[%c1_128, %c0_129, %c0_130] : memref<2x1x32xf32, #tpu.memory_space<vmem>>, vector<1x1x32xf32>
    %214 = vector.shape_cast %213 : vector<1x1x32xf32> to vector<1x32xf32>
    %c1_131 = arith.constant 1 : index
    %c0_132 = arith.constant 0 : index
    %c0_133 = arith.constant 0 : index
    %215 = vector.load %arg14[%c1_131, %c0_132, %c0_133] : memref<2x1x32xf32, #tpu.memory_space<vmem>>, vector<1x1x32xf32>
    %216 = vector.shape_cast %215 : vector<1x1x32xf32> to vector<1x32xf32>
    %c1_134 = arith.constant 1 : index
    %c0_135 = arith.constant 0 : index
    %c0_136 = arith.constant 0 : index
    %217 = vector.load %arg15[%c1_134, %c0_135, %c0_136] : memref<2x32x64xf32, #tpu.memory_space<vmem>>, vector<1x32x64xf32>
    %218 = vector.shape_cast %217 : vector<1x32x64xf32> to vector<32x64xf32>
    %c1_137 = arith.constant 1 : index
    %c0_138 = arith.constant 0 : index
    %c0_139 = arith.constant 0 : index
    %219 = vector.load %arg16[%c1_137, %c0_138, %c0_139] : memref<2x1x64xf32, #tpu.memory_space<vmem>>, vector<1x1x64xf32>
    %220 = vector.shape_cast %219 : vector<1x1x64xf32> to vector<1x64xf32>
    %c1_140 = arith.constant 1 : index
    %c0_141 = arith.constant 0 : index
    %c0_142 = arith.constant 0 : index
    %221 = vector.load %arg17[%c1_140, %c0_141, %c0_142] : memref<2x64x32xf32, #tpu.memory_space<vmem>>, vector<1x64x32xf32>
    %222 = vector.shape_cast %221 : vector<1x64x32xf32> to vector<64x32xf32>
    %c1_143 = arith.constant 1 : index
    %c0_144 = arith.constant 0 : index
    %c0_145 = arith.constant 0 : index
    %223 = vector.load %arg18[%c1_143, %c0_144, %c0_145] : memref<2x1x32xf32, #tpu.memory_space<vmem>>, vector<1x1x32xf32>
    %224 = vector.shape_cast %223 : vector<1x1x32xf32> to vector<1x32xf32>
    %c1_146 = arith.constant 1 : index
    %c0_147 = arith.constant 0 : index
    %c0_148 = arith.constant 0 : index
    %225 = vector.load %arg19[%c1_146, %c0_147, %c0_148] : memref<2x1x32xf32, #tpu.memory_space<vmem>>, vector<1x1x32xf32>
    %226 = vector.shape_cast %225 : vector<1x1x32xf32> to vector<1x32xf32>
    %c1_149 = arith.constant 1 : index
    %c0_150 = arith.constant 0 : index
    %c0_151 = arith.constant 0 : index
    %227 = vector.load %arg20[%c1_149, %c0_150, %c0_151] : memref<2x1x32xf32, #tpu.memory_space<vmem>>, vector<1x1x32xf32>
    %228 = vector.shape_cast %227 : vector<1x1x32xf32> to vector<1x32xf32>
    %cst_152 = arith.constant dense<0.000000e+00> : vector<18x96xf32>
    %229 = tpu.matmul %204, %206, %cst_152 {dimension_numbers = #tpu.dot_dimension_numbers<[1], [0], [0], [1], [0, 0, 1, 1], [], []>} : vector<18x32xf32>, vector<32x96xf32>, vector<18x96xf32> -> vector<18x96xf32>
    %230 = vector.broadcast %208 : vector<1x96xf32> to vector<18x96xf32>
    %231 = arith.addf %229, %230 : vector<18x96xf32>
    %232 = vector.shape_cast %231 : vector<18x96xf32> to vector<2x9x96xf32>
    %233 = vector.extract_strided_slice %232 {offsets = [0, 0, 0], sizes = [2, 9, 8], strides = [1, 1, 1]} : vector<2x9x96xf32> to vector<2x9x8xf32>
    %cst_153 = arith.constant 0.353553385 : f32
    %234 = vector.broadcast %cst_153 : f32 to vector<2x9x8xf32>
    %235 = arith.mulf %233, %234 : vector<2x9x8xf32>
    %236 = vector.extract_strided_slice %232 {offsets = [0, 0, 32], sizes = [2, 9, 8], strides = [1, 1, 1]} : vector<2x9x96xf32> to vector<2x9x8xf32>
    %237 = vector.extract_strided_slice %232 {offsets = [0, 0, 64], sizes = [2, 9, 8], strides = [1, 1, 1]} : vector<2x9x96xf32> to vector<2x9x8xf32>
    "tpu.trace_start"() <{level = 10 : i32, message = "bqd,bkd->bqk"}> : () -> ()
    %cst_154 = arith.constant dense<0.000000e+00> : vector<2x9x9xf32>
    %238 = tpu.matmul %235, %236, %cst_154 {dimension_numbers = #tpu.dot_dimension_numbers<[2], [2], [1], [1], [0, 0, 0, 1, 1, 1], [0], [0]>} : vector<2x9x8xf32>, vector<2x9x8xf32>, vector<2x9x9xf32> -> vector<2x9x9xf32>
    "tpu.trace_stop"() : () -> ()
    %cst_155 = arith.constant dense<0xFF800000> : vector<2x9xf32>
    %239 = vector.multi_reduction <maximumf>, %238, %cst_155 [2] : vector<2x9x9xf32> to vector<2x9xf32>
    %240 = vector.shape_cast %239 : vector<2x9xf32> to vector<2x9x1xf32>
    %241 = vector.broadcast %240 : vector<2x9x1xf32> to vector<2x9x9xf32>
    %242 = arith.subf %238, %241 : vector<2x9x9xf32>
    %243 = math.exp %242 : vector<2x9x9xf32>
    %cst_156 = arith.constant dense<0.000000e+00> : vector<2x9xf32>
    %244 = vector.multi_reduction <add>, %243, %cst_156 [2] : vector<2x9x9xf32> to vector<2x9xf32>
    %245 = vector.shape_cast %244 : vector<2x9xf32> to vector<2x9x1xf32>
    %246 = tpu.reciprocal %245 {approx = true} : vector<2x9x1xf32> -> vector<2x9x1xf32>
    %247 = vector.broadcast %246 : vector<2x9x1xf32> to vector<2x9x9xf32>
    %248 = arith.mulf %243, %247 : vector<2x9x9xf32>
    "tpu.trace_start"() <{level = 10 : i32, message = "bqk,bkd->bqd"}> : () -> ()
    %cst_157 = arith.constant dense<0.000000e+00> : vector<2x9x8xf32>
    %249 = tpu.matmul %248, %237, %cst_157 {dimension_numbers = #tpu.dot_dimension_numbers<[2], [1], [1], [2], [0, 0, 0, 1, 1, 2], [0], [0]>} : vector<2x9x9xf32>, vector<2x9x8xf32>, vector<2x9x8xf32> -> vector<2x9x8xf32>
    "tpu.trace_stop"() : () -> ()
    %c0_158 = arith.constant 0 : index
    %c0_159 = arith.constant 0 : index
    %c0_160 = arith.constant 0 : index
    %250 = vector.load %arg25[%c0_158, %c0_159, %c0_160] : memref<2x9x32xf32, #tpu.memory_space<vmem>>, vector<2x9x8xf32>
    tpu.vector_store %arg25[%c0_158, %c0_159, %c0_160], %249 {strides = array<i32>} : memref<2x9x32xf32, #tpu.memory_space<vmem>>, vector<2x9x8xf32>,
    %251 = vector.extract_strided_slice %232 {offsets = [0, 0, 8], sizes = [2, 9, 8], strides = [1, 1, 1]} : vector<2x9x96xf32> to vector<2x9x8xf32>
    %cst_161 = arith.constant 0.353553385 : f32
    %252 = vector.broadcast %cst_161 : f32 to vector<2x9x8xf32>
    %253 = arith.mulf %251, %252 : vector<2x9x8xf32>
    %254 = vector.extract_strided_slice %232 {offsets = [0, 0, 40], sizes = [2, 9, 8], strides = [1, 1, 1]} : vector<2x9x96xf32> to vector<2x9x8xf32>
    %255 = vector.extract_strided_slice %232 {offsets = [0, 0, 72], sizes = [2, 9, 8], strides = [1, 1, 1]} : vector<2x9x96xf32> to vector<2x9x8xf32>
    "tpu.trace_start"() <{level = 10 : i32, message = "bqd,bkd->bqk"}> : () -> ()
    %cst_162 = arith.constant dense<0.000000e+00> : vector<2x9x9xf32>
    %256 = tpu.matmul %253, %254, %cst_162 {dimension_numbers = #tpu.dot_dimension_numbers<[2], [2], [1], [1], [0, 0, 0, 1, 1, 1], [0], [0]>} : vector<2x9x8xf32>, vector<2x9x8xf32>, vector<2x9x9xf32> -> vector<2x9x9xf32>
    "tpu.trace_stop"() : () -> ()
    %cst_163 = arith.constant dense<0xFF800000> : vector<2x9xf32>
    %257 = vector.multi_reduction <maximumf>, %256, %cst_163 [2] : vector<2x9x9xf32> to vector<2x9xf32>
    %258 = vector.shape_cast %257 : vector<2x9xf32> to vector<2x9x1xf32>
    %259 = vector.broadcast %258 : vector<2x9x1xf32> to vector<2x9x9xf32>
    %260 = arith.subf %256, %259 : vector<2x9x9xf32>
    %261 = math.exp %260 : vector<2x9x9xf32>
    %cst_164 = arith.constant dense<0.000000e+00> : vector<2x9xf32>
    %262 = vector.multi_reduction <add>, %261, %cst_164 [2] : vector<2x9x9xf32> to vector<2x9xf32>
    %263 = vector.shape_cast %262 : vector<2x9xf32> to vector<2x9x1xf32>
    %264 = tpu.reciprocal %263 {approx = true} : vector<2x9x1xf32> -> vector<2x9x1xf32>
    %265 = vector.broadcast %264 : vector<2x9x1xf32> to vector<2x9x9xf32>
    %266 = arith.mulf %261, %265 : vector<2x9x9xf32>
    "tpu.trace_start"() <{level = 10 : i32, message = "bqk,bkd->bqd"}> : () -> ()
    %cst_165 = arith.constant dense<0.000000e+00> : vector<2x9x8xf32>
    %267 = tpu.matmul %266, %255, %cst_165 {dimension_numbers = #tpu.dot_dimension_numbers<[2], [1], [1], [2], [0, 0, 0, 1, 1, 2], [0], [0]>} : vector<2x9x9xf32>, vector<2x9x8xf32>, vector<2x9x8xf32> -> vector<2x9x8xf32>
    "tpu.trace_stop"() : () -> ()
    %c0_166 = arith.constant 0 : index
    %c0_167 = arith.constant 0 : index
    %c8_168 = arith.constant 8 : index
    %268 = vector.load %arg25[%c0_166, %c0_167, %c8_168] : memref<2x9x32xf32, #tpu.memory_space<vmem>>, vector<2x9x8xf32>
    tpu.vector_store %arg25[%c0_166, %c0_167, %c8_168], %267 {strides = array<i32>} : memref<2x9x32xf32, #tpu.memory_space<vmem>>, vector<2x9x8xf32>,
    %269 = vector.extract_strided_slice %232 {offsets = [0, 0, 16], sizes = [2, 9, 8], strides = [1, 1, 1]} : vector<2x9x96xf32> to vector<2x9x8xf32>
    %cst_169 = arith.constant 0.353553385 : f32
    %270 = vector.broadcast %cst_169 : f32 to vector<2x9x8xf32>
    %271 = arith.mulf %269, %270 : vector<2x9x8xf32>
    %272 = vector.extract_strided_slice %232 {offsets = [0, 0, 48], sizes = [2, 9, 8], strides = [1, 1, 1]} : vector<2x9x96xf32> to vector<2x9x8xf32>
    %273 = vector.extract_strided_slice %232 {offsets = [0, 0, 80], sizes = [2, 9, 8], strides = [1, 1, 1]} : vector<2x9x96xf32> to vector<2x9x8xf32>
    "tpu.trace_start"() <{level = 10 : i32, message = "bqd,bkd->bqk"}> : () -> ()
    %cst_170 = arith.constant dense<0.000000e+00> : vector<2x9x9xf32>
    %274 = tpu.matmul %271, %272, %cst_170 {dimension_numbers = #tpu.dot_dimension_numbers<[2], [2], [1], [1], [0, 0, 0, 1, 1, 1], [0], [0]>} : vector<2x9x8xf32>, vector<2x9x8xf32>, vector<2x9x9xf32> -> vector<2x9x9xf32>
    "tpu.trace_stop"() : () -> ()
    %cst_171 = arith.constant dense<0xFF800000> : vector<2x9xf32>
    %275 = vector.multi_reduction <maximumf>, %274, %cst_171 [2] : vector<2x9x9xf32> to vector<2x9xf32>
    %276 = vector.shape_cast %275 : vector<2x9xf32> to vector<2x9x1xf32>
    %277 = vector.broadcast %276 : vector<2x9x1xf32> to vector<2x9x9xf32>
    %278 = arith.subf %274, %277 : vector<2x9x9xf32>
    %279 = math.exp %278 : vector<2x9x9xf32>
    %cst_172 = arith.constant dense<0.000000e+00> : vector<2x9xf32>
    %280 = vector.multi_reduction <add>, %279, %cst_172 [2] : vector<2x9x9xf32> to vector<2x9xf32>
    %281 = vector.shape_cast %280 : vector<2x9xf32> to vector<2x9x1xf32>
    %282 = tpu.reciprocal %281 {approx = true} : vector<2x9x1xf32> -> vector<2x9x1xf32>
    %283 = vector.broadcast %282 : vector<2x9x1xf32> to vector<2x9x9xf32>
    %284 = arith.mulf %279, %283 : vector<2x9x9xf32>
    "tpu.trace_start"() <{level = 10 : i32, message = "bqk,bkd->bqd"}> : () -> ()
    %cst_173 = arith.constant dense<0.000000e+00> : vector<2x9x8xf32>
    %285 = tpu.matmul %284, %273, %cst_173 {dimension_numbers = #tpu.dot_dimension_numbers<[2], [1], [1], [2], [0, 0, 0, 1, 1, 2], [0], [0]>} : vector<2x9x9xf32>, vector<2x9x8xf32>, vector<2x9x8xf32> -> vector<2x9x8xf32>
    "tpu.trace_stop"() : () -> ()
    %c0_174 = arith.constant 0 : index
    %c0_175 = arith.constant 0 : index
    %c16_176 = arith.constant 16 : index
    %286 = vector.load %arg25[%c0_174, %c0_175, %c16_176] : memref<2x9x32xf32, #tpu.memory_space<vmem>>, vector<2x9x8xf32>
    tpu.vector_store %arg25[%c0_174, %c0_175, %c16_176], %285 {strides = array<i32>} : memref<2x9x32xf32, #tpu.memory_space<vmem>>, vector<2x9x8xf32>,
    %287 = vector.extract_strided_slice %232 {offsets = [0, 0, 24], sizes = [2, 9, 8], strides = [1, 1, 1]} : vector<2x9x96xf32> to vector<2x9x8xf32>
    %cst_177 = arith.constant 0.353553385 : f32
    %288 = vector.broadcast %cst_177 : f32 to vector<2x9x8xf32>
    %289 = arith.mulf %287, %288 : vector<2x9x8xf32>
    %290 = vector.extract_strided_slice %232 {offsets = [0, 0, 56], sizes = [2, 9, 8], strides = [1, 1, 1]} : vector<2x9x96xf32> to vector<2x9x8xf32>
    %291 = vector.extract_strided_slice %232 {offsets = [0, 0, 88], sizes = [2, 9, 8], strides = [1, 1, 1]} : vector<2x9x96xf32> to vector<2x9x8xf32>
    "tpu.trace_start"() <{level = 10 : i32, message = "bqd,bkd->bqk"}> : () -> ()
    %cst_178 = arith.constant dense<0.000000e+00> : vector<2x9x9xf32>
    %292 = tpu.matmul %289, %290, %cst_178 {dimension_numbers = #tpu.dot_dimension_numbers<[2], [2], [1], [1], [0, 0, 0, 1, 1, 1], [0], [0]>} : vector<2x9x8xf32>, vector<2x9x8xf32>, vector<2x9x9xf32> -> vector<2x9x9xf32>
    "tpu.trace_stop"() : () -> ()
    %cst_179 = arith.constant dense<0xFF800000> : vector<2x9xf32>
    %293 = vector.multi_reduction <maximumf>, %292, %cst_179 [2] : vector<2x9x9xf32> to vector<2x9xf32>
    %294 = vector.shape_cast %293 : vector<2x9xf32> to vector<2x9x1xf32>
    %295 = vector.broadcast %294 : vector<2x9x1xf32> to vector<2x9x9xf32>
    %296 = arith.subf %292, %295 : vector<2x9x9xf32>
    %297 = math.exp %296 : vector<2x9x9xf32>
    %cst_180 = arith.constant dense<0.000000e+00> : vector<2x9xf32>
    %298 = vector.multi_reduction <add>, %297, %cst_180 [2] : vector<2x9x9xf32> to vector<2x9xf32>
    %299 = vector.shape_cast %298 : vector<2x9xf32> to vector<2x9x1xf32>
    %300 = tpu.reciprocal %299 {approx = true} : vector<2x9x1xf32> -> vector<2x9x1xf32>
    %301 = vector.broadcast %300 : vector<2x9x1xf32> to vector<2x9x9xf32>
    %302 = arith.mulf %297, %301 : vector<2x9x9xf32>
    "tpu.trace_start"() <{level = 10 : i32, message = "bqk,bkd->bqd"}> : () -> ()
    %cst_181 = arith.constant dense<0.000000e+00> : vector<2x9x8xf32>
    %303 = tpu.matmul %302, %291, %cst_181 {dimension_numbers = #tpu.dot_dimension_numbers<[2], [1], [1], [2], [0, 0, 0, 1, 1, 2], [0], [0]>} : vector<2x9x9xf32>, vector<2x9x8xf32>, vector<2x9x8xf32> -> vector<2x9x8xf32>
    "tpu.trace_stop"() : () -> ()
    %c0_182 = arith.constant 0 : index
    %c0_183 = arith.constant 0 : index
    %c24_184 = arith.constant 24 : index
    %304 = vector.load %arg25[%c0_182, %c0_183, %c24_184] : memref<2x9x32xf32, #tpu.memory_space<vmem>>, vector<2x9x8xf32>
    tpu.vector_store %arg25[%c0_182, %c0_183, %c24_184], %303 {strides = array<i32>} : memref<2x9x32xf32, #tpu.memory_space<vmem>>, vector<2x9x8xf32>,
    %c0_185 = arith.constant 0 : index
    %c0_186 = arith.constant 0 : index
    %c0_187 = arith.constant 0 : index
    %305 = vector.load %arg25[%c0_185, %c0_186, %c0_187] : memref<2x9x32xf32, #tpu.memory_space<vmem>>, vector<2x9x32xf32>
    %306 = vector.shape_cast %305 : vector<2x9x32xf32> to vector<18x32xf32>
    %cst_188 = arith.constant dense<0.000000e+00> : vector<18x32xf32>
    %307 = tpu.matmul %306, %210, %cst_188 {dimension_numbers = #tpu.dot_dimension_numbers<[1], [0], [0], [1], [0, 0, 1, 1], [], []>} : vector<18x32xf32>, vector<32x32xf32>, vector<18x32xf32> -> vector<18x32xf32>
    %308 = vector.broadcast %212 : vector<1x32xf32> to vector<18x32xf32>
    %309 = arith.addf %307, %308 : vector<18x32xf32>
    %310 = arith.addf %204, %309 : vector<18x32xf32>
    %cst_189 = arith.constant dense<0.000000e+00> : vector<18xf32>
    %311 = vector.multi_reduction <add>, %310, %cst_189 [1] : vector<18x32xf32> to vector<18xf32>
    %312 = vector.shape_cast %311 : vector<18xf32> to vector<18x1xf32>
    %cst_190 = arith.constant 3.200000e+01 : f32
    %313 = vector.broadcast %cst_190 : f32 to vector<18x1xf32>
    %314 = arith.divf %312, %313 : vector<18x1xf32>
    %315 = vector.broadcast %314 : vector<18x1xf32> to vector<18x32xf32>
    %316 = arith.subf %310, %315 : vector<18x32xf32>
    %317 = arith.mulf %316, %316 : vector<18x32xf32>
    %cst_191 = arith.constant dense<0.000000e+00> : vector<18xf32>
    %318 = vector.multi_reduction <add>, %317, %cst_191 [1] : vector<18x32xf32> to vector<18xf32>
    %319 = vector.shape_cast %318 : vector<18xf32> to vector<18x1xf32>
    %cst_192 = arith.constant 3.200000e+01 : f32
    %320 = vector.broadcast %cst_192 : f32 to vector<18x1xf32>
    %321 = arith.divf %319, %320 : vector<18x1xf32>
    %322 = vector.broadcast %314 : vector<18x1xf32> to vector<18x32xf32>
    %323 = arith.subf %310, %322 : vector<18x32xf32>
    %cst_193 = arith.constant 9.99999974E-6 : f32
    %324 = vector.broadcast %cst_193 : f32 to vector<18x1xf32>
    %325 = arith.addf %321, %324 : vector<18x1xf32>
    %326 = math.rsqrt %325 : vector<18x1xf32>
    %327 = vector.broadcast %326 : vector<18x1xf32> to vector<18x32xf32>
    %328 = arith.mulf %323, %327 : vector<18x32xf32>
    %329 = vector.broadcast %214 : vector<1x32xf32> to vector<18x32xf32>
    %330 = arith.mulf %328, %329 : vector<18x32xf32>
    %331 = vector.broadcast %216 : vector<1x32xf32> to vector<18x32xf32>
    %332 = arith.addf %330, %331 : vector<18x32xf32>
    %cst_194 = arith.constant dense<0.000000e+00> : vector<18x64xf32>
    %333 = tpu.matmul %332, %218, %cst_194 {dimension_numbers = #tpu.dot_dimension_numbers<[1], [0], [0], [1], [0, 0, 1, 1], [], []>} : vector<18x32xf32>, vector<32x64xf32>, vector<18x64xf32> -> vector<18x64xf32>
    %334 = vector.broadcast %220 : vector<1x64xf32> to vector<18x64xf32>
    %335 = arith.addf %333, %334 : vector<18x64xf32>
    %cst_195 = arith.constant 5.000000e-01 : f32
    %336 = vector.broadcast %cst_195 : f32 to vector<18x64xf32>
    %337 = arith.mulf %336, %335 : vector<18x64xf32>
    %cst_196 = arith.constant 4.471500e-02 : f32
    %338 = vector.broadcast %cst_196 : f32 to vector<18x64xf32>
    %339 = arith.mulf %338, %335 : vector<18x64xf32>
    %340 = arith.mulf %339, %335 : vector<18x64xf32>
    %341 = arith.mulf %340, %335 : vector<18x64xf32>
    %342 = arith.addf %335, %341 : vector<18x64xf32>
    %cst_197 = arith.constant 0.797884583 : f32
    %343 = vector.broadcast %cst_197 : f32 to vector<18x64xf32>
    %344 = arith.mulf %343, %342 : vector<18x64xf32>
    %345 = math.tanh %344 : vector<18x64xf32>
    %cst_198 = arith.constant 1.000000e+00 : f32
    %346 = vector.broadcast %cst_198 : f32 to vector<18x64xf32>
    %347 = arith.addf %346, %345 : vector<18x64xf32>
    %348 = arith.mulf %337, %347 : vector<18x64xf32>
    %cst_199 = arith.constant dense<0.000000e+00> : vector<18x32xf32>
    %349 = tpu.matmul %348, %222, %cst_199 {dimension_numbers = #tpu.dot_dimension_numbers<[1], [0], [0], [1], [0, 0, 1, 1], [], []>} : vector<18x64xf32>, vector<64x32xf32>, vector<18x32xf32> -> vector<18x32xf32>
    %350 = vector.broadcast %224 : vector<1x32xf32> to vector<18x32xf32>
    %351 = arith.addf %349, %350 : vector<18x32xf32>
    %352 = arith.addf %332, %351 : vector<18x32xf32>
    %cst_200 = arith.constant dense<0.000000e+00> : vector<18xf32>
    %353 = vector.multi_reduction <add>, %352, %cst_200 [1] : vector<18x32xf32> to vector<18xf32>
    %354 = vector.shape_cast %353 : vector<18xf32> to vector<18x1xf32>
    %cst_201 = arith.constant 3.200000e+01 : f32
    %355 = vector.broadcast %cst_201 : f32 to vector<18x1xf32>
    %356 = arith.divf %354, %355 : vector<18x1xf32>
    %357 = vector.broadcast %356 : vector<18x1xf32> to vector<18x32xf32>
    %358 = arith.subf %352, %357 : vector<18x32xf32>
    %359 = arith.mulf %358, %358 : vector<18x32xf32>
    %cst_202 = arith.constant dense<0.000000e+00> : vector<18xf32>
    %360 = vector.multi_reduction <add>, %359, %cst_202 [1] : vector<18x32xf32> to vector<18xf32>
    %361 = vector.shape_cast %360 : vector<18xf32> to vector<18x1xf32>
    %cst_203 = arith.constant 3.200000e+01 : f32
    %362 = vector.broadcast %cst_203 : f32 to vector<18x1xf32>
    %363 = arith.divf %361, %362 : vector<18x1xf32>
    %364 = vector.broadcast %356 : vector<18x1xf32> to vector<18x32xf32>
    %365 = arith.subf %352, %364 : vector<18x32xf32>
    %cst_204 = arith.constant 9.99999974E-6 : f32
    %366 = vector.broadcast %cst_204 : f32 to vector<18x1xf32>
    %367 = arith.addf %363, %366 : vector<18x1xf32>
    %368 = math.rsqrt %367 : vector<18x1xf32>
    %369 = vector.broadcast %368 : vector<18x1xf32> to vector<18x32xf32>
    %370 = arith.mulf %365, %369 : vector<18x32xf32>
    %371 = vector.broadcast %226 : vector<1x32xf32> to vector<18x32xf32>
    %372 = arith.mulf %370, %371 : vector<18x32xf32>
    %373 = vector.broadcast %228 : vector<1x32xf32> to vector<18x32xf32>
    %374 = arith.addf %372, %373 : vector<18x32xf32>
    %c0_205 = arith.constant 0 : index
    %c0_206 = arith.constant 0 : index
    %375 = vector.load %arg21[%c0_205, %c0_206] : memref<32x32xf32, #tpu.memory_space<vmem>>, vector<32x32xf32>
    %cst_207 = arith.constant dense<0.000000e+00> : vector<18x32xf32>
    %376 = tpu.matmul %374, %375, %cst_207 {dimension_numbers = #tpu.dot_dimension_numbers<[1], [0], [0], [1], [0, 0, 1, 1], [], []>} : vector<18x32xf32>, vector<32x32xf32>, vector<18x32xf32> -> vector<18x32xf32>
    %c0_208 = arith.constant 0 : index
    %c0_209 = arith.constant 0 : index
    %377 = vector.load %arg22[%c0_208, %c0_209] : memref<1x32xf32, #tpu.memory_space<vmem>>, vector<1x32xf32>
    %378 = vector.broadcast %377 : vector<1x32xf32> to vector<18x32xf32>
    %379 = arith.addf %376, %378 : vector<18x32xf32>
    %380 = vector.shape_cast %379 : vector<18x32xf32> to vector<2x9x32xf32>
    %381 = vector.extract_strided_slice %380 {offsets = [0, 1, 0], sizes = [2, 8, 32], strides = [1, 1, 1]} : vector<2x9x32xf32> to vector<2x8x32xf32>
    %c0_210 = arith.constant 0 : index
    %c0_211 = arith.constant 0 : index
    %c0_212 = arith.constant 0 : index
    %382 = vector.load %arg23[%c0_210, %c0_211, %c0_212] : memref<2x8x32xf32, #tpu.memory_space<vmem>>, vector<2x8x32xf32>
    tpu.vector_store %arg23[%c0_210, %c0_211, %c0_212], %381 {strides = array<i32>} : memref<2x8x32xf32, #tpu.memory_space<vmem>>, vector<2x8x32xf32>,
    return
  }
}

</mosaic_0001>

<llo_original>
// kernel: tpu_custom_call.1
$region0: #{tpu_custom_call.1}
  #allocation0 [shape = 'u32[]', space=smem, size = 0x4, offset = 0x4, fixed_abs, tag = 'smem constant byte address 0x4 - core index']
  #allocation1 [shape = 'u32[72,128]{1,0:T(1,128)}', space=vmem, size = 0x9000, scoped, tag = 'internal scratch']
  #allocation2 [shape = 'f32[2,9,32]{2,1,0:T(8,128)}', space=vmem, size = 0x4000, scoped, tag = 'scratch operand']
  #allocation3 [shape = 'f32[2,9,32]{2,1,0:T(8,128)}', space=vmem, size = 0x4000, scoped, tag = 'scratch operand']
  %s0 = inlined_call_operand.hbm [shape: f32[16,32], index: 0, kind: input, shape index: {}]
  %s1 = inlined_call_operand.hbm [shape: f32[2,32], index: 1, kind: input, shape index: {}]
  %s2 = inlined_call_operand.hbm [shape: f32[9,32], index: 2, kind: input, shape index: {}]
  %s3 = inlined_call_operand.hbm [shape: f32[32,32], index: 3, kind: input, shape index: {}]
  %s4 = inlined_call_operand.hbm [shape: f32[1,32], index: 4, kind: input, shape index: {}]
  %s5 = inlined_call_operand.hbm [shape: f32[32,32], index: 5, kind: input, shape index: {}]
  %s6 = inlined_call_operand.hbm [shape: f32[1,32], index: 6, kind: input, shape index: {}]
  %s7 = inlined_call_operand.hbm [shape: f32[32,32], index: 7, kind: input, shape index: {}]
  %s8 = inlined_call_operand.hbm [shape: f32[1,32], index: 8, kind: input, shape index: {}]
  %s9 = inlined_call_operand.vmem [shape: f32[2,32,96], index: 9, kind: input, shape index: {}]
  %s10 = inlined_call_operand.vmem [shape: f32[2,1,96], index: 10, kind: input, shape index: {}]
  %s11 = inlined_call_operand.vmem [shape: f32[2,32,32], index: 11, kind: input, shape index: {}]
  %s12 = inlined_call_operand.vmem [shape: f32[2,1,32], index: 12, kind: input, shape index: {}]
  %s13 = inlined_call_operand.vmem [shape: f32[2,1,32], index: 13, kind: input, shape index: {}]
  %s14 = inlined_call_operand.vmem [shape: f32[2,1,32], index: 14, kind: input, shape index: {}]
  %s15 = inlined_call_operand.vmem [shape: f32[2,32,64], index: 15, kind: input, shape index: {}]
  %s16 = inlined_call_operand.vmem [shape: f32[2,1,64], index: 16, kind: input, shape index: {}]
  %s17 = inlined_call_operand.vmem [shape: f32[2,64,32], index: 17, kind: input, shape index: {}]
  %s18 = inlined_call_operand.vmem [shape: f32[2,1,32], index: 18, kind: input, shape index: {}]
  %s19 = inlined_call_operand.vmem [shape: f32[2,1,32], index: 19, kind: input, shape index: {}]
  %s20 = inlined_call_operand.vmem [shape: f32[2,1,32], index: 20, kind: input, shape index: {}]
  %s21 = inlined_call_operand.hbm [shape: f32[32,32], index: 21, kind: input, shape index: {}]
  %s22 = inlined_call_operand.vmem [shape: f32[1,32], index: 22, kind: input, shape index: {}]
  %s23 = inlined_call_operand.hbm [shape: f32[2,8,32], index: 23, kind: output, shape index: {}]
  %s24 = sld [smem:[#allocation0]]
  $region142: #{tpu_custom_call.1} parent=0
    _
  %s26 = ssub.s32 1, %s24
  %s27 = scalar_select 0, %s26, %s24
  $region1: #{tpu_custom_call.1} parent=0
    #allocation4 [shape = 'u8[8192]{0}', space=vmem, size = 0x2000, scoped, tag = 'input window, operand 0, single buffered']
    #allocation5 [shape = 's32[1]{0}', space=sflag, size = 0x4, scoped, tag = 'scoped memory for tpu_custom_call.1']
    #allocation6 [shape = 's32[1]{0}', space=sflag, size = 0x4, scoped, tag = 'scoped memory for tpu_custom_call.1']
    #allocation7 [shape = 'u8[1024]{0}', space=vmem, size = 0x400, scoped, tag = 'input window, operand 1, single buffered']
    #allocation8 [shape = 's32[1]{0}', space=sflag, size = 0x4, scoped, tag = 'scoped memory for tpu_custom_call.1']
    #allocation9 [shape = 'u8[8192]{0}', space=vmem, size = 0x2000, scoped, tag = 'input window, operand 2, single buffered']
    #allocation10 [shape = 'u8[16384]{0}', space=vmem, size = 0x4000, scoped, tag = 'input window, operand 3, single buffered']
    #allocation11 [shape = 's32[1]{0}', space=sflag, size = 0x4, scoped, tag = 'scoped memory for tpu_custom_call.1']
    #allocation12 [shape = 'u8[512]{0}', space=vmem, size = 0x400, scoped, tag = 'input window, operand 4, single buffered']
    #allocation13 [shape = 'u8[16384]{0}', space=vmem, size = 0x4000, scoped, tag = 'input window, operand 5, single buffered']
    #allocation14 [shape = 's32[1]{0}', space=sflag, size = 0x4, scoped, tag = 'scoped memory for tpu_custom_call.1']
    #allocation15 [shape = 'u8[512]{0}', space=vmem, size = 0x400, scoped, tag = 'input window, operand 6, single buffered']
    #allocation16 [shape = 'u8[16384]{0}', space=vmem, size = 0x4000, scoped, tag = 'input window, operand 7, single buffered']
    #allocation17 [shape = 's32[1]{0}', space=sflag, size = 0x4, scoped, tag = 'scoped memory for tpu_custom_call.1']
    #allocation18 [shape = 'u8[512]{0}', space=vmem, size = 0x400, scoped, tag = 'input window, operand 8, single buffered']
    #allocation19 [shape = 'u8[16384]{0}', space=vmem, size = 0x4000, scoped, tag = 'input window, operand 21, single buffered']
    #allocation20 [shape = 's32[1]{0}', space=sflag, size = 0x4, scoped, tag = 'scoped memory for tpu_custom_call.1']
    #allocation21 [shape = 'u8[8192]{0}', space=vmem, size = 0x2000, scoped, tag = 'output window, operand 0, single buffered']
    %28 = vsyncpa [#allocation5], 0
    %29 = vsyncpa [#allocation8], 0
    %30 = vsyncpa [#allocation11], 0
    %31 = vsyncpa [#allocation14], 0
    %32 = vsyncpa [#allocation17], 0
    %33 = vsyncpa [#allocation20], 0
    %34 = vsyncpa [#allocation6], 0
    // Predicated region
    $region2: #{tpu_custom_call.1} parent=1 // pred_check
      _
    $region3: #{tpu_custom_call.1} parent=1 // pred_check_branch
      %36 = sbr.rel (0) target = $region5
    $region4: #{tpu_custom_call.1} parent=1 // pred_region
      %38 = vsyncadd [#allocation5], 0
      %s39 = sshll.u32 %s0, 4
      %s40 = int_to_ptr.hbm [resolvable:$true] %s39
      %s41 = sshll.u32 [#allocation4], 4
      %s42 = int_to_ptr.vmem [resolvable:$true] %s41
      %47 = dma.hbm_to_vmem [thread:$0]  %s40, 256, %s42, [#allocation5], 128, 128, 8
    $region5: #{tpu_custom_call.1} parent=1 // pred_fallthru
      _
    // Predicated region
    $region6: #{tpu_custom_call.1} parent=1 // pred_check
      _
    $region7: #{tpu_custom_call.1} parent=1 // pred_check_branch
      %49 = sbr.rel (0) target = $region9
    $region8: #{tpu_custom_call.1} parent=1 // pred_region
      %51 = vsyncadd [#allocation8], 0
      %s53 = sshll.u32 %s1, 4
      %s54 = int_to_ptr.hbm [resolvable:$true] %s53
      %s55 = sshll.u32 [#allocation7], 4
      %s56 = int_to_ptr.vmem [resolvable:$true] %s55
      %58 = dma.hbm_to_vmem [thread:$0]  %s54, 32, %s56, [#allocation8]
    $region9: #{tpu_custom_call.1} parent=1 // pred_fallthru
      _
    // Predicated region
    $region10: #{tpu_custom_call.1} parent=1 // pred_check
      _
    $region11: #{tpu_custom_call.1} parent=1 // pred_check_branch
      %60 = sbr.rel (0) target = $region13
    $region12: #{tpu_custom_call.1} parent=1 // pred_region
      %62 = vsyncadd [#allocation8], 0
      %s63 = sshll.u32 %s2, 4
      %s64 = int_to_ptr.hbm [resolvable:$true] %s63
      %s65 = sshll.u32 [#allocation9], 4
      %s66 = int_to_ptr.vmem [resolvable:$true] %s65
      %71 = dma.hbm_to_vmem [thread:$0]  %s64, 256, %s66, [#allocation8], 128, 128, 8
    $region13: #{tpu_custom_call.1} parent=1 // pred_fallthru
      _
    // Predicated region
    $region14: #{tpu_custom_call.1} parent=1 // pred_check
      _
    $region15: #{tpu_custom_call.1} parent=1 // pred_check_branch
      %73 = sbr.rel (0) target = $region17
    $region16: #{tpu_custom_call.1} parent=1 // pred_region
      %75 = vsyncadd [#allocation11], 0
      %s76 = sshll.u32 %s3, 4
      %s77 = int_to_ptr.hbm [resolvable:$true] %s76
      %s78 = sshll.u32 [#allocation10], 4
      %s79 = int_to_ptr.vmem [resolvable:$true] %s78
      %84 = dma.hbm_to_vmem [thread:$0]  %s77, 512, %s79, [#allocation11], 128, 128, 8
    $region17: #{tpu_custom_call.1} parent=1 // pred_fallthru
      _
    // Predicated region
    $region18: #{tpu_custom_call.1} parent=1 // pred_check
      _
    $region19: #{tpu_custom_call.1} parent=1 // pred_check_branch
      %86 = sbr.rel (0) target = $region21
    $region20: #{tpu_custom_call.1} parent=1 // pred_region
      %88 = vsyncadd [#allocation11], 0
      %s90 = sshll.u32 %s4, 4
      %s91 = int_to_ptr.hbm [resolvable:$true] %s90
      %s92 = sshll.u32 [#allocation12], 4
      %s93 = int_to_ptr.vmem [resolvable:$true] %s92
      %95 = dma.hbm_to_vmem [thread:$0]  %s91, 16, %s93, [#allocation11]
    $region21: #{tpu_custom_call.1} parent=1 // pred_fallthru
      _
    // Predicated region
    $region22: #{tpu_custom_call.1} parent=1 // pred_check
      _
    $region23: #{tpu_custom_call.1} parent=1 // pred_check_branch
      %97 = sbr.rel (0) target = $region25
    $region24: #{tpu_custom_call.1} parent=1 // pred_region
      %99 = vsyncadd [#allocation14], 0
      %s100 = sshll.u32 %s5, 4
      %s101 = int_to_ptr.hbm [resolvable:$true] %s100
      %s102 = sshll.u32 [#allocation13], 4
      %s103 = int_to_ptr.vmem [resolvable:$true] %s102
      %108 = dma.hbm_to_vmem [thread:$0]  %s101, 512, %s103, [#allocation14], 128, 128, 8
    $region25: #{tpu_custom_call.1} parent=1 // pred_fallthru
      _
    // Predicated region
    $region26: #{tpu_custom_call.1} parent=1 // pred_check
      _
    $region27: #{tpu_custom_call.1} parent=1 // pred_check_branch
      %110 = sbr.rel (0) target = $region29
    $region28: #{tpu_custom_call.1} parent=1 // pred_region
      %112 = vsyncadd [#allocation14], 0
      %s114 = sshll.u32 %s6, 4
      %s115 = int_to_ptr.hbm [resolvable:$true] %s114
      %s116 = sshll.u32 [#allocation15], 4
      %s117 = int_to_ptr.vmem [resolvable:$true] %s116
      %119 = dma.hbm_to_vmem [thread:$0]  %s115, 16, %s117, [#allocation14]
    $region29: #{tpu_custom_call.1} parent=1 // pred_fallthru
      _
    // Predicated region
    $region30: #{tpu_custom_call.1} parent=1 // pred_check
      _
    $region31: #{tpu_custom_call.1} parent=1 // pred_check_branch
      %121 = sbr.rel (0) target = $region33
    $region32: #{tpu_custom_call.1} parent=1 // pred_region
      %123 = vsyncadd [#allocation17], 0
      %s124 = sshll.u32 %s7, 4
      %s125 = int_to_ptr.hbm [resolvable:$true] %s124
      %s126 = sshll.u32 [#allocation16], 4
      %s127 = int_to_ptr.vmem [resolvable:$true] %s126
      %132 = dma.hbm_to_vmem [thread:$0]  %s125, 512, %s127, [#allocation17], 128, 128, 8
    $region33: #{tpu_custom_call.1} parent=1 // pred_fallthru
      _
    // Predicated region
    $region34: #{tpu_custom_call.1} parent=1 // pred_check
      _
    $region35: #{tpu_custom_call.1} parent=1 // pred_check_branch
      %134 = sbr.rel (0) target = $region37
    $region36: #{tpu_custom_call.1} parent=1 // pred_region
      %136 = vsyncadd [#allocation17], 0
      %s138 = sshll.u32 %s8, 4
      %s139 = int_to_ptr.hbm [resolvable:$true] %s138
      %s140 = sshll.u32 [#allocation18], 4
      %s141 = int_to_ptr.vmem [resolvable:$true] %s140
      %143 = dma.hbm_to_vmem [thread:$0]  %s139, 16, %s141, [#allocation17]
    $region37: #{tpu_custom_call.1} parent=1 // pred_fallthru
      _
    // Predicated region
    $region38: #{tpu_custom_call.1} parent=1 // pred_check
      _
    $region39: #{tpu_custom_call.1} parent=1 // pred_check_branch
      %145 = sbr.rel (0) target = $region41
    $region40: #{tpu_custom_call.1} parent=1 // pred_region
      _
    $region41: #{tpu_custom_call.1} parent=1 // pred_fallthru
      _
    // Predicated region
    $region42: #{tpu_custom_call.1} parent=1 // pred_check
      _
    $region43: #{tpu_custom_call.1} parent=1 // pred_check_branch
      %147 = sbr.rel (0) target = $region45
    $region44: #{tpu_custom_call.1} parent=1 // pred_region
      _
    $region45: #{tpu_custom_call.1} parent=1 // pred_fallthru
      _
    // Predicated region
    $region46: #{tpu_custom_call.1} parent=1 // pred_check
      _
    $region47: #{tpu_custom_call.1} parent=1 // pred_check_branch
      %149 = sbr.rel (0) target = $region49
    $region48: #{tpu_custom_call.1} parent=1 // pred_region
      _
    $region49: #{tpu_custom_call.1} parent=1 // pred_fallthru
      _
    // Predicated region
    $region50: #{tpu_custom_call.1} parent=1 // pred_check
      _
    $region51: #{tpu_custom_call.1} parent=1 // pred_check_branch
      %151 = sbr.rel (0) target = $region53
    $region52: #{tpu_custom_call.1} parent=1 // pred_region
      _
    $region53: #{tpu_custom_call.1} parent=1 // pred_fallthru
      _
    // Predicated region
    $region54: #{tpu_custom_call.1} parent=1 // pred_check
      _
    $region55: #{tpu_custom_call.1} parent=1 // pred_check_branch
      %153 = sbr.rel (0) target = $region57
    $region56: #{tpu_custom_call.1} parent=1 // pred_region
      _
    $region57: #{tpu_custom_call.1} parent=1 // pred_fallthru
      _
    // Predicated region
    $region58: #{tpu_custom_call.1} parent=1 // pred_check
      _
    $region59: #{tpu_custom_call.1} parent=1 // pred_check_branch
      %155 = sbr.rel (0) target = $region61
    $region60: #{tpu_custom_call.1} parent=1 // pred_region
      _
    $region61: #{tpu_custom_call.1} parent=1 // pred_fallthru
      _
    // Predicated region
    $region62: #{tpu_custom_call.1} parent=1 // pred_check
      _
    $region63: #{tpu_custom_call.1} parent=1 // pred_check_branch
      %157 = sbr.rel (0) target = $region65
    $region64: #{tpu_custom_call.1} parent=1 // pred_region
      _
    $region65: #{tpu_custom_call.1} parent=1 // pred_fallthru
      _
    // Predicated region
    $region66: #{tpu_custom_call.1} parent=1 // pred_check
      _
    $region67: #{tpu_custom_call.1} parent=1 // pred_check_branch
      %159 = sbr.rel (0) target = $region69
    $region68: #{tpu_custom_call.1} parent=1 // pred_region
      _
    $region69: #{tpu_custom_call.1} parent=1 // pred_fallthru
      _
    // Predicated region
    $region70: #{tpu_custom_call.1} parent=1 // pred_check
      _
    $region71: #{tpu_custom_call.1} parent=1 // pred_check_branch
      %161 = sbr.rel (0) target = $region73
    $region72: #{tpu_custom_call.1} parent=1 // pred_region
      _
    $region73: #{tpu_custom_call.1} parent=1 // pred_fallthru
      _
    // Predicated region
    $region74: #{tpu_custom_call.1} parent=1 // pred_check
      _
    $region75: #{tpu_custom_call.1} parent=1 // pred_check_branch
      %163 = sbr.rel (0) target = $region77
    $region76: #{tpu_custom_call.1} parent=1 // pred_region
      _
    $region77: #{tpu_custom_call.1} parent=1 // pred_fallthru
      _
    // Predicated region
    $region78: #{tpu_custom_call.1} parent=1 // pred_check
      _
    $region79: #{tpu_custom_call.1} parent=1 // pred_check_branch
      %165 = sbr.rel (0) target = $region81
    $region80: #{tpu_custom_call.1} parent=1 // pred_region
      _
    $region81: #{tpu_custom_call.1} parent=1 // pred_fallthru
      _
    // Predicated region
    $region82: #{tpu_custom_call.1} parent=1 // pred_check
      _
    $region83: #{tpu_custom_call.1} parent=1 // pred_check_branch
      %167 = sbr.rel (0) target = $region85
    $region84: #{tpu_custom_call.1} parent=1 // pred_region
      _
    $region85: #{tpu_custom_call.1} parent=1 // pred_fallthru
      _
    // Predicated region
    $region86: #{tpu_custom_call.1} parent=1 // pred_check
      _
    $region87: #{tpu_custom_call.1} parent=1 // pred_check_branch
      %169 = sbr.rel (0) target = $region89
    $region88: #{tpu_custom_call.1} parent=1 // pred_region
      %171 = vsyncadd [#allocation20], 0
      %s172 = sshll.u32 %s21, 4
      %s173 = int_to_ptr.hbm [resolvable:$true] %s172
      %s174 = sshll.u32 [#allocation19], 4
      %s175 = int_to_ptr.vmem [resolvable:$true] %s174
      %180 = dma.hbm_to_vmem [thread:$0]  %s173, 512, %s175, [#allocation20], 128, 128, 8
    $region89: #{tpu_custom_call.1} parent=1 // pred_fallthru
      _
    // Predicated region
    $region90: #{tpu_custom_call.1} parent=1 // pred_check
      _
    $region91: #{tpu_custom_call.1} parent=1 // pred_check_branch
      %182 = sbr.rel (0) target = $region93
    $region92: #{tpu_custom_call.1} parent=1 // pred_region
      _
    $region93: #{tpu_custom_call.1} parent=1 // pred_fallthru
      _
    // Predicated region
    $region94: #{tpu_custom_call.1} parent=1 // pred_check
      _
    $region95: #{tpu_custom_call.1} parent=1 // pred_check_branch
      %184 = sbr.rel (0) target = $region97
    $region96: #{tpu_custom_call.1} parent=1 // pred_region
      %186 = dma.done [#allocation5], 256
    $region97: #{tpu_custom_call.1} parent=1 // pred_fallthru
      _
    // Predicated region
    $region98: #{tpu_custom_call.1} parent=1 // pred_check
      _
    $region99: #{tpu_custom_call.1} parent=1 // pred_check_branch
      %188 = sbr.rel (0) target = $region101
    $region100: #{tpu_custom_call.1} parent=1 // pred_region
      %190 = dma.done [#allocation8], 32
    $region101: #{tpu_custom_call.1} parent=1 // pred_fallthru
      _
    // Predicated region
    $region102: #{tpu_custom_call.1} parent=1 // pred_check
      _
    $region103: #{tpu_custom_call.1} parent=1 // pred_check_branch
      %192 = sbr.rel (0) target = $region105
    $region104: #{tpu_custom_call.1} parent=1 // pred_region
      %194 = dma.done [#allocation8], 256
    $region105: #{tpu_custom_call.1} parent=1 // pred_fallthru
      _
    // Predicated region
    $region106: #{tpu_custom_call.1} parent=1 // pred_check
      _
    $region107: #{tpu_custom_call.1} parent=1 // pred_check_branch
      %196 = sbr.rel (0) target = $region109
    $region108: #{tpu_custom_call.1} parent=1 // pred_region
      %198 = dma.done [#allocation11], 512
    $region109: #{tpu_custom_call.1} parent=1 // pred_fallthru
      _
    // Predicated region
    $region110: #{tpu_custom_call.1} parent=1 // pred_check
      _
    $region111: #{tpu_custom_call.1} parent=1 // pred_check_branch
      %200 = sbr.rel (0) target = $region113
    $region112: #{tpu_custom_call.1} parent=1 // pred_region
      %202 = dma.done [#allocation11], 16
    $region113: #{tpu_custom_call.1} parent=1 // pred_fallthru
      _
    // Predicated region
    $region114: #{tpu_custom_call.1} parent=1 // pred_check
      _
    $region115: #{tpu_custom_call.1} parent=1 // pred_check_branch
      %204 = sbr.rel (0) target = $region117
    $region116: #{tpu_custom_call.1} parent=1 // pred_region
      %206 = dma.done [#allocation14], 512
    $region117: #{tpu_custom_call.1} parent=1 // pred_fallthru
      _
    // Predicated region
    $region118: #{tpu_custom_call.1} parent=1 // pred_check
      _
    $region119: #{tpu_custom_call.1} parent=1 // pred_check_branch
      %208 = sbr.rel (0) target = $region121
    $region120: #{tpu_custom_call.1} parent=1 // pred_region
      %210 = dma.done [#allocation14], 16
    $region121: #{tpu_custom_call.1} parent=1 // pred_fallthru
      _
    // Predicated region
    $region122: #{tpu_custom_call.1} parent=1 // pred_check
      _
    $region123: #{tpu_custom_call.1} parent=1 // pred_check_branch
      %212 = sbr.rel (0) target = $region125
    $region124: #{tpu_custom_call.1} parent=1 // pred_region
      %214 = dma.done [#allocation17], 512
    $region125: #{tpu_custom_call.1} parent=1 // pred_fallthru
      _
    // Predicated region
    $region126: #{tpu_custom_call.1} parent=1 // pred_check
      _
    $region127: #{tpu_custom_call.1} parent=1 // pred_check_branch
      %216 = sbr.rel (0) target = $region129
    $region128: #{tpu_custom_call.1} parent=1 // pred_region
      %218 = dma.done [#allocation17], 16
    $region129: #{tpu_custom_call.1} parent=1 // pred_fallthru
      _
    // Predicated region
    $region130: #{tpu_custom_call.1} parent=1 // pred_check
      _
    $region131: #{tpu_custom_call.1} parent=1 // pred_check_branch
      %220 = sbr.rel (0) target = $region133
    $region132: #{tpu_custom_call.1} parent=1 // pred_region
      %222 = dma.done [#allocation20], 512
    $region133: #{tpu_custom_call.1} parent=1 // pred_fallthru
      _
    %v223 = vld [vmem:[#allocation7] sm:$0x3]
    %v224 = vld [vmem:[#allocation10] sm:$0xff]
    %v225 = vld [vmem:[#allocation10 + $0x8] sm:$0xff]
    %v226 = vld [vmem:[#allocation10 + $0x10] sm:$0xff]
    %v227 = vld [vmem:[#allocation10 + $0x18] sm:$0xff]
    %v228 = vld [vmem:[#allocation12] sm:$0x1]
    %v230 = vperm.slane %v228, 0
    %vm232 = vcmask 261120
    %v234 = vsel %vm232, %v223, 0
    %236 = vmatpush.msra.mxu0 0.0
    %237 = vmatpush.msra.mxu0 0.0
    %238 = vmatpush.msra.mxu0 0.0
    %239 = vmatpush.msra.mxu0 0.0
    %240 = vmatpush.msra.mxu0 0.0
    %241 = vmatpush.msra.mxu0 0.0
    %242 = vmatpush.msra.mxu0 0.0
    %243 = vmatpush.msra.mxu0 0.0
    %244 = vmatpush.msra.mxu0 0.0
    %245 = vmatpush.msra.mxu0 0.0
    %246 = vmatpush.msra.mxu0 0.0
    %247 = vmatpush.msra.mxu0 0.0
    %248 = vmatpush.msra.mxu0 %v227
    %249 = vmatpush.msra.mxu0 %v226
    %250 = vmatpush.msra.mxu0 %v225
    %251 = vmatpush.msra.mxu0 %v224
    %252 = vmatmul.f32.gmra.mxu0 %v234
    %v253 = vpop.f32.mrf.mxu0
    %v254 = vadd.f32 %v230, %v253
    %255 = vdwg.mxu0
    %v256 = vsub.f32 0.0, %v254
    %v257 = vmul.f32 %v256, 1.442695
    %v258 = vpow.pop %v257
    %v259 = vadd.f32 %v258, 1.0
    %v260 = vrcp.pop %v259
    %v261 = vmul.f32 %v259, %v260
    %v262 = vsub.f32 1.0, %v261
    %v263 = vmul.f32 %v260, %v262
    %v264 = vadd.f32 %v260, %v263
    %vm265 = vweird.f32 %v259
    %vm266 = vweird.f32 %v260
    %vm267 = vmor %vm265, %vm266
    %v268 = vsel %vm267, %v260, %v264
    %v269 = vand.u32 2147483647, %v259
    %vm270 = vcmp.eq.f32.partialorder %v269, 8.507059e+37
    %v271 = vand.u32 %v259, 2147483648
    %v272 = vor.u32 1.1754944e-38, %v271
    %v273 = vsel %vm270, %v272, %v268
    %v274 = vmul.f32 1.0, %v273
    %v275 = vmul.f32 %v254, %v274
    %v276 = vld [vmem:[#allocation13] sm:$0xff]
    %v277 = vld [vmem:[#allocation13 + $0x8] sm:$0xff]
    %v278 = vld [vmem:[#allocation13 + $0x10] sm:$0xff]
    %v279 = vld [vmem:[#allocation13 + $0x18] sm:$0xff]
    %v280 = vld [vmem:[#allocation15] sm:$0x1]
    %v282 = vperm.slane %v280, 0
    %v285 = vsel %vm232, %v275, 0
    %287 = vmatpush.msra.mxu0 0.0
    %288 = vmatpush.msra.mxu0 0.0
    %289 = vmatpush.msra.mxu0 0.0
    %290 = vmatpush.msra.mxu0 0.0
    %291 = vmatpush.msra.mxu0 0.0
    %292 = vmatpush.msra.mxu0 0.0
    %293 = vmatpush.msra.mxu0 0.0
    %294 = vmatpush.msra.mxu0 0.0
    %295 = vmatpush.msra.mxu0 0.0
    %296 = vmatpush.msra.mxu0 0.0
    %297 = vmatpush.msra.mxu0 0.0
    %298 = vmatpush.msra.mxu0 0.0
    %299 = vmatpush.msra.mxu0 %v279
    %300 = vmatpush.msra.mxu0 %v278
    %301 = vmatpush.msra.mxu0 %v277
    %302 = vmatpush.msra.mxu0 %v276
    %303 = vmatmul.f32.gmra.mxu0 %v285
    %v304 = vpop.f32.mrf.mxu0
    %v305 = vadd.f32 %v282, %v304
    %306 = vdwg.mxu0
    %v307 = vld [vmem:[#allocation4] sm:$0xff]
    %v308 = vld [vmem:[#allocation4 + $0x8] sm:$0xff]
    %v309 = vld [vmem:[#allocation16] sm:$0xff]
    %v310 = vld [vmem:[#allocation16 + $0x8] sm:$0xff]
    %v311 = vld [vmem:[#allocation16 + $0x10] sm:$0xff]
    %v312 = vld [vmem:[#allocation16 + $0x18] sm:$0xff]
    %v313 = vld [vmem:[#allocation18] sm:$0x1]
    %v315 = vperm.slane %v313, 0
    %v318 = vsel %vm232, %v307, 0
    %v321 = vsel %vm232, %v308, 0
    %323 = vmatpush.msra.mxu0 0.0
    %324 = vmatpush.msra.mxu0 0.0
    %325 = vmatpush.msra.mxu0 0.0
    %326 = vmatpush.msra.mxu0 0.0
    %327 = vmatpush.msra.mxu0 0.0
    %328 = vmatpush.msra.mxu0 0.0
    %329 = vmatpush.msra.mxu0 0.0
    %330 = vmatpush.msra.mxu0 0.0
    %331 = vmatpush.msra.mxu0 0.0
    %332 = vmatpush.msra.mxu0 0.0
    %333 = vmatpush.msra.mxu0 0.0
    %334 = vmatpush.msra.mxu0 0.0
    %335 = vmatpush.msra.mxu0 %v312
    %336 = vmatpush.msra.mxu0 %v311
    %337 = vmatpush.msra.mxu0 %v310
    %338 = vmatpush.msra.mxu0 %v309
    %339 = vmatmul.f32.gmra.mxu0 %v318
    %v340 = vpop.f32.mrf.mxu0
    %v341 = vadd.f32 %v315, %v340
    %342 = vmatmul.f32.gmra.mxu0 %v321
    %v343 = vpop.f32.mrf.mxu0
    %v344 = vadd.f32 %v315, %v343
    %345 = vdwg.mxu0
    %v347 = vrot.slane %v305, 1
    %vm349 = vcmask 253952
    %350 = vst.msk [vmem:[#allocation2] sm:$0x1] %vm349, %v305
    %351 = vst.msk [vmem:[#allocation2 + $0x10] sm:$0x1] %vm349, %v347
    %352 = vst.msk [vmem:[#allocation2 + $0x1] sm:$0xff] %vm232, %v341
    %353 = vst.msk [vmem:[#allocation2 + $0x11] sm:$0xff] %vm232, %v344
    %v354 = vld [vmem:[#allocation2] sm:$0xff]
    %v355 = vld [vmem:[#allocation2 + $0x8] sm:$0x1]
    %v356 = vld [vmem:[#allocation2 + $0x10] sm:$0xff]
    %v357 = vld [vmem:[#allocation2 + $0x18] sm:$0x1]
    %v358 = vld [vmem:[#allocation9] sm:$0xff]
    %v359 = vld [vmem:[#allocation9 + $0x8] sm:$0x1]
    %v360 = vadd.f32 %v354, %v358
    %v361 = vadd.f32 %v355, %v359
    %v362 = vadd.f32 %v356, %v358
    %v363 = vadd.f32 %v357, %v359
    %v368 = vrot.slane %v360, 1
    %v369 = vrot.slane %v360, 2
    %v370 = vrot.slane %v360, 3
    %v371 = vrot.slane %v360, 4
    %v372 = vrot.slane %v360, 5
    %v373 = vrot.slane %v360, 6
    %v374 = vrot.slane %v360, 7
    %v375 = vrot.slane %v362, 1
    %v376 = vrot.slane %v362, 2
    %v377 = vrot.slane %v362, 3
    %v378 = vrot.slane %v362, 4
    %v379 = vrot.slane %v362, 5
    %v380 = vrot.slane %v362, 6
    %v381 = vrot.slane %v362, 7
    %v396 = vld [vmem:[%s9] sm:$0xff]
    %v397 = vld [vmem:[%s9 + $0x8] sm:$0xff]
    %v398 = vld [vmem:[%s9 + $0x10] sm:$0xff]
    %v399 = vld [vmem:[%s9 + $0x18] sm:$0xff]
    %v400 = vld [vmem:[%s10] sm:$0x1]
    %v401 = vld [vmem:[%s11] sm:$0xff]
    %v402 = vld [vmem:[%s11 + $0x8] sm:$0xff]
    %v403 = vld [vmem:[%s11 + $0x10] sm:$0xff]
    %v404 = vld [vmem:[%s11 + $0x18] sm:$0xff]
    %v405 = vld [vmem:[%s12] sm:$0x1]
    %v406 = vld [vmem:[%s13] sm:$0x1]
    %v407 = vld [vmem:[%s14] sm:$0x1]
    %v408 = vld [vmem:[%s15] sm:$0xff]
    %v409 = vld [vmem:[%s15 + $0x8] sm:$0xff]
    %v410 = vld [vmem:[%s15 + $0x10] sm:$0xff]
    %v411 = vld [vmem:[%s15 + $0x18] sm:$0xff]
    %v412 = vld [vmem:[%s16] sm:$0x1]
    %v413 = vld [vmem:[%s17] sm:$0xff]
    %v414 = vld [vmem:[%s17 + $0x8] sm:$0xff]
    %v415 = vld [vmem:[%s17 + $0x10] sm:$0xff]
    %v416 = vld [vmem:[%s17 + $0x18] sm:$0xff]
    %v417 = vld [vmem:[%s17 + $0x20] sm:$0xff]
    %v418 = vld [vmem:[%s17 + $0x28] sm:$0xff]
    %v419 = vld [vmem:[%s17 + $0x30] sm:$0xff]
    %v420 = vld [vmem:[%s17 + $0x38] sm:$0xff]
    %v421 = vld [vmem:[%s18] sm:$0x1]
    %v422 = vld [vmem:[%s19] sm:$0x1]
    %v423 = vld [vmem:[%s20] sm:$0x1]
    %v425 = vperm.slane %v400, 0
    %427 = vst [vmem:[#allocation1] ss:$9 sm:$0xff] %v360
    %s428 = scalar_lea.vmem [#allocation1], 1
    %429 = vst [vmem:[%s428] ss:$9 sm:$0xff] %v368
    %s430 = scalar_lea.vmem [#allocation1], 2
    %431 = vst [vmem:[%s430] ss:$9 sm:$0xff] %v369
    %s432 = scalar_lea.vmem [#allocation1], 3
    %433 = vst [vmem:[%s432] ss:$9 sm:$0xff] %v370
    %s434 = scalar_lea.vmem [#allocation1], 4
    %435 = vst [vmem:[%s434] ss:$9 sm:$0xff] %v371
    %s436 = scalar_lea.vmem [#allocation1], 5
    %437 = vst [vmem:[%s436] ss:$9 sm:$0xff] %v372
    %s438 = scalar_lea.vmem [#allocation1], 6
    %439 = vst [vmem:[%s438] ss:$9 sm:$0xff] %v373
    %s440 = scalar_lea.vmem [#allocation1], 7
    %441 = vst [vmem:[%s440] ss:$9 sm:$0xff] %v374
    %v442 = vld [vmem:[#allocation1] sm:$0xff]
    %443 = vst [vmem:[#allocation1] ss:$9 sm:$0xff] %v361
    %444 = vst [vmem:[%s428] ss:$9 sm:$0xff] %v362
    %445 = vst [vmem:[%s430] ss:$9 sm:$0xff] %v375
    %446 = vst [vmem:[%s432] ss:$9 sm:$0xff] %v376
    %447 = vst [vmem:[%s434] ss:$9 sm:$0xff] %v377
    %448 = vst [vmem:[%s436] ss:$9 sm:$0xff] %v378
    %449 = vst [vmem:[%s438] ss:$9 sm:$0xff] %v379
    %450 = vst [vmem:[%s440] ss:$9 sm:$0xff] %v380
    %v451 = vld [vmem:[#allocation1] sm:$0xff]
    %452 = vst [vmem:[#allocation1] ss:$9 sm:$0xff] %v381
    %453 = vst [vmem:[%s428] ss:$9 sm:$0xff] %v363
    %v454 = vld [vmem:[#allocation1] sm:$0xff]
    %v455 = vsel %vm232, %v442, 0
    %v457 = vsel %vm232, %v451, 0
    %v459 = vsel %vm232, %v454, 0
    %461 = vmatpush.msra.mxu0 0.0
    %462 = vmatpush.msra.mxu0 0.0
    %463 = vmatpush.msra.mxu0 0.0
    %464 = vmatpush.msra.mxu0 0.0
    %465 = vmatpush.msra.mxu0 0.0
    %466 = vmatpush.msra.mxu0 0.0
    %467 = vmatpush.msra.mxu0 0.0
    %468 = vmatpush.msra.mxu0 0.0
    %469 = vmatpush.msra.mxu0 0.0
    %470 = vmatpush.msra.mxu0 0.0
    %471 = vmatpush.msra.mxu0 0.0
    %472 = vmatpush.msra.mxu0 0.0
    %473 = vmatpush.msra.mxu0 %v399
    %474 = vmatpush.msra.mxu0 %v398
    %475 = vmatpush.msra.mxu0 %v397
    %476 = vmatpush.msra.mxu0 %v396
    %477 = vmatmul.f32.gmra.mxu0 %v455
    %v478 = vpop.f32.mrf.mxu0
    %v479 = vadd.f32 %v425, %v478
    %480 = vmatmul.f32.gmra.mxu0 %v457
    %v481 = vpop.f32.mrf.mxu0
    %v482 = vadd.f32 %v425, %v481
    %483 = vmatmul.f32.gmra.mxu0 %v459
    %v484 = vpop.f32.mrf.mxu0
    %v485 = vadd.f32 %v425, %v484
    %486 = vdwg.mxu0
    %v490 = vrot.slane %v479, 1
    %v491 = vrot.slane %v479, 2
    %v492 = vrot.slane %v479, 3
    %v493 = vrot.slane %v479, 4
    %v494 = vrot.slane %v479, 5
    %v495 = vrot.slane %v479, 6
    %v496 = vrot.slane %v479, 7
    %v497 = vrot.slane %v482, 1
    %v498 = vrot.slane %v482, 2
    %v499 = vrot.slane %v482, 3
    %v500 = vrot.slane %v482, 4
    %v501 = vrot.slane %v482, 5
    %v502 = vrot.slane %v482, 6
    %v503 = vrot.slane %v482, 7
    %v504 = vrot.slane %v485, 1
    %v520 = vmul.f32 %v479, 0.35355338
    %v521 = vmul.f32 %v490, 0.35355338
    %v522 = vmul.f32 %v491, 0.35355338
    %v523 = vmul.f32 %v492, 0.35355338
    %v524 = vmul.f32 %v493, 0.35355338
    %v525 = vmul.f32 %v494, 0.35355338
    %v526 = vmul.f32 %v495, 0.35355338
    %v527 = vmul.f32 %v496, 0.35355338
    %v528 = vmul.f32 %v482, 0.35355338
    %v529 = vmul.f32 %v497, 0.35355338
    %v530 = vmul.f32 %v498, 0.35355338
    %v531 = vmul.f32 %v499, 0.35355338
    %v532 = vmul.f32 %v500, 0.35355338
    %v533 = vmul.f32 %v501, 0.35355338
    %v534 = vmul.f32 %v502, 0.35355338
    %v535 = vmul.f32 %v503, 0.35355338
    %v536 = vmul.f32 %v485, 0.35355338
    %v537 = vmul.f32 %v504, 0.35355338
    %547 = vst [vmem:[#allocation1] ss:$9 sm:$0xff] %v520
    %s548 = scalar_lea.vmem [#allocation1], 1
    %549 = vst [vmem:[%s548] ss:$9 sm:$0xff] %v521
    %s550 = scalar_lea.vmem [#allocation1], 2
    %551 = vst [vmem:[%s550] ss:$9 sm:$0xff] %v522
    %s552 = scalar_lea.vmem [#allocation1], 3
    %553 = vst [vmem:[%s552] ss:$9 sm:$0xff] %v523
    %s554 = scalar_lea.vmem [#allocation1], 4
    %555 = vst [vmem:[%s554] ss:$9 sm:$0xff] %v524
    %s556 = scalar_lea.vmem [#allocation1], 5
    %557 = vst [vmem:[%s556] ss:$9 sm:$0xff] %v525
    %s558 = scalar_lea.vmem [#allocation1], 6
    %559 = vst [vmem:[%s558] ss:$9 sm:$0xff] %v526
    %s560 = scalar_lea.vmem [#allocation1], 7
    %561 = vst [vmem:[%s560] ss:$9 sm:$0xff] %v527
    %v562 = vld [vmem:[#allocation1] sm:$0xff]
    %563 = vst [vmem:[#allocation1] ss:$9 sm:$0xff] %v528
    %v564 = vld [vmem:[#allocation1] sm:$0xff]
    %565 = vst [vmem:[#allocation1] ss:$9 sm:$0xff] %v479
    %s566 = scalar_lea.vmem [#allocation1], 1
    %567 = vst [vmem:[%s566] ss:$9 sm:$0xff] %v490
    %s568 = scalar_lea.vmem [#allocation1], 2
    %569 = vst [vmem:[%s568] ss:$9 sm:$0xff] %v491
    %s570 = scalar_lea.vmem [#allocation1], 3
    %571 = vst [vmem:[%s570] ss:$9 sm:$0xff] %v492
    %s572 = scalar_lea.vmem [#allocation1], 4
    %573 = vst [vmem:[%s572] ss:$9 sm:$0xff] %v493
    %s574 = scalar_lea.vmem [#allocation1], 5
    %575 = vst [vmem:[%s574] ss:$9 sm:$0xff] %v494
    %s576 = scalar_lea.vmem [#allocation1], 6
    %577 = vst [vmem:[%s576] ss:$9 sm:$0xff] %v495
    %s578 = scalar_lea.vmem [#allocation1], 7
    %579 = vst [vmem:[%s578] ss:$9 sm:$0xff] %v496
    %v580 = vld [vmem:[#allocation1] sm:$0xff]
    %581 = vst [vmem:[#allocation1] ss:$9 sm:$0xff] %v482
    %v582 = vld [vmem:[#allocation1] sm:$0xff]
    %583 = vrot.lane.b32.xlu0 %v580, 96
    %v584 = vpop.permute.xlu0 %583
    %585 = vrot.lane.b32.xlu0 %v582, 96
    %v586 = vpop.permute.xlu0 %585
    %vm587 = vcmask 64512
    %v588 = vsel %vm587, %v562, 0
    %v590 = vsel %vm587, %v564, 0
    %v592 = vsel %vm587, %v584, 0
    %v594 = vsel %vm587, %v586, 0
    %596 = vmatpush.xpose.msra.mxu0 0.0
    %597 = vmatpush.xpose.msra.mxu0 0.0
    %598 = vmatpush.xpose.msra.mxu0 0.0
    %599 = vmatpush.xpose.msra.mxu0 0.0
    %600 = vmatpush.xpose.msra.mxu0 0.0
    %601 = vmatpush.xpose.msra.mxu0 0.0
    %602 = vmatpush.xpose.msra.mxu0 0.0
    %603 = vmatpush.xpose.msra.mxu0 0.0
    %604 = vmatpush.xpose.msra.mxu0 0.0
    %605 = vmatpush.xpose.msra.mxu0 0.0
    %606 = vmatpush.xpose.msra.mxu0 0.0
    %607 = vmatpush.xpose.msra.mxu0 0.0
    %608 = vmatpush.xpose.msra.mxu0 0.0
    %609 = vmatpush.xpose.msra.mxu0 0.0
    %610 = vmatpush.xpose.msra.mxu0 %v594
    %611 = vmatpush.xpose.msra.mxu0 %v592
    %612 = vmatmul.f32.gmra.mxu0 %v588
    %v613 = vpop.f32.mrf.mxu0
    %v614 = vadd.f32 0.0, %v613
    %615 = vmatmul.f32.gmra.mxu0 %v590
    %v616 = vpop.f32.mrf.mxu0
    %v617 = vadd.f32 0.0, %v616
    %618 = vdwg.mxu0
    %628 = vst [vmem:[#allocation1] ss:$9 sm:$0xff] %v529
    %s629 = scalar_lea.vmem [#allocation1], 1
    %630 = vst [vmem:[%s629] ss:$9 sm:$0xff] %v530
    %s631 = scalar_lea.vmem [#allocation1], 2
    %632 = vst [vmem:[%s631] ss:$9 sm:$0xff] %v531
    %s633 = scalar_lea.vmem [#allocation1], 3
    %634 = vst [vmem:[%s633] ss:$9 sm:$0xff] %v532
    %s635 = scalar_lea.vmem [#allocation1], 4
    %636 = vst [vmem:[%s635] ss:$9 sm:$0xff] %v533
    %s637 = scalar_lea.vmem [#allocation1], 5
    %638 = vst [vmem:[%s637] ss:$9 sm:$0xff] %v534
    %s639 = scalar_lea.vmem [#allocation1], 6
    %640 = vst [vmem:[%s639] ss:$9 sm:$0xff] %v535
    %s641 = scalar_lea.vmem [#allocation1], 7
    %642 = vst [vmem:[%s641] ss:$9 sm:$0xff] %v536
    %v643 = vld [vmem:[#allocation1] sm:$0xff]
    %644 = vst [vmem:[#allocation1] ss:$9 sm:$0xff] %v537
    %v645 = vld [vmem:[#allocation1] sm:$0xff]
    %646 = vst [vmem:[#allocation1] ss:$9 sm:$0xff] %v497
    %s647 = scalar_lea.vmem [#allocation1], 1
    %648 = vst [vmem:[%s647] ss:$9 sm:$0xff] %v498
    %s649 = scalar_lea.vmem [#allocation1], 2
    %650 = vst [vmem:[%s649] ss:$9 sm:$0xff] %v499
    %s651 = scalar_lea.vmem [#allocation1], 3
    %652 = vst [vmem:[%s651] ss:$9 sm:$0xff] %v500
    %s653 = scalar_lea.vmem [#allocation1], 4
    %654 = vst [vmem:[%s653] ss:$9 sm:$0xff] %v501
    %s655 = scalar_lea.vmem [#allocation1], 5
    %656 = vst [vmem:[%s655] ss:$9 sm:$0xff] %v502
    %s657 = scalar_lea.vmem [#allocation1], 6
    %658 = vst [vmem:[%s657] ss:$9 sm:$0xff] %v503
    %s659 = scalar_lea.vmem [#allocation1], 7
    %660 = vst [vmem:[%s659] ss:$9 sm:$0xff] %v485
    %v661 = vld [vmem:[#allocation1] sm:$0xff]
    %662 = vst [vmem:[#allocation1] ss:$9 sm:$0xff] %v504
    %v663 = vld [vmem:[#allocation1] sm:$0xff]
    %664 = vrot.lane.b32.xlu0 %v661, 96
    %v665 = vpop.permute.xlu0 %664
    %666 = vrot.lane.b32.xlu0 %v663, 96
    %v667 = vpop.permute.xlu0 %666
    %v668 = vsel %vm587, %v643, 0
    %v670 = vsel %vm587, %v645, 0
    %v672 = vsel %vm587, %v665, 0
    %v674 = vsel %vm587, %v667, 0
    %676 = vmatpush.xpose.msra.mxu0 0.0
    %677 = vmatpush.xpose.msra.mxu0 0.0
    %678 = vmatpush.xpose.msra.mxu0 0.0
    %679 = vmatpush.xpose.msra.mxu0 0.0
    %680 = vmatpush.xpose.msra.mxu0 0.0
    %681 = vmatpush.xpose.msra.mxu0 0.0
    %682 = vmatpush.xpose.msra.mxu0 0.0
    %683 = vmatpush.xpose.msra.mxu0 0.0
    %684 = vmatpush.xpose.msra.mxu0 0.0
    %685 = vmatpush.xpose.msra.mxu0 0.0
    %686 = vmatpush.xpose.msra.mxu0 0.0
    %687 = vmatpush.xpose.msra.mxu0 0.0
    %688 = vmatpush.xpose.msra.mxu0 0.0
    %689 = vmatpush.xpose.msra.mxu0 0.0
    %690 = vmatpush.xpose.msra.mxu0 %v674
    %691 = vmatpush.xpose.msra.mxu0 %v672
    %692 = vmatmul.f32.gmra.mxu0 %v668
    %v693 = vpop.f32.mrf.mxu0
    %v694 = vadd.f32 0.0, %v693
    %695 = vmatmul.f32.gmra.mxu0 %v670
    %v696 = vpop.f32.mrf.mxu0
    %v697 = vadd.f32 0.0, %v696
    %698 = vdwg.mxu0
    %vm699 = vcmask 72704
    %v700 = vsel %vm699, %v614, -inf
    %701 = vmax.xlane.f32.xlu0 %v700
    %v702 = vpop.xlane.xlu0 %701
    %vm703 = vcmask 65536
    %v704 = vsel %vm703, %v617, -inf
    %705 = vmax.xlane.f32.xlu0 %v704
    %v706 = vpop.xlane.xlu0 %705
    %v707 = vsel %vm699, %v694, -inf
    %708 = vmax.xlane.f32.xlu0 %v707
    %v709 = vpop.xlane.xlu0 %708
    %v710 = vsel %vm703, %v697, -inf
    %711 = vmax.xlane.f32.xlu0 %v710
    %v712 = vpop.xlane.xlu0 %711
    %v713 = vsub.f32 %v614, %v702
    %v714 = vsub.f32 %v617, %v706
    %v715 = vsub.f32 %v694, %v709
    %v716 = vsub.f32 %v697, %v712
    %v717 = vmul.f32 %v713, 1.442695
    %v718 = vpow.pop %v717
    %v719 = vmul.f32 %v714, 1.442695
    %v720 = vpow.pop %v719
    %v721 = vmul.f32 %v715, 1.442695
    %v722 = vpow.pop %v721
    %v723 = vmul.f32 %v716, 1.442695
    %v724 = vpow.pop %v723
    %v725 = vsel %vm699, %v718, 0.0
    %726 = vadd.xlane.f32.xlu0 %v725
    %v727 = vpop.xlane.xlu0 %726
    %v728 = vsel %vm703, %v720, 0.0
    %729 = vadd.xlane.f32.xlu0 %v728
    %v730 = vpop.xlane.xlu0 %729
    %v731 = vsel %vm699, %v722, 0.0
    %732 = vadd.xlane.f32.xlu0 %v731
    %v733 = vpop.xlane.xlu0 %732
    %v734 = vsel %vm703, %v724, 0.0
    %735 = vadd.xlane.f32.xlu0 %v734
    %v736 = vpop.xlane.xlu0 %735
    %v737 = vrcp.pop %v727
    %v738 = vrcp.pop %v730
    %v739 = vrcp.pop %v733
    %v740 = vrcp.pop %v736
    %v741 = vmul.f32 %v718, %v737
    %v742 = vmul.f32 %v720, %v738
    %v743 = vmul.f32 %v722, %v739
    %v744 = vmul.f32 %v724, %v740
    %745 = vst [vmem:[#allocation1] ss:$9 sm:$0xff] %v479
    %s746 = scalar_lea.vmem [#allocation1], 1
    %747 = vst [vmem:[%s746] ss:$9 sm:$0xff] %v490
    %s748 = scalar_lea.vmem [#allocation1], 2
    %749 = vst [vmem:[%s748] ss:$9 sm:$0xff] %v491
    %s750 = scalar_lea.vmem [#allocation1], 3
    %751 = vst [vmem:[%s750] ss:$9 sm:$0xff] %v492
    %s752 = scalar_lea.vmem [#allocation1], 4
    %753 = vst [vmem:[%s752] ss:$9 sm:$0xff] %v493
    %s754 = scalar_lea.vmem [#allocation1], 5
    %755 = vst [vmem:[%s754] ss:$9 sm:$0xff] %v494
    %s756 = scalar_lea.vmem [#allocation1], 6
    %757 = vst [vmem:[%s756] ss:$9 sm:$0xff] %v495
    %s758 = scalar_lea.vmem [#allocation1], 7
    %759 = vst [vmem:[%s758] ss:$9 sm:$0xff] %v496
    %v760 = vld [vmem:[#allocation1] sm:$0xff]
    %761 = vst [vmem:[#allocation1] ss:$9 sm:$0xff] %v482
    %v762 = vld [vmem:[#allocation1] sm:$0xff]
    %763 = vrot.lane.b32.xlu0 %v760, 64
    %v764 = vpop.permute.xlu0 %763
    %765 = vrot.lane.b32.xlu0 %v762, 64
    %v766 = vpop.permute.xlu0 %765
    %v769 = vsel %vm699, %v741, 0
    %v772 = vsel %vm699, %v742, 0
    %vm774 = vcmask 1040384
    %v775 = vsel %vm774, %v766, 0
    %777 = vmatpush.msra.mxu0 0.0
    %778 = vmatpush.msra.mxu0 0.0
    %779 = vmatpush.msra.mxu0 0.0
    %780 = vmatpush.msra.mxu0 0.0
    %781 = vmatpush.msra.mxu0 0.0
    %782 = vmatpush.msra.mxu0 0.0
    %783 = vmatpush.msra.mxu0 0.0
    %784 = vmatpush.msra.mxu0 0.0
    %785 = vmatpush.msra.mxu0 0.0
    %786 = vmatpush.msra.mxu0 0.0
    %787 = vmatpush.msra.mxu0 0.0
    %788 = vmatpush.msra.mxu0 0.0
    %789 = vmatpush.msra.mxu0 0.0
    %790 = vmatpush.msra.mxu0 0.0
    %791 = vmatpush.msra.mxu0 %v775
    %792 = vmatpush.msra.mxu0 %v764
    %793 = vmatmul.f32.gmra.mxu0 %v769
    %v794 = vpop.f32.mrf.mxu0
    %v795 = vadd.f32 0.0, %v794
    %796 = vmatmul.f32.gmra.mxu0 %v772
    %v797 = vpop.f32.mrf.mxu0
    %v798 = vadd.f32 0.0, %v797
    %799 = vdwg.mxu0
    %800 = vst [vmem:[#allocation1] ss:$9 sm:$0xff] %v497
    %s801 = scalar_lea.vmem [#allocation1], 1
    %802 = vst [vmem:[%s801] ss:$9 sm:$0xff] %v498
    %s803 = scalar_lea.vmem [#allocation1], 2
    %804 = vst [vmem:[%s803] ss:$9 sm:$0xff] %v499
    %s805 = scalar_lea.vmem [#allocation1], 3
    %806 = vst [vmem:[%s805] ss:$9 sm:$0xff] %v500
    %s807 = scalar_lea.vmem [#allocation1], 4
    %808 = vst [vmem:[%s807] ss:$9 sm:$0xff] %v501
    %s809 = scalar_lea.vmem [#allocation1], 5
    %810 = vst [vmem:[%s809] ss:$9 sm:$0xff] %v502
    %s811 = scalar_lea.vmem [#allocation1], 6
    %812 = vst [vmem:[%s811] ss:$9 sm:$0xff] %v503
    %s813 = scalar_lea.vmem [#allocation1], 7
    %814 = vst [vmem:[%s813] ss:$9 sm:$0xff] %v485
    %v815 = vld [vmem:[#allocation1] sm:$0xff]
    %816 = vst [vmem:[#allocation1] ss:$9 sm:$0xff] %v504
    %v817 = vld [vmem:[#allocation1] sm:$0xff]
    %818 = vrot.lane.b32.xlu0 %v815, 64
    %v819 = vpop.permute.xlu0 %818
    %820 = vrot.lane.b32.xlu0 %v817, 64
    %v821 = vpop.permute.xlu0 %820
    %v824 = vsel %vm699, %v743, 0
    %v827 = vsel %vm699, %v744, 0
    %v829 = vsel %vm774, %v821, 0
    %831 = vmatpush.msra.mxu0 0.0
    %832 = vmatpush.msra.mxu0 0.0
    %833 = vmatpush.msra.mxu0 0.0
    %834 = vmatpush.msra.mxu0 0.0
    %835 = vmatpush.msra.mxu0 0.0
    %836 = vmatpush.msra.mxu0 0.0
    %837 = vmatpush.msra.mxu0 0.0
    %838 = vmatpush.msra.mxu0 0.0
    %839 = vmatpush.msra.mxu0 0.0
    %840 = vmatpush.msra.mxu0 0.0
    %841 = vmatpush.msra.mxu0 0.0
    %842 = vmatpush.msra.mxu0 0.0
    %843 = vmatpush.msra.mxu0 0.0
    %844 = vmatpush.msra.mxu0 0.0
    %845 = vmatpush.msra.mxu0 %v829
    %846 = vmatpush.msra.mxu0 %v819
    %847 = vmatmul.f32.gmra.mxu0 %v824
    %v848 = vpop.f32.mrf.mxu0
    %v849 = vadd.f32 0.0, %v848
    %850 = vmatmul.f32.gmra.mxu0 %v827
    %v851 = vpop.f32.mrf.mxu0
    %v852 = vadd.f32 0.0, %v851
    %853 = vdwg.mxu0
    %854 = vst.msk [vmem:[#allocation3] sm:$0xff] %vm587, %v795
    %vm855 = vcmask 57344
    %856 = vst.msk [vmem:[#allocation3 + $0x8] sm:$0x1] %vm855, %v798
    %857 = vst.msk [vmem:[#allocation3 + $0x10] sm:$0xff] %vm587, %v849
    %858 = vst.msk [vmem:[#allocation3 + $0x18] sm:$0x1] %vm855, %v852
    %859 = vst [vmem:[#allocation1] ss:$9 sm:$0xff] %v520
    %s860 = scalar_lea.vmem [#allocation1], 1
    %861 = vst [vmem:[%s860] ss:$9 sm:$0xff] %v521
    %s862 = scalar_lea.vmem [#allocation1], 2
    %863 = vst [vmem:[%s862] ss:$9 sm:$0xff] %v522
    %s864 = scalar_lea.vmem [#allocation1], 3
    %865 = vst [vmem:[%s864] ss:$9 sm:$0xff] %v523
    %s866 = scalar_lea.vmem [#allocation1], 4
    %867 = vst [vmem:[%s866] ss:$9 sm:$0xff] %v524
    %s868 = scalar_lea.vmem [#allocation1], 5
    %869 = vst [vmem:[%s868] ss:$9 sm:$0xff] %v525
    %s870 = scalar_lea.vmem [#allocation1], 6
    %871 = vst [vmem:[%s870] ss:$9 sm:$0xff] %v526
    %s872 = scalar_lea.vmem [#allocation1], 7
    %873 = vst [vmem:[%s872] ss:$9 sm:$0xff] %v527
    %v874 = vld [vmem:[#allocation1] sm:$0xff]
    %875 = vst [vmem:[#allocation1] ss:$9 sm:$0xff] %v528
    %v876 = vld [vmem:[#allocation1] sm:$0xff]
    %877 = vrot.lane.b32.xlu0 %v874, 120
    %v878 = vpop.permute.xlu0 %877
    %879 = vrot.lane.b32.xlu0 %v876, 120
    %v880 = vpop.permute.xlu0 %879
    %881 = vst [vmem:[#allocation1] ss:$9 sm:$0xff] %v479
    %s882 = scalar_lea.vmem [#allocation1], 1
    %883 = vst [vmem:[%s882] ss:$9 sm:$0xff] %v490
    %s884 = scalar_lea.vmem [#allocation1], 2
    %885 = vst [vmem:[%s884] ss:$9 sm:$0xff] %v491
    %s886 = scalar_lea.vmem [#allocation1], 3
    %887 = vst [vmem:[%s886] ss:$9 sm:$0xff] %v492
    %s888 = scalar_lea.vmem [#allocation1], 4
    %889 = vst [vmem:[%s888] ss:$9 sm:$0xff] %v493
    %s890 = scalar_lea.vmem [#allocation1], 5
    %891 = vst [vmem:[%s890] ss:$9 sm:$0xff] %v494
    %s892 = scalar_lea.vmem [#allocation1], 6
    %893 = vst [vmem:[%s892] ss:$9 sm:$0xff] %v495
    %s894 = scalar_lea.vmem [#allocation1], 7
    %895 = vst [vmem:[%s894] ss:$9 sm:$0xff] %v496
    %v896 = vld [vmem:[#allocation1] sm:$0xff]
    %897 = vst [vmem:[#allocation1] ss:$9 sm:$0xff] %v482
    %v898 = vld [vmem:[#allocation1] sm:$0xff]
    %899 = vrot.lane.b32.xlu0 %v896, 88
    %v900 = vpop.permute.xlu0 %899
    %901 = vrot.lane.b32.xlu0 %v898, 88
    %v902 = vpop.permute.xlu0 %901
    %v903 = vsel %vm587, %v878, 0
    %v905 = vsel %vm587, %v880, 0
    %v907 = vsel %vm587, %v900, 0
    %v909 = vsel %vm587, %v902, 0
    %911 = vmatpush.xpose.msra.mxu0 0.0
    %912 = vmatpush.xpose.msra.mxu0 0.0
    %913 = vmatpush.xpose.msra.mxu0 0.0
    %914 = vmatpush.xpose.msra.mxu0 0.0
    %915 = vmatpush.xpose.msra.mxu0 0.0
    %916 = vmatpush.xpose.msra.mxu0 0.0
    %917 = vmatpush.xpose.msra.mxu0 0.0
    %918 = vmatpush.xpose.msra.mxu0 0.0
    %919 = vmatpush.xpose.msra.mxu0 0.0
    %920 = vmatpush.xpose.msra.mxu0 0.0
    %921 = vmatpush.xpose.msra.mxu0 0.0
    %922 = vmatpush.xpose.msra.mxu0 0.0
    %923 = vmatpush.xpose.msra.mxu0 0.0
    %924 = vmatpush.xpose.msra.mxu0 0.0
    %925 = vmatpush.xpose.msra.mxu0 %v909
    %926 = vmatpush.xpose.msra.mxu0 %v907
    %927 = vmatmul.f32.gmra.mxu0 %v903
    %v928 = vpop.f32.mrf.mxu0
    %v929 = vadd.f32 0.0, %v928
    %930 = vmatmul.f32.gmra.mxu0 %v905
    %v931 = vpop.f32.mrf.mxu0
    %v932 = vadd.f32 0.0, %v931
    %933 = vdwg.mxu0
    %934 = vst [vmem:[#allocation1] ss:$9 sm:$0xff] %v529
    %s935 = scalar_lea.vmem [#allocation1], 1
    %936 = vst [vmem:[%s935] ss:$9 sm:$0xff] %v530
    %s937 = scalar_lea.vmem [#allocation1], 2
    %938 = vst [vmem:[%s937] ss:$9 sm:$0xff] %v531
    %s939 = scalar_lea.vmem [#allocation1], 3
    %940 = vst [vmem:[%s939] ss:$9 sm:$0xff] %v532
    %s941 = scalar_lea.vmem [#allocation1], 4
    %942 = vst [vmem:[%s941] ss:$9 sm:$0xff] %v533
    %s943 = scalar_lea.vmem [#allocation1], 5
    %944 = vst [vmem:[%s943] ss:$9 sm:$0xff] %v534
    %s945 = scalar_lea.vmem [#allocation1], 6
    %946 = vst [vmem:[%s945] ss:$9 sm:$0xff] %v535
    %s947 = scalar_lea.vmem [#allocation1], 7
    %948 = vst [vmem:[%s947] ss:$9 sm:$0xff] %v536
    %v949 = vld [vmem:[#allocation1] sm:$0xff]
    %950 = vst [vmem:[#allocation1] ss:$9 sm:$0xff] %v537
    %v951 = vld [vmem:[#allocation1] sm:$0xff]
    %952 = vrot.lane.b32.xlu0 %v949, 120
    %v953 = vpop.permute.xlu0 %952
    %954 = vrot.lane.b32.xlu0 %v951, 120
    %v955 = vpop.permute.xlu0 %954
    %956 = vst [vmem:[#allocation1] ss:$9 sm:$0xff] %v497
    %s957 = scalar_lea.vmem [#allocation1], 1
    %958 = vst [vmem:[%s957] ss:$9 sm:$0xff] %v498
    %s959 = scalar_lea.vmem [#allocation1], 2
    %960 = vst [vmem:[%s959] ss:$9 sm:$0xff] %v499
    %s961 = scalar_lea.vmem [#allocation1], 3
    %962 = vst [vmem:[%s961] ss:$9 sm:$0xff] %v500
    %s963 = scalar_lea.vmem [#allocation1], 4
    %964 = vst [vmem:[%s963] ss:$9 sm:$0xff] %v501
    %s965 = scalar_lea.vmem [#allocation1], 5
    %966 = vst [vmem:[%s965] ss:$9 sm:$0xff] %v502
    %s967 = scalar_lea.vmem [#allocation1], 6
    %968 = vst [vmem:[%s967] ss:$9 sm:$0xff] %v503
    %s969 = scalar_lea.vmem [#allocation1], 7
    %970 = vst [vmem:[%s969] ss:$9 sm:$0xff] %v485
    %v971 = vld [vmem:[#allocation1] sm:$0xff]
    %972 = vst [vmem:[#allocation1] ss:$9 sm:$0xff] %v504
    %v973 = vld [vmem:[#allocation1] sm:$0xff]
    %974 = vrot.lane.b32.xlu0 %v971, 88
    %v975 = vpop.permute.xlu0 %974
    %976 = vrot.lane.b32.xlu0 %v973, 88
    %v977 = vpop.permute.xlu0 %976
    %v978 = vsel %vm587, %v953, 0
    %v980 = vsel %vm587, %v955, 0
    %v982 = vsel %vm587, %v975, 0
    %v984 = vsel %vm587, %v977, 0
    %986 = vmatpush.xpose.msra.mxu0 0.0
    %987 = vmatpush.xpose.msra.mxu0 0.0
    %988 = vmatpush.xpose.msra.mxu0 0.0
    %989 = vmatpush.xpose.msra.mxu0 0.0
    %990 = vmatpush.xpose.msra.mxu0 0.0
    %991 = vmatpush.xpose.msra.mxu0 0.0
    %992 = vmatpush.xpose.msra.mxu0 0.0
    %993 = vmatpush.xpose.msra.mxu0 0.0
    %994 = vmatpush.xpose.msra.mxu0 0.0
    %995 = vmatpush.xpose.msra.mxu0 0.0
    %996 = vmatpush.xpose.msra.mxu0 0.0
    %997 = vmatpush.xpose.msra.mxu0 0.0
    %998 = vmatpush.xpose.msra.mxu0 0.0
    %999 = vmatpush.xpose.msra.mxu0 0.0
    %1000 = vmatpush.xpose.msra.mxu0 %v984
    %1001 = vmatpush.xpose.msra.mxu0 %v982
    %1002 = vmatmul.f32.gmra.mxu0 %v978
    %v1003 = vpop.f32.mrf.mxu0
    %v1004 = vadd.f32 0.0, %v1003
    %1005 = vmatmul.f32.gmra.mxu0 %v980
    %v1006 = vpop.f32.mrf.mxu0
    %v1007 = vadd.f32 0.0, %v1006
    %1008 = vdwg.mxu0
    %v1009 = vsel %vm699, %v929, -inf
    %1010 = vmax.xlane.f32.xlu0 %v1009
    %v1011 = vpop.xlane.xlu0 %1010
    %v1012 = vsel %vm703, %v932, -inf
    %1013 = vmax.xlane.f32.xlu0 %v1012
    %v1014 = vpop.xlane.xlu0 %1013
    %v1015 = vsel %vm699, %v1004, -inf
    %1016 = vmax.xlane.f32.xlu0 %v1015
    %v1017 = vpop.xlane.xlu0 %1016
    %v1018 = vsel %vm703, %v1007, -inf
    %1019 = vmax.xlane.f32.xlu0 %v1018
    %v1020 = vpop.xlane.xlu0 %1019
    %v1021 = vsub.f32 %v929, %v1011
    %v1022 = vsub.f32 %v932, %v1014
    %v1023 = vsub.f32 %v1004, %v1017
    %v1024 = vsub.f32 %v1007, %v1020
    %v1025 = vmul.f32 %v1021, 1.442695
    %v1026 = vpow.pop %v1025
    %v1027 = vmul.f32 %v1022, 1.442695
    %v1028 = vpow.pop %v1027
    %v1029 = vmul.f32 %v1023, 1.442695
    %v1030 = vpow.pop %v1029
    %v1031 = vmul.f32 %v1024, 1.442695
    %v1032 = vpow.pop %v1031
    %v1033 = vsel %vm699, %v1026, 0.0
    %1034 = vadd.xlane.f32.xlu0 %v1033
    %v1035 = vpop.xlane.xlu0 %1034
    %v1036 = vsel %vm703, %v1028, 0.0
    %1037 = vadd.xlane.f32.xlu0 %v1036
    %v1038 = vpop.xlane.xlu0 %1037
    %v1039 = vsel %vm699, %v1030, 0.0
    %1040 = vadd.xlane.f32.xlu0 %v1039
    %v1041 = vpop.xlane.xlu0 %1040
    %v1042 = vsel %vm703, %v1032, 0.0
    %1043 = vadd.xlane.f32.xlu0 %v1042
    %v1044 = vpop.xlane.xlu0 %1043
    %v1045 = vrcp.pop %v1035
    %v1046 = vrcp.pop %v1038
    %v1047 = vrcp.pop %v1041
    %v1048 = vrcp.pop %v1044
    %v1049 = vmul.f32 %v1026, %v1045
    %v1050 = vmul.f32 %v1028, %v1046
    %v1051 = vmul.f32 %v1030, %v1047
    %v1052 = vmul.f32 %v1032, %v1048
    %1053 = vst [vmem:[#allocation1] ss:$9 sm:$0xff] %v479
    %s1054 = scalar_lea.vmem [#allocation1], 1
    %1055 = vst [vmem:[%s1054] ss:$9 sm:$0xff] %v490
    %s1056 = scalar_lea.vmem [#allocation1], 2
    %1057 = vst [vmem:[%s1056] ss:$9 sm:$0xff] %v491
    %s1058 = scalar_lea.vmem [#allocation1], 3
    %1059 = vst [vmem:[%s1058] ss:$9 sm:$0xff] %v492
    %s1060 = scalar_lea.vmem [#allocation1], 4
    %1061 = vst [vmem:[%s1060] ss:$9 sm:$0xff] %v493
    %s1062 = scalar_lea.vmem [#allocation1], 5
    %1063 = vst [vmem:[%s1062] ss:$9 sm:$0xff] %v494
    %s1064 = scalar_lea.vmem [#allocation1], 6
    %1065 = vst [vmem:[%s1064] ss:$9 sm:$0xff] %v495
    %s1066 = scalar_lea.vmem [#allocation1], 7
    %1067 = vst [vmem:[%s1066] ss:$9 sm:$0xff] %v496
    %v1068 = vld [vmem:[#allocation1] sm:$0xff]
    %1069 = vst [vmem:[#allocation1] ss:$9 sm:$0xff] %v482
    %v1070 = vld [vmem:[#allocation1] sm:$0xff]
    %1071 = vrot.lane.b32.xlu0 %v1068, 56
    %v1072 = vpop.permute.xlu0 %1071
    %1073 = vrot.lane.b32.xlu0 %v1070, 56
    %v1074 = vpop.permute.xlu0 %1073
    %v1077 = vsel %vm699, %v1049, 0
    %v1080 = vsel %vm699, %v1050, 0
    %v1082 = vsel %vm774, %v1074, 0
    %1084 = vmatpush.msra.mxu0 0.0
    %1085 = vmatpush.msra.mxu0 0.0
    %1086 = vmatpush.msra.mxu0 0.0
    %1087 = vmatpush.msra.mxu0 0.0
    %1088 = vmatpush.msra.mxu0 0.0
    %1089 = vmatpush.msra.mxu0 0.0
    %1090 = vmatpush.msra.mxu0 0.0
    %1091 = vmatpush.msra.mxu0 0.0
    %1092 = vmatpush.msra.mxu0 0.0
    %1093 = vmatpush.msra.mxu0 0.0
    %1094 = vmatpush.msra.mxu0 0.0
    %1095 = vmatpush.msra.mxu0 0.0
    %1096 = vmatpush.msra.mxu0 0.0
    %1097 = vmatpush.msra.mxu0 0.0
    %1098 = vmatpush.msra.mxu0 %v1082
    %1099 = vmatpush.msra.mxu0 %v1072
    %1100 = vmatmul.f32.gmra.mxu0 %v1077
    %v1101 = vpop.f32.mrf.mxu0
    %v1102 = vadd.f32 0.0, %v1101
    %1103 = vmatmul.f32.gmra.mxu0 %v1080
    %v1104 = vpop.f32.mrf.mxu0
    %v1105 = vadd.f32 0.0, %v1104
    %1106 = vdwg.mxu0
    %1107 = vst [vmem:[#allocation1] ss:$9 sm:$0xff] %v497
    %s1108 = scalar_lea.vmem [#allocation1], 1
    %1109 = vst [vmem:[%s1108] ss:$9 sm:$0xff] %v498
    %s1110 = scalar_lea.vmem [#allocation1], 2
    %1111 = vst [vmem:[%s1110] ss:$9 sm:$0xff] %v499
    %s1112 = scalar_lea.vmem [#allocation1], 3
    %1113 = vst [vmem:[%s1112] ss:$9 sm:$0xff] %v500
    %s1114 = scalar_lea.vmem [#allocation1], 4
    %1115 = vst [vmem:[%s1114] ss:$9 sm:$0xff] %v501
    %s1116 = scalar_lea.vmem [#allocation1], 5
    %1117 = vst [vmem:[%s1116] ss:$9 sm:$0xff] %v502
    %s1118 = scalar_lea.vmem [#allocation1], 6
    %1119 = vst [vmem:[%s1118] ss:$9 sm:$0xff] %v503
    %s1120 = scalar_lea.vmem [#allocation1], 7
    %1121 = vst [vmem:[%s1120] ss:$9 sm:$0xff] %v485
    %v1122 = vld [vmem:[#allocation1] sm:$0xff]
    %1123 = vst [vmem:[#allocation1] ss:$9 sm:$0xff] %v504
    %v1124 = vld [vmem:[#allocation1] sm:$0xff]
    %1125 = vrot.lane.b32.xlu0 %v1122, 56
    %v1126 = vpop.permute.xlu0 %1125
    %1127 = vrot.lane.b32.xlu0 %v1124, 56
    %v1128 = vpop.permute.xlu0 %1127
    %v1131 = vsel %vm699, %v1051, 0
    %v1134 = vsel %vm699, %v1052, 0
    %v1136 = vsel %vm774, %v1128, 0
    %1138 = vmatpush.msra.mxu0 0.0
    %1139 = vmatpush.msra.mxu0 0.0
    %1140 = vmatpush.msra.mxu0 0.0
    %1141 = vmatpush.msra.mxu0 0.0
    %1142 = vmatpush.msra.mxu0 0.0
    %1143 = vmatpush.msra.mxu0 0.0
    %1144 = vmatpush.msra.mxu0 0.0
    %1145 = vmatpush.msra.mxu0 0.0
    %1146 = vmatpush.msra.mxu0 0.0
    %1147 = vmatpush.msra.mxu0 0.0
    %1148 = vmatpush.msra.mxu0 0.0
    %1149 = vmatpush.msra.mxu0 0.0
    %1150 = vmatpush.msra.mxu0 0.0
    %1151 = vmatpush.msra.mxu0 0.0
    %1152 = vmatpush.msra.mxu0 %v1136
    %1153 = vmatpush.msra.mxu0 %v1126
    %1154 = vmatmul.f32.gmra.mxu0 %v1131
    %v1155 = vpop.f32.mrf.mxu0
    %v1156 = vadd.f32 0.0, %v1155
    %1157 = vmatmul.f32.gmra.mxu0 %v1134
    %v1158 = vpop.f32.mrf.mxu0
    %v1159 = vadd.f32 0.0, %v1158
    %1160 = vdwg.mxu0
    %1165 = vrot.lane.b32.xlu0 %v1102, 8
    %v1166 = vpop.permute.xlu0 %1165
    %1167 = vrot.lane.b32.xlu0 %v1105, 8
    %v1168 = vpop.permute.xlu0 %1167
    %1169 = vrot.lane.b32.xlu0 %v1156, 8
    %v1170 = vpop.permute.xlu0 %1169
    %1171 = vrot.lane.b32.xlu0 %v1159, 8
    %v1172 = vpop.permute.xlu0 %1171
    %vm1177 = vcmask 130112
    %1178 = vst.msk [vmem:[#allocation3] sm:$0xff] %vm1177, %v1166
    %vm1179 = vcmask 122944
    %1180 = vst.msk [vmem:[#allocation3 + $0x8] sm:$0x1] %vm1179, %v1168
    %1181 = vst.msk [vmem:[#allocation3 + $0x10] sm:$0xff] %vm1177, %v1170
    %1182 = vst.msk [vmem:[#allocation3 + $0x18] sm:$0x1] %vm1179, %v1172
    %1183 = vst [vmem:[#allocation1] ss:$9 sm:$0xff] %v520
    %s1184 = scalar_lea.vmem [#allocation1], 1
    %1185 = vst [vmem:[%s1184] ss:$9 sm:$0xff] %v521
    %s1186 = scalar_lea.vmem [#allocation1], 2
    %1187 = vst [vmem:[%s1186] ss:$9 sm:$0xff] %v522
    %s1188 = scalar_lea.vmem [#allocation1], 3
    %1189 = vst [vmem:[%s1188] ss:$9 sm:$0xff] %v523
    %s1190 = scalar_lea.vmem [#allocation1], 4
    %1191 = vst [vmem:[%s1190] ss:$9 sm:$0xff] %v524
    %s1192 = scalar_lea.vmem [#allocation1], 5
    %1193 = vst [vmem:[%s1192] ss:$9 sm:$0xff] %v525
    %s1194 = scalar_lea.vmem [#allocation1], 6
    %1195 = vst [vmem:[%s1194] ss:$9 sm:$0xff] %v526
    %s1196 = scalar_lea.vmem [#allocation1], 7
    %1197 = vst [vmem:[%s1196] ss:$9 sm:$0xff] %v527
    %v1198 = vld [vmem:[#allocation1] sm:$0xff]
    %1199 = vst [vmem:[#allocation1] ss:$9 sm:$0xff] %v528
    %v1200 = vld [vmem:[#allocation1] sm:$0xff]
    %1201 = vrot.lane.b32.xlu0 %v1198, 112
    %v1202 = vpop.permute.xlu0 %1201
    %1203 = vrot.lane.b32.xlu0 %v1200, 112
    %v1204 = vpop.permute.xlu0 %1203
    %1205 = vst [vmem:[#allocation1] ss:$9 sm:$0xff] %v479
    %s1206 = scalar_lea.vmem [#allocation1], 1
    %1207 = vst [vmem:[%s1206] ss:$9 sm:$0xff] %v490
    %s1208 = scalar_lea.vmem [#allocation1], 2
    %1209 = vst [vmem:[%s1208] ss:$9 sm:$0xff] %v491
    %s1210 = scalar_lea.vmem [#allocation1], 3
    %1211 = vst [vmem:[%s1210] ss:$9 sm:$0xff] %v492
    %s1212 = scalar_lea.vmem [#allocation1], 4
    %1213 = vst [vmem:[%s1212] ss:$9 sm:$0xff] %v493
    %s1214 = scalar_lea.vmem [#allocation1], 5
    %1215 = vst [vmem:[%s1214] ss:$9 sm:$0xff] %v494
    %s1216 = scalar_lea.vmem [#allocation1], 6
    %1217 = vst [vmem:[%s1216] ss:$9 sm:$0xff] %v495
    %s1218 = scalar_lea.vmem [#allocation1], 7
    %1219 = vst [vmem:[%s1218] ss:$9 sm:$0xff] %v496
    %v1220 = vld [vmem:[#allocation1] sm:$0xff]
    %1221 = vst [vmem:[#allocation1] ss:$9 sm:$0xff] %v482
    %v1222 = vld [vmem:[#allocation1] sm:$0xff]
    %1223 = vrot.lane.b32.xlu0 %v1220, 80
    %v1224 = vpop.permute.xlu0 %1223
    %1225 = vrot.lane.b32.xlu0 %v1222, 80
    %v1226 = vpop.permute.xlu0 %1225
    %v1227 = vsel %vm587, %v1202, 0
    %v1229 = vsel %vm587, %v1204, 0
    %v1231 = vsel %vm587, %v1224, 0
    %v1233 = vsel %vm587, %v1226, 0
    %1235 = vmatpush.xpose.msra.mxu0 0.0
    %1236 = vmatpush.xpose.msra.mxu0 0.0
    %1237 = vmatpush.xpose.msra.mxu0 0.0
    %1238 = vmatpush.xpose.msra.mxu0 0.0
    %1239 = vmatpush.xpose.msra.mxu0 0.0
    %1240 = vmatpush.xpose.msra.mxu0 0.0
    %1241 = vmatpush.xpose.msra.mxu0 0.0
    %1242 = vmatpush.xpose.msra.mxu0 0.0
    %1243 = vmatpush.xpose.msra.mxu0 0.0
    %1244 = vmatpush.xpose.msra.mxu0 0.0
    %1245 = vmatpush.xpose.msra.mxu0 0.0
    %1246 = vmatpush.xpose.msra.mxu0 0.0
    %1247 = vmatpush.xpose.msra.mxu0 0.0
    %1248 = vmatpush.xpose.msra.mxu0 0.0
    %1249 = vmatpush.xpose.msra.mxu0 %v1233
    %1250 = vmatpush.xpose.msra.mxu0 %v1231
    %1251 = vmatmul.f32.gmra.mxu0 %v1227
    %v1252 = vpop.f32.mrf.mxu0
    %v1253 = vadd.f32 0.0, %v1252
    %1254 = vmatmul.f32.gmra.mxu0 %v1229
    %v1255 = vpop.f32.mrf.mxu0
    %v1256 = vadd.f32 0.0, %v1255
    %1257 = vdwg.mxu0
    %1258 = vst [vmem:[#allocation1] ss:$9 sm:$0xff] %v529
    %s1259 = scalar_lea.vmem [#allocation1], 1
    %1260 = vst [vmem:[%s1259] ss:$9 sm:$0xff] %v530
    %s1261 = scalar_lea.vmem [#allocation1], 2
    %1262 = vst [vmem:[%s1261] ss:$9 sm:$0xff] %v531
    %s1263 = scalar_lea.vmem [#allocation1], 3
    %1264 = vst [vmem:[%s1263] ss:$9 sm:$0xff] %v532
    %s1265 = scalar_lea.vmem [#allocation1], 4
    %1266 = vst [vmem:[%s1265] ss:$9 sm:$0xff] %v533
    %s1267 = scalar_lea.vmem [#allocation1], 5
    %1268 = vst [vmem:[%s1267] ss:$9 sm:$0xff] %v534
    %s1269 = scalar_lea.vmem [#allocation1], 6
    %1270 = vst [vmem:[%s1269] ss:$9 sm:$0xff] %v535
    %s1271 = scalar_lea.vmem [#allocation1], 7
    %1272 = vst [vmem:[%s1271] ss:$9 sm:$0xff] %v536
    %v1273 = vld [vmem:[#allocation1] sm:$0xff]
    %1274 = vst [vmem:[#allocation1] ss:$9 sm:$0xff] %v537
    %v1275 = vld [vmem:[#allocation1] sm:$0xff]
    %1276 = vrot.lane.b32.xlu0 %v1273, 112
    %v1277 = vpop.permute.xlu0 %1276
    %1278 = vrot.lane.b32.xlu0 %v1275, 112
    %v1279 = vpop.permute.xlu0 %1278
    %1280 = vst [vmem:[#allocation1] ss:$9 sm:$0xff] %v497
    %s1281 = scalar_lea.vmem [#allocation1], 1
    %1282 = vst [vmem:[%s1281] ss:$9 sm:$0xff] %v498
    %s1283 = scalar_lea.vmem [#allocation1], 2
    %1284 = vst [vmem:[%s1283] ss:$9 sm:$0xff] %v499
    %s1285 = scalar_lea.vmem [#allocation1], 3
    %1286 = vst [vmem:[%s1285] ss:$9 sm:$0xff] %v500
    %s1287 = scalar_lea.vmem [#allocation1], 4
    %1288 = vst [vmem:[%s1287] ss:$9 sm:$0xff] %v501
    %s1289 = scalar_lea.vmem [#allocation1], 5
    %1290 = vst [vmem:[%s1289] ss:$9 sm:$0xff] %v502
    %s1291 = scalar_lea.vmem [#allocation1], 6
    %1292 = vst [vmem:[%s1291] ss:$9 sm:$0xff] %v503
    %s1293 = scalar_lea.vmem [#allocation1], 7
    %1294 = vst [vmem:[%s1293] ss:$9 sm:$0xff] %v485
    %v1295 = vld [vmem:[#allocation1] sm:$0xff]
    %1296 = vst [vmem:[#allocation1] ss:$9 sm:$0xff] %v504
    %v1297 = vld [vmem:[#allocation1] sm:$0xff]
    %1298 = vrot.lane.b32.xlu0 %v1295, 80
    %v1299 = vpop.permute.xlu0 %1298
    %1300 = vrot.lane.b32.xlu0 %v1297, 80
    %v1301 = vpop.permute.xlu0 %1300
    %v1302 = vsel %vm587, %v1277, 0
    %v1304 = vsel %vm587, %v1279, 0
    %v1306 = vsel %vm587, %v1299, 0
    %v1308 = vsel %vm587, %v1301, 0
    %1310 = vmatpush.xpose.msra.mxu0 0.0
    %1311 = vmatpush.xpose.msra.mxu0 0.0
    %1312 = vmatpush.xpose.msra.mxu0 0.0
    %1313 = vmatpush.xpose.msra.mxu0 0.0
    %1314 = vmatpush.xpose.msra.mxu0 0.0
    %1315 = vmatpush.xpose.msra.mxu0 0.0
    %1316 = vmatpush.xpose.msra.mxu0 0.0
    %1317 = vmatpush.xpose.msra.mxu0 0.0
    %1318 = vmatpush.xpose.msra.mxu0 0.0
    %1319 = vmatpush.xpose.msra.mxu0 0.0
    %1320 = vmatpush.xpose.msra.mxu0 0.0
    %1321 = vmatpush.xpose.msra.mxu0 0.0
    %1322 = vmatpush.xpose.msra.mxu0 0.0
    %1323 = vmatpush.xpose.msra.mxu0 0.0
    %1324 = vmatpush.xpose.msra.mxu0 %v1308
    %1325 = vmatpush.xpose.msra.mxu0 %v1306
    %1326 = vmatmul.f32.gmra.mxu0 %v1302
    %v1327 = vpop.f32.mrf.mxu0
    %v1328 = vadd.f32 0.0, %v1327
    %1329 = vmatmul.f32.gmra.mxu0 %v1304
    %v1330 = vpop.f32.mrf.mxu0
    %v1331 = vadd.f32 0.0, %v1330
    %1332 = vdwg.mxu0
    %v1333 = vsel %vm699, %v1253, -inf
    %1334 = vmax.xlane.f32.xlu0 %v1333
    %v1335 = vpop.xlane.xlu0 %1334
    %v1336 = vsel %vm703, %v1256, -inf
    %1337 = vmax.xlane.f32.xlu0 %v1336
    %v1338 = vpop.xlane.xlu0 %1337
    %v1339 = vsel %vm699, %v1328, -inf
    %1340 = vmax.xlane.f32.xlu0 %v1339
    %v1341 = vpop.xlane.xlu0 %1340
    %v1342 = vsel %vm703, %v1331, -inf
    %1343 = vmax.xlane.f32.xlu0 %v1342
    %v1344 = vpop.xlane.xlu0 %1343
    %v1345 = vsub.f32 %v1253, %v1335
    %v1346 = vsub.f32 %v1256, %v1338
    %v1347 = vsub.f32 %v1328, %v1341
    %v1348 = vsub.f32 %v1331, %v1344
    %v1349 = vmul.f32 %v1345, 1.442695
    %v1350 = vpow.pop %v1349
    %v1351 = vmul.f32 %v1346, 1.442695
    %v1352 = vpow.pop %v1351
    %v1353 = vmul.f32 %v1347, 1.442695
    %v1354 = vpow.pop %v1353
    %v1355 = vmul.f32 %v1348, 1.442695
    %v1356 = vpow.pop %v1355
    %v1357 = vsel %vm699, %v1350, 0.0
    %1358 = vadd.xlane.f32.xlu0 %v1357
    %v1359 = vpop.xlane.xlu0 %1358
    %v1360 = vsel %vm703, %v1352, 0.0
    %1361 = vadd.xlane.f32.xlu0 %v1360
    %v1362 = vpop.xlane.xlu0 %1361
    %v1363 = vsel %vm699, %v1354, 0.0
    %1364 = vadd.xlane.f32.xlu0 %v1363
    %v1365 = vpop.xlane.xlu0 %1364
    %v1366 = vsel %vm703, %v1356, 0.0
    %1367 = vadd.xlane.f32.xlu0 %v1366
    %v1368 = vpop.xlane.xlu0 %1367
    %v1369 = vrcp.pop %v1359
    %v1370 = vrcp.pop %v1362
    %v1371 = vrcp.pop %v1365
    %v1372 = vrcp.pop %v1368
    %v1373 = vmul.f32 %v1350, %v1369
    %v1374 = vmul.f32 %v1352, %v1370
    %v1375 = vmul.f32 %v1354, %v1371
    %v1376 = vmul.f32 %v1356, %v1372
    %1377 = vst [vmem:[#allocation1] ss:$9 sm:$0xff] %v479
    %s1378 = scalar_lea.vmem [#allocation1], 1
    %1379 = vst [vmem:[%s1378] ss:$9 sm:$0xff] %v490
    %s1380 = scalar_lea.vmem [#allocation1], 2
    %1381 = vst [vmem:[%s1380] ss:$9 sm:$0xff] %v491
    %s1382 = scalar_lea.vmem [#allocation1], 3
    %1383 = vst [vmem:[%s1382] ss:$9 sm:$0xff] %v492
    %s1384 = scalar_lea.vmem [#allocation1], 4
    %1385 = vst [vmem:[%s1384] ss:$9 sm:$0xff] %v493
    %s1386 = scalar_lea.vmem [#allocation1], 5
    %1387 = vst [vmem:[%s1386] ss:$9 sm:$0xff] %v494
    %s1388 = scalar_lea.vmem [#allocation1], 6
    %1389 = vst [vmem:[%s1388] ss:$9 sm:$0xff] %v495
    %s1390 = scalar_lea.vmem [#allocation1], 7
    %1391 = vst [vmem:[%s1390] ss:$9 sm:$0xff] %v496
    %v1392 = vld [vmem:[#allocation1] sm:$0xff]
    %1393 = vst [vmem:[#allocation1] ss:$9 sm:$0xff] %v482
    %v1394 = vld [vmem:[#allocation1] sm:$0xff]
    %1395 = vrot.lane.b32.xlu0 %v1392, 48
    %v1396 = vpop.permute.xlu0 %1395
    %1397 = vrot.lane.b32.xlu0 %v1394, 48
    %v1398 = vpop.permute.xlu0 %1397
    %v1401 = vsel %vm699, %v1373, 0
    %v1404 = vsel %vm699, %v1374, 0
    %v1406 = vsel %vm774, %v1398, 0
    %1408 = vmatpush.msra.mxu0 0.0
    %1409 = vmatpush.msra.mxu0 0.0
    %1410 = vmatpush.msra.mxu0 0.0
    %1411 = vmatpush.msra.mxu0 0.0
    %1412 = vmatpush.msra.mxu0 0.0
    %1413 = vmatpush.msra.mxu0 0.0
    %1414 = vmatpush.msra.mxu0 0.0
    %1415 = vmatpush.msra.mxu0 0.0
    %1416 = vmatpush.msra.mxu0 0.0
    %1417 = vmatpush.msra.mxu0 0.0
    %1418 = vmatpush.msra.mxu0 0.0
    %1419 = vmatpush.msra.mxu0 0.0
    %1420 = vmatpush.msra.mxu0 0.0
    %1421 = vmatpush.msra.mxu0 0.0
    %1422 = vmatpush.msra.mxu0 %v1406
    %1423 = vmatpush.msra.mxu0 %v1396
    %1424 = vmatmul.f32.gmra.mxu0 %v1401
    %v1425 = vpop.f32.mrf.mxu0
    %v1426 = vadd.f32 0.0, %v1425
    %1427 = vmatmul.f32.gmra.mxu0 %v1404
    %v1428 = vpop.f32.mrf.mxu0
    %v1429 = vadd.f32 0.0, %v1428
    %1430 = vdwg.mxu0
    %1431 = vst [vmem:[#allocation1] ss:$9 sm:$0xff] %v497
    %s1432 = scalar_lea.vmem [#allocation1], 1
    %1433 = vst [vmem:[%s1432] ss:$9 sm:$0xff] %v498
    %s1434 = scalar_lea.vmem [#allocation1], 2
    %1435 = vst [vmem:[%s1434] ss:$9 sm:$0xff] %v499
    %s1436 = scalar_lea.vmem [#allocation1], 3
    %1437 = vst [vmem:[%s1436] ss:$9 sm:$0xff] %v500
    %s1438 = scalar_lea.vmem [#allocation1], 4
    %1439 = vst [vmem:[%s1438] ss:$9 sm:$0xff] %v501
    %s1440 = scalar_lea.vmem [#allocation1], 5
    %1441 = vst [vmem:[%s1440] ss:$9 sm:$0xff] %v502
    %s1442 = scalar_lea.vmem [#allocation1], 6
    %1443 = vst [vmem:[%s1442] ss:$9 sm:$0xff] %v503
    %s1444 = scalar_lea.vmem [#allocation1], 7
    %1445 = vst [vmem:[%s1444] ss:$9 sm:$0xff] %v485
    %v1446 = vld [vmem:[#allocation1] sm:$0xff]
    %1447 = vst [vmem:[#allocation1] ss:$9 sm:$0xff] %v504
    %v1448 = vld [vmem:[#allocation1] sm:$0xff]
    %1449 = vrot.lane.b32.xlu0 %v1446, 48
    %v1450 = vpop.permute.xlu0 %1449
    %1451 = vrot.lane.b32.xlu0 %v1448, 48
    %v1452 = vpop.permute.xlu0 %1451
    %v1455 = vsel %vm699, %v1375, 0
    %v1458 = vsel %vm699, %v1376, 0
    %v1460 = vsel %vm774, %v1452, 0
    %1462 = vmatpush.msra.mxu0 0.0
    %1463 = vmatpush.msra.mxu0 0.0
    %1464 = vmatpush.msra.mxu0 0.0
    %1465 = vmatpush.msra.mxu0 0.0
    %1466 = vmatpush.msra.mxu0 0.0
    %1467 = vmatpush.msra.mxu0 0.0
    %1468 = vmatpush.msra.mxu0 0.0
    %1469 = vmatpush.msra.mxu0 0.0
    %1470 = vmatpush.msra.mxu0 0.0
    %1471 = vmatpush.msra.mxu0 0.0
    %1472 = vmatpush.msra.mxu0 0.0
    %1473 = vmatpush.msra.mxu0 0.0
    %1474 = vmatpush.msra.mxu0 0.0
    %1475 = vmatpush.msra.mxu0 0.0
    %1476 = vmatpush.msra.mxu0 %v1460
    %1477 = vmatpush.msra.mxu0 %v1450
    %1478 = vmatmul.f32.gmra.mxu0 %v1455
    %v1479 = vpop.f32.mrf.mxu0
    %v1480 = vadd.f32 0.0, %v1479
    %1481 = vmatmul.f32.gmra.mxu0 %v1458
    %v1482 = vpop.f32.mrf.mxu0
    %v1483 = vadd.f32 0.0, %v1482
    %1484 = vdwg.mxu0
    %1489 = vrot.lane.b32.xlu0 %v1426, 16
    %v1490 = vpop.permute.xlu0 %1489
    %1491 = vrot.lane.b32.xlu0 %v1429, 16
    %v1492 = vpop.permute.xlu0 %1491
    %1493 = vrot.lane.b32.xlu0 %v1480, 16
    %v1494 = vpop.permute.xlu0 %1493
    %1495 = vrot.lane.b32.xlu0 %v1483, 16
    %v1496 = vpop.permute.xlu0 %1495
    %vm1501 = vcmask 195712
    %1502 = vst.msk [vmem:[#allocation3] sm:$0xff] %vm1501, %v1490
    %vm1503 = vcmask 188544
    %1504 = vst.msk [vmem:[#allocation3 + $0x8] sm:$0x1] %vm1503, %v1492
    %1505 = vst.msk [vmem:[#allocation3 + $0x10] sm:$0xff] %vm1501, %v1494
    %1506 = vst.msk [vmem:[#allocation3 + $0x18] sm:$0x1] %vm1503, %v1496
    %1507 = vst [vmem:[#allocation1] ss:$9 sm:$0xff] %v520
    %s1508 = scalar_lea.vmem [#allocation1], 1
    %1509 = vst [vmem:[%s1508] ss:$9 sm:$0xff] %v521
    %s1510 = scalar_lea.vmem [#allocation1], 2
    %1511 = vst [vmem:[%s1510] ss:$9 sm:$0xff] %v522
    %s1512 = scalar_lea.vmem [#allocation1], 3
    %1513 = vst [vmem:[%s1512] ss:$9 sm:$0xff] %v523
    %s1514 = scalar_lea.vmem [#allocation1], 4
    %1515 = vst [vmem:[%s1514] ss:$9 sm:$0xff] %v524
    %s1516 = scalar_lea.vmem [#allocation1], 5
    %1517 = vst [vmem:[%s1516] ss:$9 sm:$0xff] %v525
    %s1518 = scalar_lea.vmem [#allocation1], 6
    %1519 = vst [vmem:[%s1518] ss:$9 sm:$0xff] %v526
    %s1520 = scalar_lea.vmem [#allocation1], 7
    %1521 = vst [vmem:[%s1520] ss:$9 sm:$0xff] %v527
    %v1522 = vld [vmem:[#allocation1] sm:$0xff]
    %1523 = vst [vmem:[#allocation1] ss:$9 sm:$0xff] %v528
    %v1524 = vld [vmem:[#allocation1] sm:$0xff]
    %1525 = vrot.lane.b32.xlu0 %v1522, 104
    %v1526 = vpop.permute.xlu0 %1525
    %1527 = vrot.lane.b32.xlu0 %v1524, 104
    %v1528 = vpop.permute.xlu0 %1527
    %1529 = vst [vmem:[#allocation1] ss:$9 sm:$0xff] %v479
    %s1530 = scalar_lea.vmem [#allocation1], 1
    %1531 = vst [vmem:[%s1530] ss:$9 sm:$0xff] %v490
    %s1532 = scalar_lea.vmem [#allocation1], 2
    %1533 = vst [vmem:[%s1532] ss:$9 sm:$0xff] %v491
    %s1534 = scalar_lea.vmem [#allocation1], 3
    %1535 = vst [vmem:[%s1534] ss:$9 sm:$0xff] %v492
    %s1536 = scalar_lea.vmem [#allocation1], 4
    %1537 = vst [vmem:[%s1536] ss:$9 sm:$0xff] %v493
    %s1538 = scalar_lea.vmem [#allocation1], 5
    %1539 = vst [vmem:[%s1538] ss:$9 sm:$0xff] %v494
    %s1540 = scalar_lea.vmem [#allocation1], 6
    %1541 = vst [vmem:[%s1540] ss:$9 sm:$0xff] %v495
    %s1542 = scalar_lea.vmem [#allocation1], 7
    %1543 = vst [vmem:[%s1542] ss:$9 sm:$0xff] %v496
    %v1544 = vld [vmem:[#allocation1] sm:$0xff]
    %1545 = vst [vmem:[#allocation1] ss:$9 sm:$0xff] %v482
    %v1546 = vld [vmem:[#allocation1] sm:$0xff]
    %1547 = vrot.lane.b32.xlu0 %v1544, 72
    %v1548 = vpop.permute.xlu0 %1547
    %1549 = vrot.lane.b32.xlu0 %v1546, 72
    %v1550 = vpop.permute.xlu0 %1549
    %v1551 = vsel %vm587, %v1526, 0
    %v1553 = vsel %vm587, %v1528, 0
    %v1555 = vsel %vm587, %v1548, 0
    %v1557 = vsel %vm587, %v1550, 0
    %1559 = vmatpush.xpose.msra.mxu0 0.0
    %1560 = vmatpush.xpose.msra.mxu0 0.0
    %1561 = vmatpush.xpose.msra.mxu0 0.0
    %1562 = vmatpush.xpose.msra.mxu0 0.0
    %1563 = vmatpush.xpose.msra.mxu0 0.0
    %1564 = vmatpush.xpose.msra.mxu0 0.0
    %1565 = vmatpush.xpose.msra.mxu0 0.0
    %1566 = vmatpush.xpose.msra.mxu0 0.0
    %1567 = vmatpush.xpose.msra.mxu0 0.0
    %1568 = vmatpush.xpose.msra.mxu0 0.0
    %1569 = vmatpush.xpose.msra.mxu0 0.0
    %1570 = vmatpush.xpose.msra.mxu0 0.0
    %1571 = vmatpush.xpose.msra.mxu0 0.0
    %1572 = vmatpush.xpose.msra.mxu0 0.0
    %1573 = vmatpush.xpose.msra.mxu0 %v1557
    %1574 = vmatpush.xpose.msra.mxu0 %v1555
    %1575 = vmatmul.f32.gmra.mxu0 %v1551
    %v1576 = vpop.f32.mrf.mxu0
    %v1577 = vadd.f32 0.0, %v1576
    %1578 = vmatmul.f32.gmra.mxu0 %v1553
    %v1579 = vpop.f32.mrf.mxu0
    %v1580 = vadd.f32 0.0, %v1579
    %1581 = vdwg.mxu0
    %1582 = vst [vmem:[#allocation1] ss:$9 sm:$0xff] %v529
    %s1583 = scalar_lea.vmem [#allocation1], 1
    %1584 = vst [vmem:[%s1583] ss:$9 sm:$0xff] %v530
    %s1585 = scalar_lea.vmem [#allocation1], 2
    %1586 = vst [vmem:[%s1585] ss:$9 sm:$0xff] %v531
    %s1587 = scalar_lea.vmem [#allocation1], 3
    %1588 = vst [vmem:[%s1587] ss:$9 sm:$0xff] %v532
    %s1589 = scalar_lea.vmem [#allocation1], 4
    %1590 = vst [vmem:[%s1589] ss:$9 sm:$0xff] %v533
    %s1591 = scalar_lea.vmem [#allocation1], 5
    %1592 = vst [vmem:[%s1591] ss:$9 sm:$0xff] %v534
    %s1593 = scalar_lea.vmem [#allocation1], 6
    %1594 = vst [vmem:[%s1593] ss:$9 sm:$0xff] %v535
    %s1595 = scalar_lea.vmem [#allocation1], 7
    %1596 = vst [vmem:[%s1595] ss:$9 sm:$0xff] %v536
    %v1597 = vld [vmem:[#allocation1] sm:$0xff]
    %1598 = vst [vmem:[#allocation1] ss:$9 sm:$0xff] %v537
    %v1599 = vld [vmem:[#allocation1] sm:$0xff]
    %1600 = vrot.lane.b32.xlu0 %v1597, 104
    %v1601 = vpop.permute.xlu0 %1600
    %1602 = vrot.lane.b32.xlu0 %v1599, 104
    %v1603 = vpop.permute.xlu0 %1602
    %1604 = vst [vmem:[#allocation1] ss:$9 sm:$0xff] %v497
    %s1605 = scalar_lea.vmem [#allocation1], 1
    %1606 = vst [vmem:[%s1605] ss:$9 sm:$0xff] %v498
    %s1607 = scalar_lea.vmem [#allocation1], 2
    %1608 = vst [vmem:[%s1607] ss:$9 sm:$0xff] %v499
    %s1609 = scalar_lea.vmem [#allocation1], 3
    %1610 = vst [vmem:[%s1609] ss:$9 sm:$0xff] %v500
    %s1611 = scalar_lea.vmem [#allocation1], 4
    %1612 = vst [vmem:[%s1611] ss:$9 sm:$0xff] %v501
    %s1613 = scalar_lea.vmem [#allocation1], 5
    %1614 = vst [vmem:[%s1613] ss:$9 sm:$0xff] %v502
    %s1615 = scalar_lea.vmem [#allocation1], 6
    %1616 = vst [vmem:[%s1615] ss:$9 sm:$0xff] %v503
    %s1617 = scalar_lea.vmem [#allocation1], 7
    %1618 = vst [vmem:[%s1617] ss:$9 sm:$0xff] %v485
    %v1619 = vld [vmem:[#allocation1] sm:$0xff]
    %1620 = vst [vmem:[#allocation1] ss:$9 sm:$0xff] %v504
    %v1621 = vld [vmem:[#allocation1] sm:$0xff]
    %1622 = vrot.lane.b32.xlu0 %v1619, 72
    %v1623 = vpop.permute.xlu0 %1622
    %1624 = vrot.lane.b32.xlu0 %v1621, 72
    %v1625 = vpop.permute.xlu0 %1624
    %v1626 = vsel %vm587, %v1601, 0
    %v1628 = vsel %vm587, %v1603, 0
    %v1630 = vsel %vm587, %v1623, 0
    %v1632 = vsel %vm587, %v1625, 0
    %1634 = vmatpush.xpose.msra.mxu0 0.0
    %1635 = vmatpush.xpose.msra.mxu0 0.0
    %1636 = vmatpush.xpose.msra.mxu0 0.0
    %1637 = vmatpush.xpose.msra.mxu0 0.0
    %1638 = vmatpush.xpose.msra.mxu0 0.0
    %1639 = vmatpush.xpose.msra.mxu0 0.0
    %1640 = vmatpush.xpose.msra.mxu0 0.0
    %1641 = vmatpush.xpose.msra.mxu0 0.0
    %1642 = vmatpush.xpose.msra.mxu0 0.0
    %1643 = vmatpush.xpose.msra.mxu0 0.0
    %1644 = vmatpush.xpose.msra.mxu0 0.0
    %1645 = vmatpush.xpose.msra.mxu0 0.0
    %1646 = vmatpush.xpose.msra.mxu0 0.0
    %1647 = vmatpush.xpose.msra.mxu0 0.0
    %1648 = vmatpush.xpose.msra.mxu0 %v1632
    %1649 = vmatpush.xpose.msra.mxu0 %v1630
    %1650 = vmatmul.f32.gmra.mxu0 %v1626
    %v1651 = vpop.f32.mrf.mxu0
    %v1652 = vadd.f32 0.0, %v1651
    %1653 = vmatmul.f32.gmra.mxu0 %v1628
    %v1654 = vpop.f32.mrf.mxu0
    %v1655 = vadd.f32 0.0, %v1654
    %1656 = vdwg.mxu0
    %v1657 = vsel %vm699, %v1577, -inf
    %1658 = vmax.xlane.f32.xlu0 %v1657
    %v1659 = vpop.xlane.xlu0 %1658
    %v1660 = vsel %vm703, %v1580, -inf
    %1661 = vmax.xlane.f32.xlu0 %v1660
    %v1662 = vpop.xlane.xlu0 %1661
    %v1663 = vsel %vm699, %v1652, -inf
    %1664 = vmax.xlane.f32.xlu0 %v1663
    %v1665 = vpop.xlane.xlu0 %1664
    %v1666 = vsel %vm703, %v1655, -inf
    %1667 = vmax.xlane.f32.xlu0 %v1666
    %v1668 = vpop.xlane.xlu0 %1667
    %v1669 = vsub.f32 %v1577, %v1659
    %v1670 = vsub.f32 %v1580, %v1662
    %v1671 = vsub.f32 %v1652, %v1665
    %v1672 = vsub.f32 %v1655, %v1668
    %v1673 = vmul.f32 %v1669, 1.442695
    %v1674 = vpow.pop %v1673
    %v1675 = vmul.f32 %v1670, 1.442695
    %v1676 = vpow.pop %v1675
    %v1677 = vmul.f32 %v1671, 1.442695
    %v1678 = vpow.pop %v1677
    %v1679 = vmul.f32 %v1672, 1.442695
    %v1680 = vpow.pop %v1679
    %v1681 = vsel %vm699, %v1674, 0.0
    %1682 = vadd.xlane.f32.xlu0 %v1681
    %v1683 = vpop.xlane.xlu0 %1682
    %v1684 = vsel %vm703, %v1676, 0.0
    %1685 = vadd.xlane.f32.xlu0 %v1684
    %v1686 = vpop.xlane.xlu0 %1685
    %v1687 = vsel %vm699, %v1678, 0.0
    %1688 = vadd.xlane.f32.xlu0 %v1687
    %v1689 = vpop.xlane.xlu0 %1688
    %v1690 = vsel %vm703, %v1680, 0.0
    %1691 = vadd.xlane.f32.xlu0 %v1690
    %v1692 = vpop.xlane.xlu0 %1691
    %v1693 = vrcp.pop %v1683
    %v1694 = vrcp.pop %v1686
    %v1695 = vrcp.pop %v1689
    %v1696 = vrcp.pop %v1692
    %v1697 = vmul.f32 %v1674, %v1693
    %v1698 = vmul.f32 %v1676, %v1694
    %v1699 = vmul.f32 %v1678, %v1695
    %v1700 = vmul.f32 %v1680, %v1696
    %1701 = vst [vmem:[#allocation1] ss:$9 sm:$0xff] %v479
    %s1702 = scalar_lea.vmem [#allocation1], 1
    %1703 = vst [vmem:[%s1702] ss:$9 sm:$0xff] %v490
    %s1704 = scalar_lea.vmem [#allocation1], 2
    %1705 = vst [vmem:[%s1704] ss:$9 sm:$0xff] %v491
    %s1706 = scalar_lea.vmem [#allocation1], 3
    %1707 = vst [vmem:[%s1706] ss:$9 sm:$0xff] %v492
    %s1708 = scalar_lea.vmem [#allocation1], 4
    %1709 = vst [vmem:[%s1708] ss:$9 sm:$0xff] %v493
    %s1710 = scalar_lea.vmem [#allocation1], 5
    %1711 = vst [vmem:[%s1710] ss:$9 sm:$0xff] %v494
    %s1712 = scalar_lea.vmem [#allocation1], 6
    %1713 = vst [vmem:[%s1712] ss:$9 sm:$0xff] %v495
    %s1714 = scalar_lea.vmem [#allocation1], 7
    %1715 = vst [vmem:[%s1714] ss:$9 sm:$0xff] %v496
    %v1716 = vld [vmem:[#allocation1] sm:$0xff]
    %1717 = vst [vmem:[#allocation1] ss:$9 sm:$0xff] %v482
    %v1718 = vld [vmem:[#allocation1] sm:$0xff]
    %1719 = vrot.lane.b32.xlu0 %v1716, 40
    %v1720 = vpop.permute.xlu0 %1719
    %1721 = vrot.lane.b32.xlu0 %v1718, 40
    %v1722 = vpop.permute.xlu0 %1721
    %v1725 = vsel %vm699, %v1697, 0
    %v1728 = vsel %vm699, %v1698, 0
    %v1730 = vsel %vm774, %v1722, 0
    %1732 = vmatpush.msra.mxu0 0.0
    %1733 = vmatpush.msra.mxu0 0.0
    %1734 = vmatpush.msra.mxu0 0.0
    %1735 = vmatpush.msra.mxu0 0.0
    %1736 = vmatpush.msra.mxu0 0.0
    %1737 = vmatpush.msra.mxu0 0.0
    %1738 = vmatpush.msra.mxu0 0.0
    %1739 = vmatpush.msra.mxu0 0.0
    %1740 = vmatpush.msra.mxu0 0.0
    %1741 = vmatpush.msra.mxu0 0.0
    %1742 = vmatpush.msra.mxu0 0.0
    %1743 = vmatpush.msra.mxu0 0.0
    %1744 = vmatpush.msra.mxu0 0.0
    %1745 = vmatpush.msra.mxu0 0.0
    %1746 = vmatpush.msra.mxu0 %v1730
    %1747 = vmatpush.msra.mxu0 %v1720
    %1748 = vmatmul.f32.gmra.mxu0 %v1725
    %v1749 = vpop.f32.mrf.mxu0
    %v1750 = vadd.f32 0.0, %v1749
    %1751 = vmatmul.f32.gmra.mxu0 %v1728
    %v1752 = vpop.f32.mrf.mxu0
    %v1753 = vadd.f32 0.0, %v1752
    %1754 = vdwg.mxu0
    %1755 = vst [vmem:[#allocation1] ss:$9 sm:$0xff] %v497
    %s1756 = scalar_lea.vmem [#allocation1], 1
    %1757 = vst [vmem:[%s1756] ss:$9 sm:$0xff] %v498
    %s1758 = scalar_lea.vmem [#allocation1], 2
    %1759 = vst [vmem:[%s1758] ss:$9 sm:$0xff] %v499
    %s1760 = scalar_lea.vmem [#allocation1], 3
    %1761 = vst [vmem:[%s1760] ss:$9 sm:$0xff] %v500
    %s1762 = scalar_lea.vmem [#allocation1], 4
    %1763 = vst [vmem:[%s1762] ss:$9 sm:$0xff] %v501
    %s1764 = scalar_lea.vmem [#allocation1], 5
    %1765 = vst [vmem:[%s1764] ss:$9 sm:$0xff] %v502
    %s1766 = scalar_lea.vmem [#allocation1], 6
    %1767 = vst [vmem:[%s1766] ss:$9 sm:$0xff] %v503
    %s1768 = scalar_lea.vmem [#allocation1], 7
    %1769 = vst [vmem:[%s1768] ss:$9 sm:$0xff] %v485
    %v1770 = vld [vmem:[#allocation1] sm:$0xff]
    %1771 = vst [vmem:[#allocation1] ss:$9 sm:$0xff] %v504
    %v1772 = vld [vmem:[#allocation1] sm:$0xff]
    %1773 = vrot.lane.b32.xlu0 %v1770, 40
    %v1774 = vpop.permute.xlu0 %1773
    %1775 = vrot.lane.b32.xlu0 %v1772, 40
    %v1776 = vpop.permute.xlu0 %1775
    %v1779 = vsel %vm699, %v1699, 0
    %v1782 = vsel %vm699, %v1700, 0
    %v1784 = vsel %vm774, %v1776, 0
    %1786 = vmatpush.msra.mxu0 0.0
    %1787 = vmatpush.msra.mxu0 0.0
    %1788 = vmatpush.msra.mxu0 0.0
    %1789 = vmatpush.msra.mxu0 0.0
    %1790 = vmatpush.msra.mxu0 0.0
    %1791 = vmatpush.msra.mxu0 0.0
    %1792 = vmatpush.msra.mxu0 0.0
    %1793 = vmatpush.msra.mxu0 0.0
    %1794 = vmatpush.msra.mxu0 0.0
    %1795 = vmatpush.msra.mxu0 0.0
    %1796 = vmatpush.msra.mxu0 0.0
    %1797 = vmatpush.msra.mxu0 0.0
    %1798 = vmatpush.msra.mxu0 0.0
    %1799 = vmatpush.msra.mxu0 0.0
    %1800 = vmatpush.msra.mxu0 %v1784
    %1801 = vmatpush.msra.mxu0 %v1774
    %1802 = vmatmul.f32.gmra.mxu0 %v1779
    %v1803 = vpop.f32.mrf.mxu0
    %v1804 = vadd.f32 0.0, %v1803
    %1805 = vmatmul.f32.gmra.mxu0 %v1782
    %v1806 = vpop.f32.mrf.mxu0
    %v1807 = vadd.f32 0.0, %v1806
    %1808 = vdwg.mxu0
    %1813 = vrot.lane.b32.xlu0 %v1750, 24
    %v1814 = vpop.permute.xlu0 %1813
    %1815 = vrot.lane.b32.xlu0 %v1753, 24
    %v1816 = vpop.permute.xlu0 %1815
    %1817 = vrot.lane.b32.xlu0 %v1804, 24
    %v1818 = vpop.permute.xlu0 %1817
    %1819 = vrot.lane.b32.xlu0 %v1807, 24
    %v1820 = vpop.permute.xlu0 %1819
    %vm1825 = vcmask 261312
    %1826 = vst.msk [vmem:[#allocation3] sm:$0xff] %vm1825, %v1814
    %vm1827 = vcmask 254144
    %1828 = vst.msk [vmem:[#allocation3 + $0x8] sm:$0x1] %vm1827, %v1816
    %1829 = vst.msk [vmem:[#allocation3 + $0x10] sm:$0xff] %vm1825, %v1818
    %1830 = vst.msk [vmem:[#allocation3 + $0x18] sm:$0x1] %vm1827, %v1820
    %v1831 = vld [vmem:[#allocation3] sm:$0xff]
    %v1832 = vld [vmem:[#allocation3 + $0x8] sm:$0x1]
    %v1833 = vld [vmem:[#allocation3 + $0x10] sm:$0xff]
    %v1834 = vld [vmem:[#allocation3 + $0x18] sm:$0x1]
    %v1839 = vrot.slane %v1831, 1
    %v1840 = vrot.slane %v1831, 2
    %v1841 = vrot.slane %v1831, 3
    %v1842 = vrot.slane %v1831, 4
    %v1843 = vrot.slane %v1831, 5
    %v1844 = vrot.slane %v1831, 6
    %v1845 = vrot.slane %v1831, 7
    %v1846 = vrot.slane %v1833, 1
    %v1847 = vrot.slane %v1833, 2
    %v1848 = vrot.slane %v1833, 3
    %v1849 = vrot.slane %v1833, 4
    %v1850 = vrot.slane %v1833, 5
    %v1851 = vrot.slane %v1833, 6
    %v1852 = vrot.slane %v1833, 7
    %v1854 = vperm.slane %v405, 0
    %1856 = vst [vmem:[#allocation1] ss:$9 sm:$0xff] %v1831
    %s1857 = scalar_lea.vmem [#allocation1], 1
    %1858 = vst [vmem:[%s1857] ss:$9 sm:$0xff] %v1839
    %s1859 = scalar_lea.vmem [#allocation1], 2
    %1860 = vst [vmem:[%s1859] ss:$9 sm:$0xff] %v1840
    %s1861 = scalar_lea.vmem [#allocation1], 3
    %1862 = vst [vmem:[%s1861] ss:$9 sm:$0xff] %v1841
    %s1863 = scalar_lea.vmem [#allocation1], 4
    %1864 = vst [vmem:[%s1863] ss:$9 sm:$0xff] %v1842
    %s1865 = scalar_lea.vmem [#allocation1], 5
    %1866 = vst [vmem:[%s1865] ss:$9 sm:$0xff] %v1843
    %s1867 = scalar_lea.vmem [#allocation1], 6
    %1868 = vst [vmem:[%s1867] ss:$9 sm:$0xff] %v1844
    %s1869 = scalar_lea.vmem [#allocation1], 7
    %1870 = vst [vmem:[%s1869] ss:$9 sm:$0xff] %v1845
    %v1871 = vld [vmem:[#allocation1] sm:$0xff]
    %1872 = vst [vmem:[#allocation1] ss:$9 sm:$0xff] %v1832
    %1873 = vst [vmem:[%s1857] ss:$9 sm:$0xff] %v1833
    %1874 = vst [vmem:[%s1859] ss:$9 sm:$0xff] %v1846
    %1875 = vst [vmem:[%s1861] ss:$9 sm:$0xff] %v1847
    %1876 = vst [vmem:[%s1863] ss:$9 sm:$0xff] %v1848
    %1877 = vst [vmem:[%s1865] ss:$9 sm:$0xff] %v1849
    %1878 = vst [vmem:[%s1867] ss:$9 sm:$0xff] %v1850
    %1879 = vst [vmem:[%s1869] ss:$9 sm:$0xff] %v1851
    %v1880 = vld [vmem:[#allocation1] sm:$0xff]
    %1881 = vst [vmem:[#allocation1] ss:$9 sm:$0xff] %v1852
    %1882 = vst [vmem:[%s1857] ss:$9 sm:$0xff] %v1834
    %v1883 = vld [vmem:[#allocation1] sm:$0xff]
    %v1884 = vsel %vm232, %v1871, 0
    %v1886 = vsel %vm232, %v1880, 0
    %v1888 = vsel %vm232, %v1883, 0
    %1890 = vmatpush.msra.mxu0 0.0
    %1891 = vmatpush.msra.mxu0 0.0
    %1892 = vmatpush.msra.mxu0 0.0
    %1893 = vmatpush.msra.mxu0 0.0
    %1894 = vmatpush.msra.mxu0 0.0
    %1895 = vmatpush.msra.mxu0 0.0
    %1896 = vmatpush.msra.mxu0 0.0
    %1897 = vmatpush.msra.mxu0 0.0
    %1898 = vmatpush.msra.mxu0 0.0
    %1899 = vmatpush.msra.mxu0 0.0
    %1900 = vmatpush.msra.mxu0 0.0
    %1901 = vmatpush.msra.mxu0 0.0
    %1902 = vmatpush.msra.mxu0 %v404
    %1903 = vmatpush.msra.mxu0 %v403
    %1904 = vmatpush.msra.mxu0 %v402
    %1905 = vmatpush.msra.mxu0 %v401
    %1906 = vmatmul.f32.gmra.mxu0 %v1884
    %v1907 = vpop.f32.mrf.mxu0
    %v1908 = vadd.f32 %v1854, %v1907
    %1909 = vmatmul.f32.gmra.mxu0 %v1886
    %v1910 = vpop.f32.mrf.mxu0
    %v1911 = vadd.f32 %v1854, %v1910
    %1912 = vmatmul.f32.gmra.mxu0 %v1888
    %v1913 = vpop.f32.mrf.mxu0
    %v1914 = vadd.f32 %v1854, %v1913
    %1915 = vdwg.mxu0
    %v1919 = vrot.slane %v1908, 1
    %v1920 = vrot.slane %v1908, 2
    %v1921 = vrot.slane %v1908, 3
    %v1922 = vrot.slane %v1908, 4
    %v1923 = vrot.slane %v1908, 5
    %v1924 = vrot.slane %v1908, 6
    %v1925 = vrot.slane %v1908, 7
    %v1926 = vrot.slane %v1911, 1
    %v1927 = vrot.slane %v1911, 2
    %v1928 = vrot.slane %v1911, 3
    %v1929 = vrot.slane %v1911, 4
    %v1930 = vrot.slane %v1911, 5
    %v1931 = vrot.slane %v1911, 6
    %v1932 = vrot.slane %v1911, 7
    %v1933 = vrot.slane %v1914, 1
    %v1949 = vadd.f32 %v360, %v1908
    %v1950 = vadd.f32 %v368, %v1919
    %v1951 = vadd.f32 %v369, %v1920
    %v1952 = vadd.f32 %v370, %v1921
    %v1953 = vadd.f32 %v371, %v1922
    %v1954 = vadd.f32 %v372, %v1923
    %v1955 = vadd.f32 %v373, %v1924
    %v1956 = vadd.f32 %v374, %v1925
    %v1957 = vadd.f32 %v361, %v1911
    %v1958 = vadd.f32 %v362, %v1926
    %v1959 = vadd.f32 %v375, %v1927
    %v1960 = vadd.f32 %v376, %v1928
    %v1961 = vadd.f32 %v377, %v1929
    %v1962 = vadd.f32 %v378, %v1930
    %v1963 = vadd.f32 %v379, %v1931
    %v1964 = vadd.f32 %v380, %v1932
    %v1965 = vadd.f32 %v381, %v1914
    %v1966 = vadd.f32 %v363, %v1933
    %1985 = vst [vmem:[#allocation1] ss:$9 sm:$0xff] %v1949
    %s1986 = scalar_lea.vmem [#allocation1], 1
    %1987 = vst [vmem:[%s1986] ss:$9 sm:$0xff] %v1950
    %s1988 = scalar_lea.vmem [#allocation1], 2
    %1989 = vst [vmem:[%s1988] ss:$9 sm:$0xff] %v1951
    %s1990 = scalar_lea.vmem [#allocation1], 3
    %1991 = vst [vmem:[%s1990] ss:$9 sm:$0xff] %v1952
    %s1992 = scalar_lea.vmem [#allocation1], 4
    %1993 = vst [vmem:[%s1992] ss:$9 sm:$0xff] %v1953
    %s1994 = scalar_lea.vmem [#allocation1], 5
    %1995 = vst [vmem:[%s1994] ss:$9 sm:$0xff] %v1954
    %s1996 = scalar_lea.vmem [#allocation1], 6
    %1997 = vst [vmem:[%s1996] ss:$9 sm:$0xff] %v1955
    %s1998 = scalar_lea.vmem [#allocation1], 7
    %1999 = vst [vmem:[%s1998] ss:$9 sm:$0xff] %v1956
    %v2000 = vld [vmem:[#allocation1] sm:$0xff]
    %2001 = vst [vmem:[#allocation1] ss:$9 sm:$0xff] %v1957
    %2002 = vst [vmem:[%s1986] ss:$9 sm:$0xff] %v1958
    %2003 = vst [vmem:[%s1988] ss:$9 sm:$0xff] %v1959
    %2004 = vst [vmem:[%s1990] ss:$9 sm:$0xff] %v1960
    %2005 = vst [vmem:[%s1992] ss:$9 sm:$0xff] %v1961
    %2006 = vst [vmem:[%s1994] ss:$9 sm:$0xff] %v1962
    %2007 = vst [vmem:[%s1996] ss:$9 sm:$0xff] %v1963
    %2008 = vst [vmem:[%s1998] ss:$9 sm:$0xff] %v1964
    %v2009 = vld [vmem:[#allocation1] sm:$0xff]
    %2010 = vst [vmem:[#allocation1] ss:$9 sm:$0xff] %v1965
    %2011 = vst [vmem:[%s1986] ss:$9 sm:$0xff] %v1966
    %v2012 = vld [vmem:[#allocation1] sm:$0xff]
    %v2016 = vsel %vm232, %v2000, 0.0
    %2017 = vadd.xlane.f32.xlu0 %v2016
    %v2018 = vpop.xlane.xlu0 %2017
    %v2019 = vsel %vm232, %v2009, 0.0
    %2020 = vadd.xlane.f32.xlu0 %v2019
    %v2021 = vpop.xlane.xlu0 %2020
    %vm2022 = vcmask 254976
    %v2023 = vsel %vm2022, %v2012, 0.0
    %2024 = vadd.xlane.f32.xlu0 %v2023
    %v2025 = vpop.xlane.xlu0 %2024
    %v2026 = vrcp.pop 32.0
    %v2027 = vmul.f32 32.0, %v2026
    %v2028 = vsub.f32 1.0, %v2027
    %v2029 = vmul.f32 %v2026, %v2028
    %v2030 = vadd.f32 %v2026, %v2029
    %vm2031 = vweird.f32 %v2026
    %v2032 = vsel %vm2031, %v2026, %v2030
    %v2033 = vmul.f32 %v2018, %v2032
    %v2034 = vmul.f32 %v2021, %v2032
    %v2035 = vmul.f32 %v2025, %v2032
    %v2039 = vperm.slane %v2033, 0
    %v2040 = vperm.slane %v2033, 1
    %v2041 = vperm.slane %v2033, 2
    %v2042 = vperm.slane %v2033, 3
    %v2043 = vperm.slane %v2033, 4
    %v2044 = vperm.slane %v2033, 5
    %v2045 = vperm.slane %v2033, 6
    %v2046 = vperm.slane %v2033, 7
    %v2047 = vperm.slane %v2034, 0
    %v2048 = vperm.slane %v2034, 1
    %v2049 = vperm.slane %v2034, 2
    %v2050 = vperm.slane %v2034, 3
    %v2051 = vperm.slane %v2034, 4
    %v2052 = vperm.slane %v2034, 5
    %v2053 = vperm.slane %v2034, 6
    %v2054 = vperm.slane %v2034, 7
    %v2055 = vperm.slane %v2035, 0
    %v2056 = vperm.slane %v2035, 1
    %v2075 = vsub.f32 %v1949, %v2039
    %v2076 = vsub.f32 %v1950, %v2040
    %v2077 = vsub.f32 %v1951, %v2041
    %v2078 = vsub.f32 %v1952, %v2042
    %v2079 = vsub.f32 %v1953, %v2043
    %v2080 = vsub.f32 %v1954, %v2044
    %v2081 = vsub.f32 %v1955, %v2045
    %v2082 = vsub.f32 %v1956, %v2046
    %v2083 = vsub.f32 %v1957, %v2047
    %v2084 = vsub.f32 %v1958, %v2048
    %v2085 = vsub.f32 %v1959, %v2049
    %v2086 = vsub.f32 %v1960, %v2050
    %v2087 = vsub.f32 %v1961, %v2051
    %v2088 = vsub.f32 %v1962, %v2052
    %v2089 = vsub.f32 %v1963, %v2053
    %v2090 = vsub.f32 %v1964, %v2054
    %v2091 = vsub.f32 %v1965, %v2055
    %v2092 = vsub.f32 %v1966, %v2056
    %v2093 = vmul.f32 %v2075, %v2075
    %v2094 = vmul.f32 %v2076, %v2076
    %v2095 = vmul.f32 %v2077, %v2077
    %v2096 = vmul.f32 %v2078, %v2078
    %v2097 = vmul.f32 %v2079, %v2079
    %v2098 = vmul.f32 %v2080, %v2080
    %v2099 = vmul.f32 %v2081, %v2081
    %v2100 = vmul.f32 %v2082, %v2082
    %v2101 = vmul.f32 %v2083, %v2083
    %v2102 = vmul.f32 %v2084, %v2084
    %v2103 = vmul.f32 %v2085, %v2085
    %v2104 = vmul.f32 %v2086, %v2086
    %v2105 = vmul.f32 %v2087, %v2087
    %v2106 = vmul.f32 %v2088, %v2088
    %v2107 = vmul.f32 %v2089, %v2089
    %v2108 = vmul.f32 %v2090, %v2090
    %v2109 = vmul.f32 %v2091, %v2091
    %v2110 = vmul.f32 %v2092, %v2092
    %2129 = vst [vmem:[#allocation1] ss:$9 sm:$0xff] %v2093
    %s2130 = scalar_lea.vmem [#allocation1], 1
    %2131 = vst [vmem:[%s2130] ss:$9 sm:$0xff] %v2094
    %s2132 = scalar_lea.vmem [#allocation1], 2
    %2133 = vst [vmem:[%s2132] ss:$9 sm:$0xff] %v2095
    %s2134 = scalar_lea.vmem [#allocation1], 3
    %2135 = vst [vmem:[%s2134] ss:$9 sm:$0xff] %v2096
    %s2136 = scalar_lea.vmem [#allocation1], 4
    %2137 = vst [vmem:[%s2136] ss:$9 sm:$0xff] %v2097
    %s2138 = scalar_lea.vmem [#allocation1], 5
    %2139 = vst [vmem:[%s2138] ss:$9 sm:$0xff] %v2098
    %s2140 = scalar_lea.vmem [#allocation1], 6
    %2141 = vst [vmem:[%s2140] ss:$9 sm:$0xff] %v2099
    %s2142 = scalar_lea.vmem [#allocation1], 7
    %2143 = vst [vmem:[%s2142] ss:$9 sm:$0xff] %v2100
    %v2144 = vld [vmem:[#allocation1] sm:$0xff]
    %2145 = vst [vmem:[#allocation1] ss:$9 sm:$0xff] %v2101
    %2146 = vst [vmem:[%s2130] ss:$9 sm:$0xff] %v2102
    %2147 = vst [vmem:[%s2132] ss:$9 sm:$0xff] %v2103
    %2148 = vst [vmem:[%s2134] ss:$9 sm:$0xff] %v2104
    %2149 = vst [vmem:[%s2136] ss:$9 sm:$0xff] %v2105
    %2150 = vst [vmem:[%s2138] ss:$9 sm:$0xff] %v2106
    %2151 = vst [vmem:[%s2140] ss:$9 sm:$0xff] %v2107
    %2152 = vst [vmem:[%s2142] ss:$9 sm:$0xff] %v2108
    %v2153 = vld [vmem:[#allocation1] sm:$0xff]
    %2154 = vst [vmem:[#allocation1] ss:$9 sm:$0xff] %v2109
    %2155 = vst [vmem:[%s2130] ss:$9 sm:$0xff] %v2110
    %v2156 = vld [vmem:[#allocation1] sm:$0xff]
    %v2160 = vsel %vm232, %v2144, 0.0
    %2161 = vadd.xlane.f32.xlu0 %v2160
    %v2162 = vpop.xlane.xlu0 %2161
    %v2163 = vsel %vm232, %v2153, 0.0
    %2164 = vadd.xlane.f32.xlu0 %v2163
    %v2165 = vpop.xlane.xlu0 %2164
    %v2166 = vsel %vm2022, %v2156, 0.0
    %2167 = vadd.xlane.f32.xlu0 %v2166
    %v2168 = vpop.xlane.xlu0 %2167
    %v2169 = vmul.f32 %v2162, %v2032
    %v2170 = vmul.f32 %v2165, %v2032
    %v2171 = vmul.f32 %v2168, %v2032
    %v2172 = vadd.f32 %v2169, 1e-05
    %v2173 = vadd.f32 %v2170, 1e-05
    %v2174 = vadd.f32 %v2171, 1e-05
    %v2175 = vrsqrt.pop %v2172
    %v2176 = vmul.f32 %v2175, %v2172
    %v2177 = vmul.f32 %v2176, %v2175
    %v2178 = vmul.f32 0.5, %v2177
    %v2179 = vsub.f32 1.5, %v2178
    %v2180 = vmul.f32 %v2175, %v2179
    %vm2181 = vweird.f32 %v2172
    %vm2182 = vweird.f32 %v2175
    %vm2183 = vmor %vm2181, %vm2182
    %v2184 = vsel %vm2183, %v2175, %v2180
    %v2185 = vrsqrt.pop %v2173
    %v2186 = vmul.f32 %v2185, %v2173
    %v2187 = vmul.f32 %v2186, %v2185
    %v2188 = vmul.f32 0.5, %v2187
    %v2189 = vsub.f32 1.5, %v2188
    %v2190 = vmul.f32 %v2185, %v2189
    %vm2191 = vweird.f32 %v2173
    %vm2192 = vweird.f32 %v2185
    %vm2193 = vmor %vm2191, %vm2192
    %v2194 = vsel %vm2193, %v2185, %v2190
    %v2195 = vrsqrt.pop %v2174
    %v2196 = vmul.f32 %v2195, %v2174
    %v2197 = vmul.f32 %v2196, %v2195
    %v2198 = vmul.f32 0.5, %v2197
    %v2199 = vsub.f32 1.5, %v2198
    %v2200 = vmul.f32 %v2195, %v2199
    %vm2201 = vweird.f32 %v2174
    %vm2202 = vweird.f32 %v2195
    %vm2203 = vmor %vm2201, %vm2202
    %v2204 = vsel %vm2203, %v2195, %v2200
    %v2208 = vperm.slane %v2184, 0
    %v2209 = vperm.slane %v2184, 1
    %v2210 = vperm.slane %v2184, 2
    %v2211 = vperm.slane %v2184, 3
    %v2212 = vperm.slane %v2184, 4
    %v2213 = vperm.slane %v2184, 5
    %v2214 = vperm.slane %v2184, 6
    %v2215 = vperm.slane %v2184, 7
    %v2216 = vperm.slane %v2194, 0
    %v2217 = vperm.slane %v2194, 1
    %v2218 = vperm.slane %v2194, 2
    %v2219 = vperm.slane %v2194, 3
    %v2220 = vperm.slane %v2194, 4
    %v2221 = vperm.slane %v2194, 5
    %v2222 = vperm.slane %v2194, 6
    %v2223 = vperm.slane %v2194, 7
    %v2224 = vperm.slane %v2204, 0
    %v2225 = vperm.slane %v2204, 1
    %v2244 = vmul.f32 %v2075, %v2208
    %v2245 = vmul.f32 %v2076, %v2209
    %v2246 = vmul.f32 %v2077, %v2210
    %v2247 = vmul.f32 %v2078, %v2211
    %v2248 = vmul.f32 %v2079, %v2212
    %v2249 = vmul.f32 %v2080, %v2213
    %v2250 = vmul.f32 %v2081, %v2214
    %v2251 = vmul.f32 %v2082, %v2215
    %v2252 = vmul.f32 %v2083, %v2216
    %v2253 = vmul.f32 %v2084, %v2217
    %v2254 = vmul.f32 %v2085, %v2218
    %v2255 = vmul.f32 %v2086, %v2219
    %v2256 = vmul.f32 %v2087, %v2220
    %v2257 = vmul.f32 %v2088, %v2221
    %v2258 = vmul.f32 %v2089, %v2222
    %v2259 = vmul.f32 %v2090, %v2223
    %v2260 = vmul.f32 %v2091, %v2224
    %v2261 = vmul.f32 %v2092, %v2225
    %v2263 = vperm.slane %v406, 0
    %v2265 = vrot.slane %v2263, 1
    %v2266 = vrot.slane %v2263, 2
    %v2267 = vrot.slane %v2263, 3
    %v2268 = vrot.slane %v2263, 4
    %v2269 = vrot.slane %v2263, 5
    %v2270 = vrot.slane %v2263, 6
    %v2271 = vrot.slane %v2263, 7
    %v2279 = vmul.f32 %v2244, %v2263
    %v2280 = vmul.f32 %v2245, %v2265
    %v2281 = vmul.f32 %v2246, %v2266
    %v2282 = vmul.f32 %v2247, %v2267
    %v2283 = vmul.f32 %v2248, %v2268
    %v2284 = vmul.f32 %v2249, %v2269
    %v2285 = vmul.f32 %v2250, %v2270
    %v2286 = vmul.f32 %v2251, %v2271
    %v2287 = vmul.f32 %v2252, %v2263
    %v2288 = vmul.f32 %v2253, %v2265
    %v2289 = vmul.f32 %v2254, %v2266
    %v2290 = vmul.f32 %v2255, %v2267
    %v2291 = vmul.f32 %v2256, %v2268
    %v2292 = vmul.f32 %v2257, %v2269
    %v2293 = vmul.f32 %v2258, %v2270
    %v2294 = vmul.f32 %v2259, %v2271
    %v2295 = vmul.f32 %v2260, %v2263
    %v2296 = vmul.f32 %v2261, %v2265
    %v2298 = vperm.slane %v407, 0
    %v2300 = vrot.slane %v2298, 1
    %v2301 = vrot.slane %v2298, 2
    %v2302 = vrot.slane %v2298, 3
    %v2303 = vrot.slane %v2298, 4
    %v2304 = vrot.slane %v2298, 5
    %v2305 = vrot.slane %v2298, 6
    %v2306 = vrot.slane %v2298, 7
    %v2314 = vadd.f32 %v2279, %v2298
    %v2315 = vadd.f32 %v2280, %v2300
    %v2316 = vadd.f32 %v2281, %v2301
    %v2317 = vadd.f32 %v2282, %v2302
    %v2318 = vadd.f32 %v2283, %v2303
    %v2319 = vadd.f32 %v2284, %v2304
    %v2320 = vadd.f32 %v2285, %v2305
    %v2321 = vadd.f32 %v2286, %v2306
    %v2322 = vadd.f32 %v2287, %v2298
    %v2323 = vadd.f32 %v2288, %v2300
    %v2324 = vadd.f32 %v2289, %v2301
    %v2325 = vadd.f32 %v2290, %v2302
    %v2326 = vadd.f32 %v2291, %v2303
    %v2327 = vadd.f32 %v2292, %v2304
    %v2328 = vadd.f32 %v2293, %v2305
    %v2329 = vadd.f32 %v2294, %v2306
    %v2330 = vadd.f32 %v2295, %v2298
    %v2331 = vadd.f32 %v2296, %v2300
    %v2333 = vperm.slane %v412, 0
    %2353 = vst [vmem:[#allocation1] ss:$9 sm:$0xff] %v2314
    %s2354 = scalar_lea.vmem [#allocation1], 1
    %2355 = vst [vmem:[%s2354] ss:$9 sm:$0xff] %v2315
    %s2356 = scalar_lea.vmem [#allocation1], 2
    %2357 = vst [vmem:[%s2356] ss:$9 sm:$0xff] %v2316
    %s2358 = scalar_lea.vmem [#allocation1], 3
    %2359 = vst [vmem:[%s2358] ss:$9 sm:$0xff] %v2317
    %s2360 = scalar_lea.vmem [#allocation1], 4
    %2361 = vst [vmem:[%s2360] ss:$9 sm:$0xff] %v2318
    %s2362 = scalar_lea.vmem [#allocation1], 5
    %2363 = vst [vmem:[%s2362] ss:$9 sm:$0xff] %v2319
    %s2364 = scalar_lea.vmem [#allocation1], 6
    %2365 = vst [vmem:[%s2364] ss:$9 sm:$0xff] %v2320
    %s2366 = scalar_lea.vmem [#allocation1], 7
    %2367 = vst [vmem:[%s2366] ss:$9 sm:$0xff] %v2321
    %v2368 = vld [vmem:[#allocation1] sm:$0xff]
    %2369 = vst [vmem:[#allocation1] ss:$9 sm:$0xff] %v2322
    %2370 = vst [vmem:[%s2354] ss:$9 sm:$0xff] %v2323
    %2371 = vst [vmem:[%s2356] ss:$9 sm:$0xff] %v2324
    %2372 = vst [vmem:[%s2358] ss:$9 sm:$0xff] %v2325
    %2373 = vst [vmem:[%s2360] ss:$9 sm:$0xff] %v2326
    %2374 = vst [vmem:[%s2362] ss:$9 sm:$0xff] %v2327
    %2375 = vst [vmem:[%s2364] ss:$9 sm:$0xff] %v2328
    %2376 = vst [vmem:[%s2366] ss:$9 sm:$0xff] %v2329
    %v2377 = vld [vmem:[#allocation1] sm:$0xff]
    %2378 = vst [vmem:[#allocation1] ss:$9 sm:$0xff] %v2330
    %2379 = vst [vmem:[%s2354] ss:$9 sm:$0xff] %v2331
    %v2380 = vld [vmem:[#allocation1] sm:$0xff]
    %v2381 = vsel %vm232, %v2368, 0
    %v2383 = vsel %vm232, %v2377, 0
    %v2385 = vsel %vm232, %v2380, 0
    %2387 = vmatpush.msra.mxu0 0.0
    %2388 = vmatpush.msra.mxu0 0.0
    %2389 = vmatpush.msra.mxu0 0.0
    %2390 = vmatpush.msra.mxu0 0.0
    %2391 = vmatpush.msra.mxu0 0.0
    %2392 = vmatpush.msra.mxu0 0.0
    %2393 = vmatpush.msra.mxu0 0.0
    %2394 = vmatpush.msra.mxu0 0.0
    %2395 = vmatpush.msra.mxu0 0.0
    %2396 = vmatpush.msra.mxu0 0.0
    %2397 = vmatpush.msra.mxu0 0.0
    %2398 = vmatpush.msra.mxu0 0.0
    %2399 = vmatpush.msra.mxu0 %v411
    %2400 = vmatpush.msra.mxu0 %v410
    %2401 = vmatpush.msra.mxu0 %v409
    %2402 = vmatpush.msra.mxu0 %v408
    %2403 = vmatmul.f32.gmra.mxu0 %v2381
    %v2404 = vpop.f32.mrf.mxu0
    %v2405 = vadd.f32 %v2333, %v2404
    %2406 = vmatmul.f32.gmra.mxu0 %v2383
    %v2407 = vpop.f32.mrf.mxu0
    %v2408 = vadd.f32 %v2333, %v2407
    %2409 = vmatmul.f32.gmra.mxu0 %v2385
    %v2410 = vpop.f32.mrf.mxu0
    %v2411 = vadd.f32 %v2333, %v2410
    %2412 = vdwg.mxu0
    %v2413 = vmul.f32 %v2405, 0.5
    %v2414 = vmul.f32 %v2408, 0.5
    %v2415 = vmul.f32 %v2411, 0.5
    %v2416 = vmul.f32 %v2405, 0.044715
    %v2417 = vmul.f32 %v2408, 0.044715
    %v2418 = vmul.f32 %v2411, 0.044715
    %v2419 = vmul.f32 %v2416, %v2405
    %v2420 = vmul.f32 %v2417, %v2408
    %v2421 = vmul.f32 %v2418, %v2411
    %v2422 = vmul.f32 %v2419, %v2405
    %v2423 = vmul.f32 %v2420, %v2408
    %v2424 = vmul.f32 %v2421, %v2411
    %v2425 = vadd.f32 %v2405, %v2422
    %v2426 = vadd.f32 %v2408, %v2423
    %v2427 = vadd.f32 %v2411, %v2424
    %v2428 = vmul.f32 %v2425, 0.7978846
    %v2429 = vmul.f32 %v2426, 0.7978846
    %v2430 = vmul.f32 %v2427, 0.7978846
    %v2431 = vtanh.pop %v2428
    %v2432 = vtanh.pop %v2429
    %v2433 = vtanh.pop %v2430
    %v2434 = vadd.f32 %v2431, 1.0
    %v2435 = vadd.f32 %v2432, 1.0
    %v2436 = vadd.f32 %v2433, 1.0
    %v2437 = vmul.f32 %v2413, %v2434
    %v2438 = vmul.f32 %v2414, %v2435
    %v2439 = vmul.f32 %v2415, %v2436
    %v2441 = vperm.slane %v421, 0
    %vm2443 = vcmask 523264
    %v2445 = vsel %vm2443, %v2437, 0
    %v2448 = vsel %vm2443, %v2438, 0
    %v2451 = vsel %vm2443, %v2439, 0
    %2453 = vmatpush.msra.mxu0 0.0
    %2454 = vmatpush.msra.mxu0 0.0
    %2455 = vmatpush.msra.mxu0 0.0
    %2456 = vmatpush.msra.mxu0 0.0
    %2457 = vmatpush.msra.mxu0 0.0
    %2458 = vmatpush.msra.mxu0 0.0
    %2459 = vmatpush.msra.mxu0 0.0
    %2460 = vmatpush.msra.mxu0 0.0
    %2461 = vmatpush.msra.mxu0 %v420
    %2462 = vmatpush.msra.mxu0 %v419
    %2463 = vmatpush.msra.mxu0 %v418
    %2464 = vmatpush.msra.mxu0 %v417
    %2465 = vmatpush.msra.mxu0 %v416
    %2466 = vmatpush.msra.mxu0 %v415
    %2467 = vmatpush.msra.mxu0 %v414
    %2468 = vmatpush.msra.mxu0 %v413
    %2469 = vmatmul.f32.gmra.mxu0 %v2445
    %v2470 = vpop.f32.mrf.mxu0
    %v2471 = vadd.f32 %v2441, %v2470
    %2472 = vmatmul.f32.gmra.mxu0 %v2448
    %v2473 = vpop.f32.mrf.mxu0
    %v2474 = vadd.f32 %v2441, %v2473
    %2475 = vmatmul.f32.gmra.mxu0 %v2451
    %v2476 = vpop.f32.mrf.mxu0
    %v2477 = vadd.f32 %v2441, %v2476
    %2478 = vdwg.mxu0
    %v2482 = vrot.slane %v2471, 1
    %v2483 = vrot.slane %v2471, 2
    %v2484 = vrot.slane %v2471, 3
    %v2485 = vrot.slane %v2471, 4
    %v2486 = vrot.slane %v2471, 5
    %v2487 = vrot.slane %v2471, 6
    %v2488 = vrot.slane %v2471, 7
    %v2489 = vrot.slane %v2474, 1
    %v2490 = vrot.slane %v2474, 2
    %v2491 = vrot.slane %v2474, 3
    %v2492 = vrot.slane %v2474, 4
    %v2493 = vrot.slane %v2474, 5
    %v2494 = vrot.slane %v2474, 6
    %v2495 = vrot.slane %v2474, 7
    %v2496 = vrot.slane %v2477, 1
    %v2512 = vadd.f32 %v2314, %v2471
    %v2513 = vadd.f32 %v2315, %v2482
    %v2514 = vadd.f32 %v2316, %v2483
    %v2515 = vadd.f32 %v2317, %v2484
    %v2516 = vadd.f32 %v2318, %v2485
    %v2517 = vadd.f32 %v2319, %v2486
    %v2518 = vadd.f32 %v2320, %v2487
    %v2519 = vadd.f32 %v2321, %v2488
    %v2520 = vadd.f32 %v2322, %v2474
    %v2521 = vadd.f32 %v2323, %v2489
    %v2522 = vadd.f32 %v2324, %v2490
    %v2523 = vadd.f32 %v2325, %v2491
    %v2524 = vadd.f32 %v2326, %v2492
    %v2525 = vadd.f32 %v2327, %v2493
    %v2526 = vadd.f32 %v2328, %v2494
    %v2527 = vadd.f32 %v2329, %v2495
    %v2528 = vadd.f32 %v2330, %v2477
    %v2529 = vadd.f32 %v2331, %v2496
    %2548 = vst [vmem:[#allocation1] ss:$9 sm:$0xff] %v2512
    %s2549 = scalar_lea.vmem [#allocation1], 1
    %2550 = vst [vmem:[%s2549] ss:$9 sm:$0xff] %v2513
    %s2551 = scalar_lea.vmem [#allocation1], 2
    %2552 = vst [vmem:[%s2551] ss:$9 sm:$0xff] %v2514
    %s2553 = scalar_lea.vmem [#allocation1], 3
    %2554 = vst [vmem:[%s2553] ss:$9 sm:$0xff] %v2515
    %s2555 = scalar_lea.vmem [#allocation1], 4
    %2556 = vst [vmem:[%s2555] ss:$9 sm:$0xff] %v2516
    %s2557 = scalar_lea.vmem [#allocation1], 5
    %2558 = vst [vmem:[%s2557] ss:$9 sm:$0xff] %v2517
    %s2559 = scalar_lea.vmem [#allocation1], 6
    %2560 = vst [vmem:[%s2559] ss:$9 sm:$0xff] %v2518
    %s2561 = scalar_lea.vmem [#allocation1], 7
    %2562 = vst [vmem:[%s2561] ss:$9 sm:$0xff] %v2519
    %v2563 = vld [vmem:[#allocation1] sm:$0xff]
    %2564 = vst [vmem:[#allocation1] ss:$9 sm:$0xff] %v2520
    %2565 = vst [vmem:[%s2549] ss:$9 sm:$0xff] %v2521
    %2566 = vst [vmem:[%s2551] ss:$9 sm:$0xff] %v2522
    %2567 = vst [vmem:[%s2553] ss:$9 sm:$0xff] %v2523
    %2568 = vst [vmem:[%s2555] ss:$9 sm:$0xff] %v2524
    %2569 = vst [vmem:[%s2557] ss:$9 sm:$0xff] %v2525
    %2570 = vst [vmem:[%s2559] ss:$9 sm:$0xff] %v2526
    %2571 = vst [vmem:[%s2561] ss:$9 sm:$0xff] %v2527
    %v2572 = vld [vmem:[#allocation1] sm:$0xff]
    %2573 = vst [vmem:[#allocation1] ss:$9 sm:$0xff] %v2528
    %2574 = vst [vmem:[%s2549] ss:$9 sm:$0xff] %v2529
    %v2575 = vld [vmem:[#allocation1] sm:$0xff]
    %v2579 = vsel %vm232, %v2563, 0.0
    %2580 = vadd.xlane.f32.xlu0 %v2579
    %v2581 = vpop.xlane.xlu0 %2580
    %v2582 = vsel %vm232, %v2572, 0.0
    %2583 = vadd.xlane.f32.xlu0 %v2582
    %v2584 = vpop.xlane.xlu0 %2583
    %v2585 = vsel %vm2022, %v2575, 0.0
    %2586 = vadd.xlane.f32.xlu0 %v2585
    %v2587 = vpop.xlane.xlu0 %2586
    %v2588 = vmul.f32 %v2581, %v2032
    %v2589 = vmul.f32 %v2584, %v2032
    %v2590 = vmul.f32 %v2587, %v2032
    %v2594 = vperm.slane %v2588, 0
    %v2595 = vperm.slane %v2588, 1
    %v2596 = vperm.slane %v2588, 2
    %v2597 = vperm.slane %v2588, 3
    %v2598 = vperm.slane %v2588, 4
    %v2599 = vperm.slane %v2588, 5
    %v2600 = vperm.slane %v2588, 6
    %v2601 = vperm.slane %v2588, 7
    %v2602 = vperm.slane %v2589, 0
    %v2603 = vperm.slane %v2589, 1
    %v2604 = vperm.slane %v2589, 2
    %v2605 = vperm.slane %v2589, 3
    %v2606 = vperm.slane %v2589, 4
    %v2607 = vperm.slane %v2589, 5
    %v2608 = vperm.slane %v2589, 6
    %v2609 = vperm.slane %v2589, 7
    %v2610 = vperm.slane %v2590, 0
    %v2611 = vperm.slane %v2590, 1
    %v2630 = vsub.f32 %v2512, %v2594
    %v2631 = vsub.f32 %v2513, %v2595
    %v2632 = vsub.f32 %v2514, %v2596
    %v2633 = vsub.f32 %v2515, %v2597
    %v2634 = vsub.f32 %v2516, %v2598
    %v2635 = vsub.f32 %v2517, %v2599
    %v2636 = vsub.f32 %v2518, %v2600
    %v2637 = vsub.f32 %v2519, %v2601
    %v2638 = vsub.f32 %v2520, %v2602
    %v2639 = vsub.f32 %v2521, %v2603
    %v2640 = vsub.f32 %v2522, %v2604
    %v2641 = vsub.f32 %v2523, %v2605
    %v2642 = vsub.f32 %v2524, %v2606
    %v2643 = vsub.f32 %v2525, %v2607
    %v2644 = vsub.f32 %v2526, %v2608
    %v2645 = vsub.f32 %v2527, %v2609
    %v2646 = vsub.f32 %v2528, %v2610
    %v2647 = vsub.f32 %v2529, %v2611
    %v2648 = vmul.f32 %v2630, %v2630
    %v2649 = vmul.f32 %v2631, %v2631
    %v2650 = vmul.f32 %v2632, %v2632
    %v2651 = vmul.f32 %v2633, %v2633
    %v2652 = vmul.f32 %v2634, %v2634
    %v2653 = vmul.f32 %v2635, %v2635
    %v2654 = vmul.f32 %v2636, %v2636
    %v2655 = vmul.f32 %v2637, %v2637
    %v2656 = vmul.f32 %v2638, %v2638
    %v2657 = vmul.f32 %v2639, %v2639
    %v2658 = vmul.f32 %v2640, %v2640
    %v2659 = vmul.f32 %v2641, %v2641
    %v2660 = vmul.f32 %v2642, %v2642
    %v2661 = vmul.f32 %v2643, %v2643
    %v2662 = vmul.f32 %v2644, %v2644
    %v2663 = vmul.f32 %v2645, %v2645
    %v2664 = vmul.f32 %v2646, %v2646
    %v2665 = vmul.f32 %v2647, %v2647
    %2684 = vst [vmem:[#allocation1] ss:$9 sm:$0xff] %v2648
    %s2685 = scalar_lea.vmem [#allocation1], 1
    %2686 = vst [vmem:[%s2685] ss:$9 sm:$0xff] %v2649
    %s2687 = scalar_lea.vmem [#allocation1], 2
    %2688 = vst [vmem:[%s2687] ss:$9 sm:$0xff] %v2650
    %s2689 = scalar_lea.vmem [#allocation1], 3
    %2690 = vst [vmem:[%s2689] ss:$9 sm:$0xff] %v2651
    %s2691 = scalar_lea.vmem [#allocation1], 4
    %2692 = vst [vmem:[%s2691] ss:$9 sm:$0xff] %v2652
    %s2693 = scalar_lea.vmem [#allocation1], 5
    %2694 = vst [vmem:[%s2693] ss:$9 sm:$0xff] %v2653
    %s2695 = scalar_lea.vmem [#allocation1], 6
    %2696 = vst [vmem:[%s2695] ss:$9 sm:$0xff] %v2654
    %s2697 = scalar_lea.vmem [#allocation1], 7
    %2698 = vst [vmem:[%s2697] ss:$9 sm:$0xff] %v2655
    %v2699 = vld [vmem:[#allocation1] sm:$0xff]
    %2700 = vst [vmem:[#allocation1] ss:$9 sm:$0xff] %v2656
    %2701 = vst [vmem:[%s2685] ss:$9 sm:$0xff] %v2657
    %2702 = vst [vmem:[%s2687] ss:$9 sm:$0xff] %v2658
    %2703 = vst [vmem:[%s2689] ss:$9 sm:$0xff] %v2659
    %2704 = vst [vmem:[%s2691] ss:$9 sm:$0xff] %v2660
    %2705 = vst [vmem:[%s2693] ss:$9 sm:$0xff] %v2661
    %2706 = vst [vmem:[%s2695] ss:$9 sm:$0xff] %v2662
    %2707 = vst [vmem:[%s2697] ss:$9 sm:$0xff] %v2663
    %v2708 = vld [vmem:[#allocation1] sm:$0xff]
    %2709 = vst [vmem:[#allocation1] ss:$9 sm:$0xff] %v2664
    %2710 = vst [vmem:[%s2685] ss:$9 sm:$0xff] %v2665
    %v2711 = vld [vmem:[#allocation1] sm:$0xff]
    %v2715 = vsel %vm232, %v2699, 0.0
    %2716 = vadd.xlane.f32.xlu0 %v2715
    %v2717 = vpop.xlane.xlu0 %2716
    %v2718 = vsel %vm232, %v2708, 0.0
    %2719 = vadd.xlane.f32.xlu0 %v2718
    %v2720 = vpop.xlane.xlu0 %2719
    %v2721 = vsel %vm2022, %v2711, 0.0
    %2722 = vadd.xlane.f32.xlu0 %v2721
    %v2723 = vpop.xlane.xlu0 %2722
    %v2724 = vmul.f32 %v2717, %v2032
    %v2725 = vmul.f32 %v2720, %v2032
    %v2726 = vmul.f32 %v2723, %v2032
    %v2727 = vadd.f32 %v2724, 1e-05
    %v2728 = vadd.f32 %v2725, 1e-05
    %v2729 = vadd.f32 %v2726, 1e-05
    %v2730 = vrsqrt.pop %v2727
    %v2731 = vmul.f32 %v2730, %v2727
    %v2732 = vmul.f32 %v2731, %v2730
    %v2733 = vmul.f32 0.5, %v2732
    %v2734 = vsub.f32 1.5, %v2733
    %v2735 = vmul.f32 %v2730, %v2734
    %vm2736 = vweird.f32 %v2727
    %vm2737 = vweird.f32 %v2730
    %vm2738 = vmor %vm2736, %vm2737
    %v2739 = vsel %vm2738, %v2730, %v2735
    %v2740 = vrsqrt.pop %v2728
    %v2741 = vmul.f32 %v2740, %v2728
    %v2742 = vmul.f32 %v2741, %v2740
    %v2743 = vmul.f32 0.5, %v2742
    %v2744 = vsub.f32 1.5, %v2743
    %v2745 = vmul.f32 %v2740, %v2744
    %vm2746 = vweird.f32 %v2728
    %vm2747 = vweird.f32 %v2740
    %vm2748 = vmor %vm2746, %vm2747
    %v2749 = vsel %vm2748, %v2740, %v2745
    %v2750 = vrsqrt.pop %v2729
    %v2751 = vmul.f32 %v2750, %v2729
    %v2752 = vmul.f32 %v2751, %v2750
    %v2753 = vmul.f32 0.5, %v2752
    %v2754 = vsub.f32 1.5, %v2753
    %v2755 = vmul.f32 %v2750, %v2754
    %vm2756 = vweird.f32 %v2729
    %vm2757 = vweird.f32 %v2750
    %vm2758 = vmor %vm2756, %vm2757
    %v2759 = vsel %vm2758, %v2750, %v2755
    %v2763 = vperm.slane %v2739, 0
    %v2764 = vperm.slane %v2739, 1
    %v2765 = vperm.slane %v2739, 2
    %v2766 = vperm.slane %v2739, 3
    %v2767 = vperm.slane %v2739, 4
    %v2768 = vperm.slane %v2739, 5
    %v2769 = vperm.slane %v2739, 6
    %v2770 = vperm.slane %v2739, 7
    %v2771 = vperm.slane %v2749, 0
    %v2772 = vperm.slane %v2749, 1
    %v2773 = vperm.slane %v2749, 2
    %v2774 = vperm.slane %v2749, 3
    %v2775 = vperm.slane %v2749, 4
    %v2776 = vperm.slane %v2749, 5
    %v2777 = vperm.slane %v2749, 6
    %v2778 = vperm.slane %v2749, 7
    %v2779 = vperm.slane %v2759, 0
    %v2780 = vperm.slane %v2759, 1
    %v2799 = vmul.f32 %v2630, %v2763
    %v2800 = vmul.f32 %v2631, %v2764
    %v2801 = vmul.f32 %v2632, %v2765
    %v2802 = vmul.f32 %v2633, %v2766
    %v2803 = vmul.f32 %v2634, %v2767
    %v2804 = vmul.f32 %v2635, %v2768
    %v2805 = vmul.f32 %v2636, %v2769
    %v2806 = vmul.f32 %v2637, %v2770
    %v2807 = vmul.f32 %v2638, %v2771
    %v2808 = vmul.f32 %v2639, %v2772
    %v2809 = vmul.f32 %v2640, %v2773
    %v2810 = vmul.f32 %v2641, %v2774
    %v2811 = vmul.f32 %v2642, %v2775
    %v2812 = vmul.f32 %v2643, %v2776
    %v2813 = vmul.f32 %v2644, %v2777
    %v2814 = vmul.f32 %v2645, %v2778
    %v2815 = vmul.f32 %v2646, %v2779
    %v2816 = vmul.f32 %v2647, %v2780
    %v2818 = vperm.slane %v422, 0
    %v2820 = vrot.slane %v2818, 1
    %v2821 = vrot.slane %v2818, 2
    %v2822 = vrot.slane %v2818, 3
    %v2823 = vrot.slane %v2818, 4
    %v2824 = vrot.slane %v2818, 5
    %v2825 = vrot.slane %v2818, 6
    %v2826 = vrot.slane %v2818, 7
    %v2834 = vmul.f32 %v2799, %v2818
    %v2835 = vmul.f32 %v2800, %v2820
    %v2836 = vmul.f32 %v2801, %v2821
    %v2837 = vmul.f32 %v2802, %v2822
    %v2838 = vmul.f32 %v2803, %v2823
    %v2839 = vmul.f32 %v2804, %v2824
    %v2840 = vmul.f32 %v2805, %v2825
    %v2841 = vmul.f32 %v2806, %v2826
    %v2842 = vmul.f32 %v2807, %v2818
    %v2843 = vmul.f32 %v2808, %v2820
    %v2844 = vmul.f32 %v2809, %v2821
    %v2845 = vmul.f32 %v2810, %v2822
    %v2846 = vmul.f32 %v2811, %v2823
    %v2847 = vmul.f32 %v2812, %v2824
    %v2848 = vmul.f32 %v2813, %v2825
    %v2849 = vmul.f32 %v2814, %v2826
    %v2850 = vmul.f32 %v2815, %v2818
    %v2851 = vmul.f32 %v2816, %v2820
    %v2853 = vperm.slane %v423, 0
    %v2855 = vrot.slane %v2853, 1
    %v2856 = vrot.slane %v2853, 2
    %v2857 = vrot.slane %v2853, 3
    %v2858 = vrot.slane %v2853, 4
    %v2859 = vrot.slane %v2853, 5
    %v2860 = vrot.slane %v2853, 6
    %v2861 = vrot.slane %v2853, 7
    %v2869 = vadd.f32 %v2834, %v2853
    %v2870 = vadd.f32 %v2835, %v2855
    %v2871 = vadd.f32 %v2836, %v2856
    %v2872 = vadd.f32 %v2837, %v2857
    %v2873 = vadd.f32 %v2838, %v2858
    %v2874 = vadd.f32 %v2839, %v2859
    %v2875 = vadd.f32 %v2840, %v2860
    %v2876 = vadd.f32 %v2841, %v2861
    %v2877 = vadd.f32 %v2842, %v2853
    %v2878 = vadd.f32 %v2843, %v2855
    %v2879 = vadd.f32 %v2844, %v2856
    %v2880 = vadd.f32 %v2845, %v2857
    %v2881 = vadd.f32 %v2846, %v2858
    %v2882 = vadd.f32 %v2847, %v2859
    %v2883 = vadd.f32 %v2848, %v2860
    %v2884 = vadd.f32 %v2849, %v2861
    %v2885 = vadd.f32 %v2850, %v2853
    %v2886 = vadd.f32 %v2851, %v2855
    %s2887 = scalar_lea.vmem %s9, 32
    %v2888 = vld [vmem:[%s2887] sm:$0xff]
    %v2889 = vld [vmem:[%s2887 + $0x8] sm:$0xff]
    %v2890 = vld [vmem:[%s2887 + $0x10] sm:$0xff]
    %v2891 = vld [vmem:[%s2887 + $0x18] sm:$0xff]
    %s2892 = scalar_lea.vmem %s10, 1
    %v2893 = vld [vmem:[%s2892] sm:$0x1]
    %s2894 = scalar_lea.vmem %s11, 32
    %v2895 = vld [vmem:[%s2894] sm:$0xff]
    %v2896 = vld [vmem:[%s2894 + $0x8] sm:$0xff]
    %v2897 = vld [vmem:[%s2894 + $0x10] sm:$0xff]
    %v2898 = vld [vmem:[%s2894 + $0x18] sm:$0xff]
    %s2899 = scalar_lea.vmem %s12, 1
    %v2900 = vld [vmem:[%s2899] sm:$0x1]
    %s2901 = scalar_lea.vmem %s13, 1
    %v2902 = vld [vmem:[%s2901] sm:$0x1]
    %s2903 = scalar_lea.vmem %s14, 1
    %v2904 = vld [vmem:[%s2903] sm:$0x1]
    %s2905 = scalar_lea.vmem %s15, 32
    %v2906 = vld [vmem:[%s2905] sm:$0xff]
    %v2907 = vld [vmem:[%s2905 + $0x8] sm:$0xff]
    %v2908 = vld [vmem:[%s2905 + $0x10] sm:$0xff]
    %v2909 = vld [vmem:[%s2905 + $0x18] sm:$0xff]
    %s2910 = scalar_lea.vmem %s16, 1
    %v2911 = vld [vmem:[%s2910] sm:$0x1]
    %s2912 = scalar_lea.vmem %s17, 64
    %v2913 = vld [vmem:[%s2912] sm:$0xff]
    %v2914 = vld [vmem:[%s2912 + $0x8] sm:$0xff]
    %v2915 = vld [vmem:[%s2912 + $0x10] sm:$0xff]
    %v2916 = vld [vmem:[%s2912 + $0x18] sm:$0xff]
    %v2917 = vld [vmem:[%s2912 + $0x20] sm:$0xff]
    %v2918 = vld [vmem:[%s2912 + $0x28] sm:$0xff]
    %v2919 = vld [vmem:[%s2912 + $0x30] sm:$0xff]
    %v2920 = vld [vmem:[%s2912 + $0x38] sm:$0xff]
    %s2921 = scalar_lea.vmem %s18, 1
    %v2922 = vld [vmem:[%s2921] sm:$0x1]
    %s2923 = scalar_lea.vmem %s19, 1
    %v2924 = vld [vmem:[%s2923] sm:$0x1]
    %s2925 = scalar_lea.vmem %s20, 1
    %v2926 = vld [vmem:[%s2925] sm:$0x1]
    %v2928 = vperm.slane %v2893, 0
    %2948 = vst [vmem:[#allocation1] ss:$9 sm:$0xff] %v2869
    %s2949 = scalar_lea.vmem [#allocation1], 1
    %2950 = vst [vmem:[%s2949] ss:$9 sm:$0xff] %v2870
    %s2951 = scalar_lea.vmem [#allocation1], 2
    %2952 = vst [vmem:[%s2951] ss:$9 sm:$0xff] %v2871
    %s2953 = scalar_lea.vmem [#allocation1], 3
    %2954 = vst [vmem:[%s2953] ss:$9 sm:$0xff] %v2872
    %s2955 = scalar_lea.vmem [#allocation1], 4
    %2956 = vst [vmem:[%s2955] ss:$9 sm:$0xff] %v2873
    %s2957 = scalar_lea.vmem [#allocation1], 5
    %2958 = vst [vmem:[%s2957] ss:$9 sm:$0xff] %v2874
    %s2959 = scalar_lea.vmem [#allocation1], 6
    %2960 = vst [vmem:[%s2959] ss:$9 sm:$0xff] %v2875
    %s2961 = scalar_lea.vmem [#allocation1], 7
    %2962 = vst [vmem:[%s2961] ss:$9 sm:$0xff] %v2876
    %v2963 = vld [vmem:[#allocation1] sm:$0xff]
    %2964 = vst [vmem:[#allocation1] ss:$9 sm:$0xff] %v2877
    %2965 = vst [vmem:[%s2949] ss:$9 sm:$0xff] %v2878
    %2966 = vst [vmem:[%s2951] ss:$9 sm:$0xff] %v2879
    %2967 = vst [vmem:[%s2953] ss:$9 sm:$0xff] %v2880
    %2968 = vst [vmem:[%s2955] ss:$9 sm:$0xff] %v2881
    %2969 = vst [vmem:[%s2957] ss:$9 sm:$0xff] %v2882
    %2970 = vst [vmem:[%s2959] ss:$9 sm:$0xff] %v2883
    %2971 = vst [vmem:[%s2961] ss:$9 sm:$0xff] %v2884
    %v2972 = vld [vmem:[#allocation1] sm:$0xff]
    %2973 = vst [vmem:[#allocation1] ss:$9 sm:$0xff] %v2885
    %2974 = vst [vmem:[%s2949] ss:$9 sm:$0xff] %v2886
    %v2975 = vld [vmem:[#allocation1] sm:$0xff]
    %v2976 = vsel %vm232, %v2963, 0
    %v2978 = vsel %vm232, %v2972, 0
    %v2980 = vsel %vm232, %v2975, 0
    %2982 = vmatpush.msra.mxu0 0.0
    %2983 = vmatpush.msra.mxu0 0.0
    %2984 = vmatpush.msra.mxu0 0.0
    %2985 = vmatpush.msra.mxu0 0.0
    %2986 = vmatpush.msra.mxu0 0.0
    %2987 = vmatpush.msra.mxu0 0.0
    %2988 = vmatpush.msra.mxu0 0.0
    %2989 = vmatpush.msra.mxu0 0.0
    %2990 = vmatpush.msra.mxu0 0.0
    %2991 = vmatpush.msra.mxu0 0.0
    %2992 = vmatpush.msra.mxu0 0.0
    %2993 = vmatpush.msra.mxu0 0.0
    %2994 = vmatpush.msra.mxu0 %v2891
    %2995 = vmatpush.msra.mxu0 %v2890
    %2996 = vmatpush.msra.mxu0 %v2889
    %2997 = vmatpush.msra.mxu0 %v2888
    %2998 = vmatmul.f32.gmra.mxu0 %v2976
    %v2999 = vpop.f32.mrf.mxu0
    %v3000 = vadd.f32 %v2928, %v2999
    %3001 = vmatmul.f32.gmra.mxu0 %v2978
    %v3002 = vpop.f32.mrf.mxu0
    %v3003 = vadd.f32 %v2928, %v3002
    %3004 = vmatmul.f32.gmra.mxu0 %v2980
    %v3005 = vpop.f32.mrf.mxu0
    %v3006 = vadd.f32 %v2928, %v3005
    %3007 = vdwg.mxu0
    %v3011 = vrot.slane %v3000, 1
    %v3012 = vrot.slane %v3000, 2
    %v3013 = vrot.slane %v3000, 3
    %v3014 = vrot.slane %v3000, 4
    %v3015 = vrot.slane %v3000, 5
    %v3016 = vrot.slane %v3000, 6
    %v3017 = vrot.slane %v3000, 7
    %v3018 = vrot.slane %v3003, 1
    %v3019 = vrot.slane %v3003, 2
    %v3020 = vrot.slane %v3003, 3
    %v3021 = vrot.slane %v3003, 4
    %v3022 = vrot.slane %v3003, 5
    %v3023 = vrot.slane %v3003, 6
    %v3024 = vrot.slane %v3003, 7
    %v3025 = vrot.slane %v3006, 1
    %v3041 = vmul.f32 %v3000, 0.35355338
    %v3042 = vmul.f32 %v3011, 0.35355338
    %v3043 = vmul.f32 %v3012, 0.35355338
    %v3044 = vmul.f32 %v3013, 0.35355338
    %v3045 = vmul.f32 %v3014, 0.35355338
    %v3046 = vmul.f32 %v3015, 0.35355338
    %v3047 = vmul.f32 %v3016, 0.35355338
    %v3048 = vmul.f32 %v3017, 0.35355338
    %v3049 = vmul.f32 %v3003, 0.35355338
    %v3050 = vmul.f32 %v3018, 0.35355338
    %v3051 = vmul.f32 %v3019, 0.35355338
    %v3052 = vmul.f32 %v3020, 0.35355338
    %v3053 = vmul.f32 %v3021, 0.35355338
    %v3054 = vmul.f32 %v3022, 0.35355338
    %v3055 = vmul.f32 %v3023, 0.35355338
    %v3056 = vmul.f32 %v3024, 0.35355338
    %v3057 = vmul.f32 %v3006, 0.35355338
    %v3058 = vmul.f32 %v3025, 0.35355338
    %3068 = vst [vmem:[#allocation1] ss:$9 sm:$0xff] %v3041
    %s3069 = scalar_lea.vmem [#allocation1], 1
    %3070 = vst [vmem:[%s3069] ss:$9 sm:$0xff] %v3042
    %s3071 = scalar_lea.vmem [#allocation1], 2
    %3072 = vst [vmem:[%s3071] ss:$9 sm:$0xff] %v3043
    %s3073 = scalar_lea.vmem [#allocation1], 3
    %3074 = vst [vmem:[%s3073] ss:$9 sm:$0xff] %v3044
    %s3075 = scalar_lea.vmem [#allocation1], 4
    %3076 = vst [vmem:[%s3075] ss:$9 sm:$0xff] %v3045
    %s3077 = scalar_lea.vmem [#allocation1], 5
    %3078 = vst [vmem:[%s3077] ss:$9 sm:$0xff] %v3046
    %s3079 = scalar_lea.vmem [#allocation1], 6
    %3080 = vst [vmem:[%s3079] ss:$9 sm:$0xff] %v3047
    %s3081 = scalar_lea.vmem [#allocation1], 7
    %3082 = vst [vmem:[%s3081] ss:$9 sm:$0xff] %v3048
    %v3083 = vld [vmem:[#allocation1] sm:$0xff]
    %3084 = vst [vmem:[#allocation1] ss:$9 sm:$0xff] %v3049
    %v3085 = vld [vmem:[#allocation1] sm:$0xff]
    %3086 = vst [vmem:[#allocation1] ss:$9 sm:$0xff] %v3000
    %s3087 = scalar_lea.vmem [#allocation1], 1
    %3088 = vst [vmem:[%s3087] ss:$9 sm:$0xff] %v3011
    %s3089 = scalar_lea.vmem [#allocation1], 2
    %3090 = vst [vmem:[%s3089] ss:$9 sm:$0xff] %v3012
    %s3091 = scalar_lea.vmem [#allocation1], 3
    %3092 = vst [vmem:[%s3091] ss:$9 sm:$0xff] %v3013
    %s3093 = scalar_lea.vmem [#allocation1], 4
    %3094 = vst [vmem:[%s3093] ss:$9 sm:$0xff] %v3014
    %s3095 = scalar_lea.vmem [#allocation1], 5
    %3096 = vst [vmem:[%s3095] ss:$9 sm:$0xff] %v3015
    %s3097 = scalar_lea.vmem [#allocation1], 6
    %3098 = vst [vmem:[%s3097] ss:$9 sm:$0xff] %v3016
    %s3099 = scalar_lea.vmem [#allocation1], 7
    %3100 = vst [vmem:[%s3099] ss:$9 sm:$0xff] %v3017
    %v3101 = vld [vmem:[#allocation1] sm:$0xff]
    %3102 = vst [vmem:[#allocation1] ss:$9 sm:$0xff] %v3003
    %v3103 = vld [vmem:[#allocation1] sm:$0xff]
    %3104 = vrot.lane.b32.xlu0 %v3101, 96
    %v3105 = vpop.permute.xlu0 %3104
    %3106 = vrot.lane.b32.xlu0 %v3103, 96
    %v3107 = vpop.permute.xlu0 %3106
    %v3108 = vsel %vm587, %v3083, 0
    %v3110 = vsel %vm587, %v3085, 0
    %v3112 = vsel %vm587, %v3105, 0
    %v3114 = vsel %vm587, %v3107, 0
    %3116 = vmatpush.xpose.msra.mxu0 0.0
    %3117 = vmatpush.xpose.msra.mxu0 0.0
    %3118 = vmatpush.xpose.msra.mxu0 0.0
    %3119 = vmatpush.xpose.msra.mxu0 0.0
    %3120 = vmatpush.xpose.msra.mxu0 0.0
    %3121 = vmatpush.xpose.msra.mxu0 0.0
    %3122 = vmatpush.xpose.msra.mxu0 0.0
    %3123 = vmatpush.xpose.msra.mxu0 0.0
    %3124 = vmatpush.xpose.msra.mxu0 0.0
    %3125 = vmatpush.xpose.msra.mxu0 0.0
    %3126 = vmatpush.xpose.msra.mxu0 0.0
    %3127 = vmatpush.xpose.msra.mxu0 0.0
    %3128 = vmatpush.xpose.msra.mxu0 0.0
    %3129 = vmatpush.xpose.msra.mxu0 0.0
    %3130 = vmatpush.xpose.msra.mxu0 %v3114
    %3131 = vmatpush.xpose.msra.mxu0 %v3112
    %3132 = vmatmul.f32.gmra.mxu0 %v3108
    %v3133 = vpop.f32.mrf.mxu0
    %v3134 = vadd.f32 0.0, %v3133
    %3135 = vmatmul.f32.gmra.mxu0 %v3110
    %v3136 = vpop.f32.mrf.mxu0
    %v3137 = vadd.f32 0.0, %v3136
    %3138 = vdwg.mxu0
    %3148 = vst [vmem:[#allocation1] ss:$9 sm:$0xff] %v3050
    %s3149 = scalar_lea.vmem [#allocation1], 1
    %3150 = vst [vmem:[%s3149] ss:$9 sm:$0xff] %v3051
    %s3151 = scalar_lea.vmem [#allocation1], 2
    %3152 = vst [vmem:[%s3151] ss:$9 sm:$0xff] %v3052
    %s3153 = scalar_lea.vmem [#allocation1], 3
    %3154 = vst [vmem:[%s3153] ss:$9 sm:$0xff] %v3053
    %s3155 = scalar_lea.vmem [#allocation1], 4
    %3156 = vst [vmem:[%s3155] ss:$9 sm:$0xff] %v3054
    %s3157 = scalar_lea.vmem [#allocation1], 5
    %3158 = vst [vmem:[%s3157] ss:$9 sm:$0xff] %v3055
    %s3159 = scalar_lea.vmem [#allocation1], 6
    %3160 = vst [vmem:[%s3159] ss:$9 sm:$0xff] %v3056
    %s3161 = scalar_lea.vmem [#allocation1], 7
    %3162 = vst [vmem:[%s3161] ss:$9 sm:$0xff] %v3057
    %v3163 = vld [vmem:[#allocation1] sm:$0xff]
    %3164 = vst [vmem:[#allocation1] ss:$9 sm:$0xff] %v3058
    %v3165 = vld [vmem:[#allocation1] sm:$0xff]
    %3166 = vst [vmem:[#allocation1] ss:$9 sm:$0xff] %v3018
    %s3167 = scalar_lea.vmem [#allocation1], 1
    %3168 = vst [vmem:[%s3167] ss:$9 sm:$0xff] %v3019
    %s3169 = scalar_lea.vmem [#allocation1], 2
    %3170 = vst [vmem:[%s3169] ss:$9 sm:$0xff] %v3020
    %s3171 = scalar_lea.vmem [#allocation1], 3
    %3172 = vst [vmem:[%s3171] ss:$9 sm:$0xff] %v3021
    %s3173 = scalar_lea.vmem [#allocation1], 4
    %3174 = vst [vmem:[%s3173] ss:$9 sm:$0xff] %v3022
    %s3175 = scalar_lea.vmem [#allocation1], 5
    %3176 = vst [vmem:[%s3175] ss:$9 sm:$0xff] %v3023
    %s3177 = scalar_lea.vmem [#allocation1], 6
    %3178 = vst [vmem:[%s3177] ss:$9 sm:$0xff] %v3024
    %s3179 = scalar_lea.vmem [#allocation1], 7
    %3180 = vst [vmem:[%s3179] ss:$9 sm:$0xff] %v3006
    %v3181 = vld [vmem:[#allocation1] sm:$0xff]
    %3182 = vst [vmem:[#allocation1] ss:$9 sm:$0xff] %v3025
    %v3183 = vld [vmem:[#allocation1] sm:$0xff]
    %3184 = vrot.lane.b32.xlu0 %v3181, 96
    %v3185 = vpop.permute.xlu0 %3184
    %3186 = vrot.lane.b32.xlu0 %v3183, 96
    %v3187 = vpop.permute.xlu0 %3186
    %v3188 = vsel %vm587, %v3163, 0
    %v3190 = vsel %vm587, %v3165, 0
    %v3192 = vsel %vm587, %v3185, 0
    %v3194 = vsel %vm587, %v3187, 0
    %3196 = vmatpush.xpose.msra.mxu0 0.0
    %3197 = vmatpush.xpose.msra.mxu0 0.0
    %3198 = vmatpush.xpose.msra.mxu0 0.0
    %3199 = vmatpush.xpose.msra.mxu0 0.0
    %3200 = vmatpush.xpose.msra.mxu0 0.0
    %3201 = vmatpush.xpose.msra.mxu0 0.0
    %3202 = vmatpush.xpose.msra.mxu0 0.0
    %3203 = vmatpush.xpose.msra.mxu0 0.0
    %3204 = vmatpush.xpose.msra.mxu0 0.0
    %3205 = vmatpush.xpose.msra.mxu0 0.0
    %3206 = vmatpush.xpose.msra.mxu0 0.0
    %3207 = vmatpush.xpose.msra.mxu0 0.0
    %3208 = vmatpush.xpose.msra.mxu0 0.0
    %3209 = vmatpush.xpose.msra.mxu0 0.0
    %3210 = vmatpush.xpose.msra.mxu0 %v3194
    %3211 = vmatpush.xpose.msra.mxu0 %v3192
    %3212 = vmatmul.f32.gmra.mxu0 %v3188
    %v3213 = vpop.f32.mrf.mxu0
    %v3214 = vadd.f32 0.0, %v3213
    %3215 = vmatmul.f32.gmra.mxu0 %v3190
    %v3216 = vpop.f32.mrf.mxu0
    %v3217 = vadd.f32 0.0, %v3216
    %3218 = vdwg.mxu0
    %v3219 = vsel %vm699, %v3134, -inf
    %3220 = vmax.xlane.f32.xlu0 %v3219
    %v3221 = vpop.xlane.xlu0 %3220
    %v3222 = vsel %vm703, %v3137, -inf
    %3223 = vmax.xlane.f32.xlu0 %v3222
    %v3224 = vpop.xlane.xlu0 %3223
    %v3225 = vsel %vm699, %v3214, -inf
    %3226 = vmax.xlane.f32.xlu0 %v3225
    %v3227 = vpop.xlane.xlu0 %3226
    %v3228 = vsel %vm703, %v3217, -inf
    %3229 = vmax.xlane.f32.xlu0 %v3228
    %v3230 = vpop.xlane.xlu0 %3229
    %v3231 = vsub.f32 %v3134, %v3221
    %v3232 = vsub.f32 %v3137, %v3224
    %v3233 = vsub.f32 %v3214, %v3227
    %v3234 = vsub.f32 %v3217, %v3230
    %v3235 = vmul.f32 %v3231, 1.442695
    %v3236 = vpow.pop %v3235
    %v3237 = vmul.f32 %v3232, 1.442695
    %v3238 = vpow.pop %v3237
    %v3239 = vmul.f32 %v3233, 1.442695
    %v3240 = vpow.pop %v3239
    %v3241 = vmul.f32 %v3234, 1.442695
    %v3242 = vpow.pop %v3241
    %v3243 = vsel %vm699, %v3236, 0.0
    %3244 = vadd.xlane.f32.xlu0 %v3243
    %v3245 = vpop.xlane.xlu0 %3244
    %v3246 = vsel %vm703, %v3238, 0.0
    %3247 = vadd.xlane.f32.xlu0 %v3246
    %v3248 = vpop.xlane.xlu0 %3247
    %v3249 = vsel %vm699, %v3240, 0.0
    %3250 = vadd.xlane.f32.xlu0 %v3249
    %v3251 = vpop.xlane.xlu0 %3250
    %v3252 = vsel %vm703, %v3242, 0.0
    %3253 = vadd.xlane.f32.xlu0 %v3252
    %v3254 = vpop.xlane.xlu0 %3253
    %v3255 = vrcp.pop %v3245
    %v3256 = vrcp.pop %v3248
    %v3257 = vrcp.pop %v3251
    %v3258 = vrcp.pop %v3254
    %v3259 = vmul.f32 %v3236, %v3255
    %v3260 = vmul.f32 %v3238, %v3256
    %v3261 = vmul.f32 %v3240, %v3257
    %v3262 = vmul.f32 %v3242, %v3258
    %3263 = vst [vmem:[#allocation1] ss:$9 sm:$0xff] %v3000
    %s3264 = scalar_lea.vmem [#allocation1], 1
    %3265 = vst [vmem:[%s3264] ss:$9 sm:$0xff] %v3011
    %s3266 = scalar_lea.vmem [#allocation1], 2
    %3267 = vst [vmem:[%s3266] ss:$9 sm:$0xff] %v3012
    %s3268 = scalar_lea.vmem [#allocation1], 3
    %3269 = vst [vmem:[%s3268] ss:$9 sm:$0xff] %v3013
    %s3270 = scalar_lea.vmem [#allocation1], 4
    %3271 = vst [vmem:[%s3270] ss:$9 sm:$0xff] %v3014
    %s3272 = scalar_lea.vmem [#allocation1], 5
    %3273 = vst [vmem:[%s3272] ss:$9 sm:$0xff] %v3015
    %s3274 = scalar_lea.vmem [#allocation1], 6
    %3275 = vst [vmem:[%s3274] ss:$9 sm:$0xff] %v3016
    %s3276 = scalar_lea.vmem [#allocation1], 7
    %3277 = vst [vmem:[%s3276] ss:$9 sm:$0xff] %v3017
    %v3278 = vld [vmem:[#allocation1] sm:$0xff]
    %3279 = vst [vmem:[#allocation1] ss:$9 sm:$0xff] %v3003
    %v3280 = vld [vmem:[#allocation1] sm:$0xff]
    %3281 = vrot.lane.b32.xlu0 %v3278, 64
    %v3282 = vpop.permute.xlu0 %3281
    %3283 = vrot.lane.b32.xlu0 %v3280, 64
    %v3284 = vpop.permute.xlu0 %3283
    %v3287 = vsel %vm699, %v3259, 0
    %v3290 = vsel %vm699, %v3260, 0
    %v3292 = vsel %vm774, %v3284, 0
    %3294 = vmatpush.msra.mxu0 0.0
    %3295 = vmatpush.msra.mxu0 0.0
    %3296 = vmatpush.msra.mxu0 0.0
    %3297 = vmatpush.msra.mxu0 0.0
    %3298 = vmatpush.msra.mxu0 0.0
    %3299 = vmatpush.msra.mxu0 0.0
    %3300 = vmatpush.msra.mxu0 0.0
    %3301 = vmatpush.msra.mxu0 0.0
    %3302 = vmatpush.msra.mxu0 0.0
    %3303 = vmatpush.msra.mxu0 0.0
    %3304 = vmatpush.msra.mxu0 0.0
    %3305 = vmatpush.msra.mxu0 0.0
    %3306 = vmatpush.msra.mxu0 0.0
    %3307 = vmatpush.msra.mxu0 0.0
    %3308 = vmatpush.msra.mxu0 %v3292
    %3309 = vmatpush.msra.mxu0 %v3282
    %3310 = vmatmul.f32.gmra.mxu0 %v3287
    %v3311 = vpop.f32.mrf.mxu0
    %v3312 = vadd.f32 0.0, %v3311
    %3313 = vmatmul.f32.gmra.mxu0 %v3290
    %v3314 = vpop.f32.mrf.mxu0
    %v3315 = vadd.f32 0.0, %v3314
    %3316 = vdwg.mxu0
    %3317 = vst [vmem:[#allocation1] ss:$9 sm:$0xff] %v3018
    %s3318 = scalar_lea.vmem [#allocation1], 1
    %3319 = vst [vmem:[%s3318] ss:$9 sm:$0xff] %v3019
    %s3320 = scalar_lea.vmem [#allocation1], 2
    %3321 = vst [vmem:[%s3320] ss:$9 sm:$0xff] %v3020
    %s3322 = scalar_lea.vmem [#allocation1], 3
    %3323 = vst [vmem:[%s3322] ss:$9 sm:$0xff] %v3021
    %s3324 = scalar_lea.vmem [#allocation1], 4
    %3325 = vst [vmem:[%s3324] ss:$9 sm:$0xff] %v3022
    %s3326 = scalar_lea.vmem [#allocation1], 5
    %3327 = vst [vmem:[%s3326] ss:$9 sm:$0xff] %v3023
    %s3328 = scalar_lea.vmem [#allocation1], 6
    %3329 = vst [vmem:[%s3328] ss:$9 sm:$0xff] %v3024
    %s3330 = scalar_lea.vmem [#allocation1], 7
    %3331 = vst [vmem:[%s3330] ss:$9 sm:$0xff] %v3006
    %v3332 = vld [vmem:[#allocation1] sm:$0xff]
    %3333 = vst [vmem:[#allocation1] ss:$9 sm:$0xff] %v3025
    %v3334 = vld [vmem:[#allocation1] sm:$0xff]
    %3335 = vrot.lane.b32.xlu0 %v3332, 64
    %v3336 = vpop.permute.xlu0 %3335
    %3337 = vrot.lane.b32.xlu0 %v3334, 64
    %v3338 = vpop.permute.xlu0 %3337
    %v3341 = vsel %vm699, %v3261, 0
    %v3344 = vsel %vm699, %v3262, 0
    %v3346 = vsel %vm774, %v3338, 0
    %3348 = vmatpush.msra.mxu0 0.0
    %3349 = vmatpush.msra.mxu0 0.0
    %3350 = vmatpush.msra.mxu0 0.0
    %3351 = vmatpush.msra.mxu0 0.0
    %3352 = vmatpush.msra.mxu0 0.0
    %3353 = vmatpush.msra.mxu0 0.0
    %3354 = vmatpush.msra.mxu0 0.0
    %3355 = vmatpush.msra.mxu0 0.0
    %3356 = vmatpush.msra.mxu0 0.0
    %3357 = vmatpush.msra.mxu0 0.0
    %3358 = vmatpush.msra.mxu0 0.0
    %3359 = vmatpush.msra.mxu0 0.0
    %3360 = vmatpush.msra.mxu0 0.0
    %3361 = vmatpush.msra.mxu0 0.0
    %3362 = vmatpush.msra.mxu0 %v3346
    %3363 = vmatpush.msra.mxu0 %v3336
    %3364 = vmatmul.f32.gmra.mxu0 %v3341
    %v3365 = vpop.f32.mrf.mxu0
    %v3366 = vadd.f32 0.0, %v3365
    %3367 = vmatmul.f32.gmra.mxu0 %v3344
    %v3368 = vpop.f32.mrf.mxu0
    %v3369 = vadd.f32 0.0, %v3368
    %3370 = vdwg.mxu0
    %3371 = vst.msk [vmem:[#allocation3] sm:$0xff] %vm587, %v3312
    %3372 = vst.msk [vmem:[#allocation3 + $0x8] sm:$0x1] %vm855, %v3315
    %3373 = vst.msk [vmem:[#allocation3 + $0x10] sm:$0xff] %vm587, %v3366
    %3374 = vst.msk [vmem:[#allocation3 + $0x18] sm:$0x1] %vm855, %v3369
    %3375 = vst [vmem:[#allocation1] ss:$9 sm:$0xff] %v3041
    %s3376 = scalar_lea.vmem [#allocation1], 1
    %3377 = vst [vmem:[%s3376] ss:$9 sm:$0xff] %v3042
    %s3378 = scalar_lea.vmem [#allocation1], 2
    %3379 = vst [vmem:[%s3378] ss:$9 sm:$0xff] %v3043
    %s3380 = scalar_lea.vmem [#allocation1], 3
    %3381 = vst [vmem:[%s3380] ss:$9 sm:$0xff] %v3044
    %s3382 = scalar_lea.vmem [#allocation1], 4
    %3383 = vst [vmem:[%s3382] ss:$9 sm:$0xff] %v3045
    %s3384 = scalar_lea.vmem [#allocation1], 5
    %3385 = vst [vmem:[%s3384] ss:$9 sm:$0xff] %v3046
    %s3386 = scalar_lea.vmem [#allocation1], 6
    %3387 = vst [vmem:[%s3386] ss:$9 sm:$0xff] %v3047
    %s3388 = scalar_lea.vmem [#allocation1], 7
    %3389 = vst [vmem:[%s3388] ss:$9 sm:$0xff] %v3048
    %v3390 = vld [vmem:[#allocation1] sm:$0xff]
    %3391 = vst [vmem:[#allocation1] ss:$9 sm:$0xff] %v3049
    %v3392 = vld [vmem:[#allocation1] sm:$0xff]
    %3393 = vrot.lane.b32.xlu0 %v3390, 120
    %v3394 = vpop.permute.xlu0 %3393
    %3395 = vrot.lane.b32.xlu0 %v3392, 120
    %v3396 = vpop.permute.xlu0 %3395
    %3397 = vst [vmem:[#allocation1] ss:$9 sm:$0xff] %v3000
    %s3398 = scalar_lea.vmem [#allocation1], 1
    %3399 = vst [vmem:[%s3398] ss:$9 sm:$0xff] %v3011
    %s3400 = scalar_lea.vmem [#allocation1], 2
    %3401 = vst [vmem:[%s3400] ss:$9 sm:$0xff] %v3012
    %s3402 = scalar_lea.vmem [#allocation1], 3
    %3403 = vst [vmem:[%s3402] ss:$9 sm:$0xff] %v3013
    %s3404 = scalar_lea.vmem [#allocation1], 4
    %3405 = vst [vmem:[%s3404] ss:$9 sm:$0xff] %v3014
    %s3406 = scalar_lea.vmem [#allocation1], 5
    %3407 = vst [vmem:[%s3406] ss:$9 sm:$0xff] %v3015
    %s3408 = scalar_lea.vmem [#allocation1], 6
    %3409 = vst [vmem:[%s3408] ss:$9 sm:$0xff] %v3016
    %s3410 = scalar_lea.vmem [#allocation1], 7
    %3411 = vst [vmem:[%s3410] ss:$9 sm:$0xff] %v3017
    %v3412 = vld [vmem:[#allocation1] sm:$0xff]
    %3413 = vst [vmem:[#allocation1] ss:$9 sm:$0xff] %v3003
    %v3414 = vld [vmem:[#allocation1] sm:$0xff]
    %3415 = vrot.lane.b32.xlu0 %v3412, 88
    %v3416 = vpop.permute.xlu0 %3415
    %3417 = vrot.lane.b32.xlu0 %v3414, 88
    %v3418 = vpop.permute.xlu0 %3417
    %v3419 = vsel %vm587, %v3394, 0
    %v3421 = vsel %vm587, %v3396, 0
    %v3423 = vsel %vm587, %v3416, 0
    %v3425 = vsel %vm587, %v3418, 0
    %3427 = vmatpush.xpose.msra.mxu0 0.0
    %3428 = vmatpush.xpose.msra.mxu0 0.0
    %3429 = vmatpush.xpose.msra.mxu0 0.0
    %3430 = vmatpush.xpose.msra.mxu0 0.0
    %3431 = vmatpush.xpose.msra.mxu0 0.0
    %3432 = vmatpush.xpose.msra.mxu0 0.0
    %3433 = vmatpush.xpose.msra.mxu0 0.0
    %3434 = vmatpush.xpose.msra.mxu0 0.0
    %3435 = vmatpush.xpose.msra.mxu0 0.0
    %3436 = vmatpush.xpose.msra.mxu0 0.0
    %3437 = vmatpush.xpose.msra.mxu0 0.0
    %3438 = vmatpush.xpose.msra.mxu0 0.0
    %3439 = vmatpush.xpose.msra.mxu0 0.0
    %3440 = vmatpush.xpose.msra.mxu0 0.0
    %3441 = vmatpush.xpose.msra.mxu0 %v3425
    %3442 = vmatpush.xpose.msra.mxu0 %v3423
    %3443 = vmatmul.f32.gmra.mxu0 %v3419
    %v3444 = vpop.f32.mrf.mxu0
    %v3445 = vadd.f32 0.0, %v3444
    %3446 = vmatmul.f32.gmra.mxu0 %v3421
    %v3447 = vpop.f32.mrf.mxu0
    %v3448 = vadd.f32 0.0, %v3447
    %3449 = vdwg.mxu0
    %3450 = vst [vmem:[#allocation1] ss:$9 sm:$0xff] %v3050
    %s3451 = scalar_lea.vmem [#allocation1], 1
    %3452 = vst [vmem:[%s3451] ss:$9 sm:$0xff] %v3051
    %s3453 = scalar_lea.vmem [#allocation1], 2
    %3454 = vst [vmem:[%s3453] ss:$9 sm:$0xff] %v3052
    %s3455 = scalar_lea.vmem [#allocation1], 3
    %3456 = vst [vmem:[%s3455] ss:$9 sm:$0xff] %v3053
    %s3457 = scalar_lea.vmem [#allocation1], 4
    %3458 = vst [vmem:[%s3457] ss:$9 sm:$0xff] %v3054
    %s3459 = scalar_lea.vmem [#allocation1], 5
    %3460 = vst [vmem:[%s3459] ss:$9 sm:$0xff] %v3055
    %s3461 = scalar_lea.vmem [#allocation1], 6
    %3462 = vst [vmem:[%s3461] ss:$9 sm:$0xff] %v3056
    %s3463 = scalar_lea.vmem [#allocation1], 7
    %3464 = vst [vmem:[%s3463] ss:$9 sm:$0xff] %v3057
    %v3465 = vld [vmem:[#allocation1] sm:$0xff]
    %3466 = vst [vmem:[#allocation1] ss:$9 sm:$0xff] %v3058
    %v3467 = vld [vmem:[#allocation1] sm:$0xff]
    %3468 = vrot.lane.b32.xlu0 %v3465, 120
    %v3469 = vpop.permute.xlu0 %3468
    %3470 = vrot.lane.b32.xlu0 %v3467, 120
    %v3471 = vpop.permute.xlu0 %3470
    %3472 = vst [vmem:[#allocation1] ss:$9 sm:$0xff] %v3018
    %s3473 = scalar_lea.vmem [#allocation1], 1
    %3474 = vst [vmem:[%s3473] ss:$9 sm:$0xff] %v3019
    %s3475 = scalar_lea.vmem [#allocation1], 2
    %3476 = vst [vmem:[%s3475] ss:$9 sm:$0xff] %v3020
    %s3477 = scalar_lea.vmem [#allocation1], 3
    %3478 = vst [vmem:[%s3477] ss:$9 sm:$0xff] %v3021
    %s3479 = scalar_lea.vmem [#allocation1], 4
    %3480 = vst [vmem:[%s3479] ss:$9 sm:$0xff] %v3022
    %s3481 = scalar_lea.vmem [#allocation1], 5
    %3482 = vst [vmem:[%s3481] ss:$9 sm:$0xff] %v3023
    %s3483 = scalar_lea.vmem [#allocation1], 6
    %3484 = vst [vmem:[%s3483] ss:$9 sm:$0xff] %v3024
    %s3485 = scalar_lea.vmem [#allocation1], 7
    %3486 = vst [vmem:[%s3485] ss:$9 sm:$0xff] %v3006
    %v3487 = vld [vmem:[#allocation1] sm:$0xff]
    %3488 = vst [vmem:[#allocation1] ss:$9 sm:$0xff] %v3025
    %v3489 = vld [vmem:[#allocation1] sm:$0xff]
    %3490 = vrot.lane.b32.xlu0 %v3487, 88
    %v3491 = vpop.permute.xlu0 %3490
    %3492 = vrot.lane.b32.xlu0 %v3489, 88
    %v3493 = vpop.permute.xlu0 %3492
    %v3494 = vsel %vm587, %v3469, 0
    %v3496 = vsel %vm587, %v3471, 0
    %v3498 = vsel %vm587, %v3491, 0
    %v3500 = vsel %vm587, %v3493, 0
    %3502 = vmatpush.xpose.msra.mxu0 0.0
    %3503 = vmatpush.xpose.msra.mxu0 0.0
    %3504 = vmatpush.xpose.msra.mxu0 0.0
    %3505 = vmatpush.xpose.msra.mxu0 0.0
    %3506 = vmatpush.xpose.msra.mxu0 0.0
    %3507 = vmatpush.xpose.msra.mxu0 0.0
    %3508 = vmatpush.xpose.msra.mxu0 0.0
    %3509 = vmatpush.xpose.msra.mxu0 0.0
    %3510 = vmatpush.xpose.msra.mxu0 0.0
    %3511 = vmatpush.xpose.msra.mxu0 0.0
    %3512 = vmatpush.xpose.msra.mxu0 0.0
    %3513 = vmatpush.xpose.msra.mxu0 0.0
    %3514 = vmatpush.xpose.msra.mxu0 0.0
    %3515 = vmatpush.xpose.msra.mxu0 0.0
    %3516 = vmatpush.xpose.msra.mxu0 %v3500
    %3517 = vmatpush.xpose.msra.mxu0 %v3498
    %3518 = vmatmul.f32.gmra.mxu0 %v3494
    %v3519 = vpop.f32.mrf.mxu0
    %v3520 = vadd.f32 0.0, %v3519
    %3521 = vmatmul.f32.gmra.mxu0 %v3496
    %v3522 = vpop.f32.mrf.mxu0
    %v3523 = vadd.f32 0.0, %v3522
    %3524 = vdwg.mxu0
    %v3525 = vsel %vm699, %v3445, -inf
    %3526 = vmax.xlane.f32.xlu0 %v3525
    %v3527 = vpop.xlane.xlu0 %3526
    %v3528 = vsel %vm703, %v3448, -inf
    %3529 = vmax.xlane.f32.xlu0 %v3528
    %v3530 = vpop.xlane.xlu0 %3529
    %v3531 = vsel %vm699, %v3520, -inf
    %3532 = vmax.xlane.f32.xlu0 %v3531
    %v3533 = vpop.xlane.xlu0 %3532
    %v3534 = vsel %vm703, %v3523, -inf
    %3535 = vmax.xlane.f32.xlu0 %v3534
    %v3536 = vpop.xlane.xlu0 %3535
    %v3537 = vsub.f32 %v3445, %v3527
    %v3538 = vsub.f32 %v3448, %v3530
    %v3539 = vsub.f32 %v3520, %v3533
    %v3540 = vsub.f32 %v3523, %v3536
    %v3541 = vmul.f32 %v3537, 1.442695
    %v3542 = vpow.pop %v3541
    %v3543 = vmul.f32 %v3538, 1.442695
    %v3544 = vpow.pop %v3543
    %v3545 = vmul.f32 %v3539, 1.442695
    %v3546 = vpow.pop %v3545
    %v3547 = vmul.f32 %v3540, 1.442695
    %v3548 = vpow.pop %v3547
    %v3549 = vsel %vm699, %v3542, 0.0
    %3550 = vadd.xlane.f32.xlu0 %v3549
    %v3551 = vpop.xlane.xlu0 %3550
    %v3552 = vsel %vm703, %v3544, 0.0
    %3553 = vadd.xlane.f32.xlu0 %v3552
    %v3554 = vpop.xlane.xlu0 %3553
    %v3555 = vsel %vm699, %v3546, 0.0
    %3556 = vadd.xlane.f32.xlu0 %v3555
    %v3557 = vpop.xlane.xlu0 %3556
    %v3558 = vsel %vm703, %v3548, 0.0
    %3559 = vadd.xlane.f32.xlu0 %v3558
    %v3560 = vpop.xlane.xlu0 %3559
    %v3561 = vrcp.pop %v3551
    %v3562 = vrcp.pop %v3554
    %v3563 = vrcp.pop %v3557
    %v3564 = vrcp.pop %v3560
    %v3565 = vmul.f32 %v3542, %v3561
    %v3566 = vmul.f32 %v3544, %v3562
    %v3567 = vmul.f32 %v3546, %v3563
    %v3568 = vmul.f32 %v3548, %v3564
    %3569 = vst [vmem:[#allocation1] ss:$9 sm:$0xff] %v3000
    %s3570 = scalar_lea.vmem [#allocation1], 1
    %3571 = vst [vmem:[%s3570] ss:$9 sm:$0xff] %v3011
    %s3572 = scalar_lea.vmem [#allocation1], 2
    %3573 = vst [vmem:[%s3572] ss:$9 sm:$0xff] %v3012
    %s3574 = scalar_lea.vmem [#allocation1], 3
    %3575 = vst [vmem:[%s3574] ss:$9 sm:$0xff] %v3013
    %s3576 = scalar_lea.vmem [#allocation1], 4
    %3577 = vst [vmem:[%s3576] ss:$9 sm:$0xff] %v3014
    %s3578 = scalar_lea.vmem [#allocation1], 5
    %3579 = vst [vmem:[%s3578] ss:$9 sm:$0xff] %v3015
    %s3580 = scalar_lea.vmem [#allocation1], 6
    %3581 = vst [vmem:[%s3580] ss:$9 sm:$0xff] %v3016
    %s3582 = scalar_lea.vmem [#allocation1], 7
    %3583 = vst [vmem:[%s3582] ss:$9 sm:$0xff] %v3017
    %v3584 = vld [vmem:[#allocation1] sm:$0xff]
    %3585 = vst [vmem:[#allocation1] ss:$9 sm:$0xff] %v3003
    %v3586 = vld [vmem:[#allocation1] sm:$0xff]
    %3587 = vrot.lane.b32.xlu0 %v3584, 56
    %v3588 = vpop.permute.xlu0 %3587
    %3589 = vrot.lane.b32.xlu0 %v3586, 56
    %v3590 = vpop.permute.xlu0 %3589
    %v3593 = vsel %vm699, %v3565, 0
    %v3596 = vsel %vm699, %v3566, 0
    %v3598 = vsel %vm774, %v3590, 0
    %3600 = vmatpush.msra.mxu0 0.0
    %3601 = vmatpush.msra.mxu0 0.0
    %3602 = vmatpush.msra.mxu0 0.0
    %3603 = vmatpush.msra.mxu0 0.0
    %3604 = vmatpush.msra.mxu0 0.0
    %3605 = vmatpush.msra.mxu0 0.0
    %3606 = vmatpush.msra.mxu0 0.0
    %3607 = vmatpush.msra.mxu0 0.0
    %3608 = vmatpush.msra.mxu0 0.0
    %3609 = vmatpush.msra.mxu0 0.0
    %3610 = vmatpush.msra.mxu0 0.0
    %3611 = vmatpush.msra.mxu0 0.0
    %3612 = vmatpush.msra.mxu0 0.0
    %3613 = vmatpush.msra.mxu0 0.0
    %3614 = vmatpush.msra.mxu0 %v3598
    %3615 = vmatpush.msra.mxu0 %v3588
    %3616 = vmatmul.f32.gmra.mxu0 %v3593
    %v3617 = vpop.f32.mrf.mxu0
    %v3618 = vadd.f32 0.0, %v3617
    %3619 = vmatmul.f32.gmra.mxu0 %v3596
    %v3620 = vpop.f32.mrf.mxu0
    %v3621 = vadd.f32 0.0, %v3620
    %3622 = vdwg.mxu0
    %3623 = vst [vmem:[#allocation1] ss:$9 sm:$0xff] %v3018
    %s3624 = scalar_lea.vmem [#allocation1], 1
    %3625 = vst [vmem:[%s3624] ss:$9 sm:$0xff] %v3019
    %s3626 = scalar_lea.vmem [#allocation1], 2
    %3627 = vst [vmem:[%s3626] ss:$9 sm:$0xff] %v3020
    %s3628 = scalar_lea.vmem [#allocation1], 3
    %3629 = vst [vmem:[%s3628] ss:$9 sm:$0xff] %v3021
    %s3630 = scalar_lea.vmem [#allocation1], 4
    %3631 = vst [vmem:[%s3630] ss:$9 sm:$0xff] %v3022
    %s3632 = scalar_lea.vmem [#allocation1], 5
    %3633 = vst [vmem:[%s3632] ss:$9 sm:$0xff] %v3023
    %s3634 = scalar_lea.vmem [#allocation1], 6
    %3635 = vst [vmem:[%s3634] ss:$9 sm:$0xff] %v3024
    %s3636 = scalar_lea.vmem [#allocation1], 7
    %3637 = vst [vmem:[%s3636] ss:$9 sm:$0xff] %v3006
    %v3638 = vld [vmem:[#allocation1] sm:$0xff]
    %3639 = vst [vmem:[#allocation1] ss:$9 sm:$0xff] %v3025
    %v3640 = vld [vmem:[#allocation1] sm:$0xff]
    %3641 = vrot.lane.b32.xlu0 %v3638, 56
    %v3642 = vpop.permute.xlu0 %3641
    %3643 = vrot.lane.b32.xlu0 %v3640, 56
    %v3644 = vpop.permute.xlu0 %3643
    %v3647 = vsel %vm699, %v3567, 0
    %v3650 = vsel %vm699, %v3568, 0
    %v3652 = vsel %vm774, %v3644, 0
    %3654 = vmatpush.msra.mxu0 0.0
    %3655 = vmatpush.msra.mxu0 0.0
    %3656 = vmatpush.msra.mxu0 0.0
    %3657 = vmatpush.msra.mxu0 0.0
    %3658 = vmatpush.msra.mxu0 0.0
    %3659 = vmatpush.msra.mxu0 0.0
    %3660 = vmatpush.msra.mxu0 0.0
    %3661 = vmatpush.msra.mxu0 0.0
    %3662 = vmatpush.msra.mxu0 0.0
    %3663 = vmatpush.msra.mxu0 0.0
    %3664 = vmatpush.msra.mxu0 0.0
    %3665 = vmatpush.msra.mxu0 0.0
    %3666 = vmatpush.msra.mxu0 0.0
    %3667 = vmatpush.msra.mxu0 0.0
    %3668 = vmatpush.msra.mxu0 %v3652
    %3669 = vmatpush.msra.mxu0 %v3642
    %3670 = vmatmul.f32.gmra.mxu0 %v3647
    %v3671 = vpop.f32.mrf.mxu0
    %v3672 = vadd.f32 0.0, %v3671
    %3673 = vmatmul.f32.gmra.mxu0 %v3650
    %v3674 = vpop.f32.mrf.mxu0
    %v3675 = vadd.f32 0.0, %v3674
    %3676 = vdwg.mxu0
    %3681 = vrot.lane.b32.xlu0 %v3618, 8
    %v3682 = vpop.permute.xlu0 %3681
    %3683 = vrot.lane.b32.xlu0 %v3621, 8
    %v3684 = vpop.permute.xlu0 %3683
    %3685 = vrot.lane.b32.xlu0 %v3672, 8
    %v3686 = vpop.permute.xlu0 %3685
    %3687 = vrot.lane.b32.xlu0 %v3675, 8
    %v3688 = vpop.permute.xlu0 %3687
    %3693 = vst.msk [vmem:[#allocation3] sm:$0xff] %vm1177, %v3682
    %3694 = vst.msk [vmem:[#allocation3 + $0x8] sm:$0x1] %vm1179, %v3684
    %3695 = vst.msk [vmem:[#allocation3 + $0x10] sm:$0xff] %vm1177, %v3686
    %3696 = vst.msk [vmem:[#allocation3 + $0x18] sm:$0x1] %vm1179, %v3688
    %3697 = vst [vmem:[#allocation1] ss:$9 sm:$0xff] %v3041
    %s3698 = scalar_lea.vmem [#allocation1], 1
    %3699 = vst [vmem:[%s3698] ss:$9 sm:$0xff] %v3042
    %s3700 = scalar_lea.vmem [#allocation1], 2
    %3701 = vst [vmem:[%s3700] ss:$9 sm:$0xff] %v3043
    %s3702 = scalar_lea.vmem [#allocation1], 3
    %3703 = vst [vmem:[%s3702] ss:$9 sm:$0xff] %v3044
    %s3704 = scalar_lea.vmem [#allocation1], 4
    %3705 = vst [vmem:[%s3704] ss:$9 sm:$0xff] %v3045
    %s3706 = scalar_lea.vmem [#allocation1], 5
    %3707 = vst [vmem:[%s3706] ss:$9 sm:$0xff] %v3046
    %s3708 = scalar_lea.vmem [#allocation1], 6
    %3709 = vst [vmem:[%s3708] ss:$9 sm:$0xff] %v3047
    %s3710 = scalar_lea.vmem [#allocation1], 7
    %3711 = vst [vmem:[%s3710] ss:$9 sm:$0xff] %v3048
    %v3712 = vld [vmem:[#allocation1] sm:$0xff]
    %3713 = vst [vmem:[#allocation1] ss:$9 sm:$0xff] %v3049
    %v3714 = vld [vmem:[#allocation1] sm:$0xff]
    %3715 = vrot.lane.b32.xlu0 %v3712, 112
    %v3716 = vpop.permute.xlu0 %3715
    %3717 = vrot.lane.b32.xlu0 %v3714, 112
    %v3718 = vpop.permute.xlu0 %3717
    %3719 = vst [vmem:[#allocation1] ss:$9 sm:$0xff] %v3000
    %s3720 = scalar_lea.vmem [#allocation1], 1
    %3721 = vst [vmem:[%s3720] ss:$9 sm:$0xff] %v3011
    %s3722 = scalar_lea.vmem [#allocation1], 2
    %3723 = vst [vmem:[%s3722] ss:$9 sm:$0xff] %v3012
    %s3724 = scalar_lea.vmem [#allocation1], 3
    %3725 = vst [vmem:[%s3724] ss:$9 sm:$0xff] %v3013
    %s3726 = scalar_lea.vmem [#allocation1], 4
    %3727 = vst [vmem:[%s3726] ss:$9 sm:$0xff] %v3014
    %s3728 = scalar_lea.vmem [#allocation1], 5
    %3729 = vst [vmem:[%s3728] ss:$9 sm:$0xff] %v3015
    %s3730 = scalar_lea.vmem [#allocation1], 6
    %3731 = vst [vmem:[%s3730] ss:$9 sm:$0xff] %v3016
    %s3732 = scalar_lea.vmem [#allocation1], 7
    %3733 = vst [vmem:[%s3732] ss:$9 sm:$0xff] %v3017
    %v3734 = vld [vmem:[#allocation1] sm:$0xff]
    %3735 = vst [vmem:[#allocation1] ss:$9 sm:$0xff] %v3003
    %v3736 = vld [vmem:[#allocation1] sm:$0xff]
    %3737 = vrot.lane.b32.xlu0 %v3734, 80
    %v3738 = vpop.permute.xlu0 %3737
    %3739 = vrot.lane.b32.xlu0 %v3736, 80
    %v3740 = vpop.permute.xlu0 %3739
    %v3741 = vsel %vm587, %v3716, 0
    %v3743 = vsel %vm587, %v3718, 0
    %v3745 = vsel %vm587, %v3738, 0
    %v3747 = vsel %vm587, %v3740, 0
    %3749 = vmatpush.xpose.msra.mxu0 0.0
    %3750 = vmatpush.xpose.msra.mxu0 0.0
    %3751 = vmatpush.xpose.msra.mxu0 0.0
    %3752 = vmatpush.xpose.msra.mxu0 0.0
    %3753 = vmatpush.xpose.msra.mxu0 0.0
    %3754 = vmatpush.xpose.msra.mxu0 0.0
    %3755 = vmatpush.xpose.msra.mxu0 0.0
    %3756 = vmatpush.xpose.msra.mxu0 0.0
    %3757 = vmatpush.xpose.msra.mxu0 0.0
    %3758 = vmatpush.xpose.msra.mxu0 0.0
    %3759 = vmatpush.xpose.msra.mxu0 0.0
    %3760 = vmatpush.xpose.msra.mxu0 0.0
    %3761 = vmatpush.xpose.msra.mxu0 0.0
    %3762 = vmatpush.xpose.msra.mxu0 0.0
    %3763 = vmatpush.xpose.msra.mxu0 %v3747
    %3764 = vmatpush.xpose.msra.mxu0 %v3745
    %3765 = vmatmul.f32.gmra.mxu0 %v3741
    %v3766 = vpop.f32.mrf.mxu0
    %v3767 = vadd.f32 0.0, %v3766
    %3768 = vmatmul.f32.gmra.mxu0 %v3743
    %v3769 = vpop.f32.mrf.mxu0
    %v3770 = vadd.f32 0.0, %v3769
    %3771 = vdwg.mxu0
    %3772 = vst [vmem:[#allocation1] ss:$9 sm:$0xff] %v3050
    %s3773 = scalar_lea.vmem [#allocation1], 1
    %3774 = vst [vmem:[%s3773] ss:$9 sm:$0xff] %v3051
    %s3775 = scalar_lea.vmem [#allocation1], 2
    %3776 = vst [vmem:[%s3775] ss:$9 sm:$0xff] %v3052
    %s3777 = scalar_lea.vmem [#allocation1], 3
    %3778 = vst [vmem:[%s3777] ss:$9 sm:$0xff] %v3053
    %s3779 = scalar_lea.vmem [#allocation1], 4
    %3780 = vst [vmem:[%s3779] ss:$9 sm:$0xff] %v3054
    %s3781 = scalar_lea.vmem [#allocation1], 5
    %3782 = vst [vmem:[%s3781] ss:$9 sm:$0xff] %v3055
    %s3783 = scalar_lea.vmem [#allocation1], 6
    %3784 = vst [vmem:[%s3783] ss:$9 sm:$0xff] %v3056
    %s3785 = scalar_lea.vmem [#allocation1], 7
    %3786 = vst [vmem:[%s3785] ss:$9 sm:$0xff] %v3057
    %v3787 = vld [vmem:[#allocation1] sm:$0xff]
    %3788 = vst [vmem:[#allocation1] ss:$9 sm:$0xff] %v3058
    %v3789 = vld [vmem:[#allocation1] sm:$0xff]
    %3790 = vrot.lane.b32.xlu0 %v3787, 112
    %v3791 = vpop.permute.xlu0 %3790
    %3792 = vrot.lane.b32.xlu0 %v3789, 112
    %v3793 = vpop.permute.xlu0 %3792
    %3794 = vst [vmem:[#allocation1] ss:$9 sm:$0xff] %v3018
    %s3795 = scalar_lea.vmem [#allocation1], 1
    %3796 = vst [vmem:[%s3795] ss:$9 sm:$0xff] %v3019
    %s3797 = scalar_lea.vmem [#allocation1], 2
    %3798 = vst [vmem:[%s3797] ss:$9 sm:$0xff] %v3020
    %s3799 = scalar_lea.vmem [#allocation1], 3
    %3800 = vst [vmem:[%s3799] ss:$9 sm:$0xff] %v3021
    %s3801 = scalar_lea.vmem [#allocation1], 4
    %3802 = vst [vmem:[%s3801] ss:$9 sm:$0xff] %v3022
    %s3803 = scalar_lea.vmem [#allocation1], 5
    %3804 = vst [vmem:[%s3803] ss:$9 sm:$0xff] %v3023
    %s3805 = scalar_lea.vmem [#allocation1], 6
    %3806 = vst [vmem:[%s3805] ss:$9 sm:$0xff] %v3024
    %s3807 = scalar_lea.vmem [#allocation1], 7
    %3808 = vst [vmem:[%s3807] ss:$9 sm:$0xff] %v3006
    %v3809 = vld [vmem:[#allocation1] sm:$0xff]
    %3810 = vst [vmem:[#allocation1] ss:$9 sm:$0xff] %v3025
    %v3811 = vld [vmem:[#allocation1] sm:$0xff]
    %3812 = vrot.lane.b32.xlu0 %v3809, 80
    %v3813 = vpop.permute.xlu0 %3812
    %3814 = vrot.lane.b32.xlu0 %v3811, 80
    %v3815 = vpop.permute.xlu0 %3814
    %v3816 = vsel %vm587, %v3791, 0
    %v3818 = vsel %vm587, %v3793, 0
    %v3820 = vsel %vm587, %v3813, 0
    %v3822 = vsel %vm587, %v3815, 0
    %3824 = vmatpush.xpose.msra.mxu0 0.0
    %3825 = vmatpush.xpose.msra.mxu0 0.0
    %3826 = vmatpush.xpose.msra.mxu0 0.0
    %3827 = vmatpush.xpose.msra.mxu0 0.0
    %3828 = vmatpush.xpose.msra.mxu0 0.0
    %3829 = vmatpush.xpose.msra.mxu0 0.0
    %3830 = vmatpush.xpose.msra.mxu0 0.0
    %3831 = vmatpush.xpose.msra.mxu0 0.0
    %3832 = vmatpush.xpose.msra.mxu0 0.0
    %3833 = vmatpush.xpose.msra.mxu0 0.0
    %3834 = vmatpush.xpose.msra.mxu0 0.0
    %3835 = vmatpush.xpose.msra.mxu0 0.0
    %3836 = vmatpush.xpose.msra.mxu0 0.0
    %3837 = vmatpush.xpose.msra.mxu0 0.0
    %3838 = vmatpush.xpose.msra.mxu0 %v3822
    %3839 = vmatpush.xpose.msra.mxu0 %v3820
    %3840 = vmatmul.f32.gmra.mxu0 %v3816
    %v3841 = vpop.f32.mrf.mxu0
    %v3842 = vadd.f32 0.0, %v3841
    %3843 = vmatmul.f32.gmra.mxu0 %v3818
    %v3844 = vpop.f32.mrf.mxu0
    %v3845 = vadd.f32 0.0, %v3844
    %3846 = vdwg.mxu0
    %v3847 = vsel %vm699, %v3767, -inf
    %3848 = vmax.xlane.f32.xlu0 %v3847
    %v3849 = vpop.xlane.xlu0 %3848
    %v3850 = vsel %vm703, %v3770, -inf
    %3851 = vmax.xlane.f32.xlu0 %v3850
    %v3852 = vpop.xlane.xlu0 %3851
    %v3853 = vsel %vm699, %v3842, -inf
    %3854 = vmax.xlane.f32.xlu0 %v3853
    %v3855 = vpop.xlane.xlu0 %3854
    %v3856 = vsel %vm703, %v3845, -inf
    %3857 = vmax.xlane.f32.xlu0 %v3856
    %v3858 = vpop.xlane.xlu0 %3857
    %v3859 = vsub.f32 %v3767, %v3849
    %v3860 = vsub.f32 %v3770, %v3852
    %v3861 = vsub.f32 %v3842, %v3855
    %v3862 = vsub.f32 %v3845, %v3858
    %v3863 = vmul.f32 %v3859, 1.442695
    %v3864 = vpow.pop %v3863
    %v3865 = vmul.f32 %v3860, 1.442695
    %v3866 = vpow.pop %v3865
    %v3867 = vmul.f32 %v3861, 1.442695
    %v3868 = vpow.pop %v3867
    %v3869 = vmul.f32 %v3862, 1.442695
    %v3870 = vpow.pop %v3869
    %v3871 = vsel %vm699, %v3864, 0.0
    %3872 = vadd.xlane.f32.xlu0 %v3871
    %v3873 = vpop.xlane.xlu0 %3872
    %v3874 = vsel %vm703, %v3866, 0.0
    %3875 = vadd.xlane.f32.xlu0 %v3874
    %v3876 = vpop.xlane.xlu0 %3875
    %v3877 = vsel %vm699, %v3868, 0.0
    %3878 = vadd.xlane.f32.xlu0 %v3877
    %v3879 = vpop.xlane.xlu0 %3878
    %v3880 = vsel %vm703, %v3870, 0.0
    %3881 = vadd.xlane.f32.xlu0 %v3880
    %v3882 = vpop.xlane.xlu0 %3881
    %v3883 = vrcp.pop %v3873
    %v3884 = vrcp.pop %v3876
    %v3885 = vrcp.pop %v3879
    %v3886 = vrcp.pop %v3882
    %v3887 = vmul.f32 %v3864, %v3883
    %v3888 = vmul.f32 %v3866, %v3884
    %v3889 = vmul.f32 %v3868, %v3885
    %v3890 = vmul.f32 %v3870, %v3886
    %3891 = vst [vmem:[#allocation1] ss:$9 sm:$0xff] %v3000
    %s3892 = scalar_lea.vmem [#allocation1], 1
    %3893 = vst [vmem:[%s3892] ss:$9 sm:$0xff] %v3011
    %s3894 = scalar_lea.vmem [#allocation1], 2
    %3895 = vst [vmem:[%s3894] ss:$9 sm:$0xff] %v3012
    %s3896 = scalar_lea.vmem [#allocation1], 3
    %3897 = vst [vmem:[%s3896] ss:$9 sm:$0xff] %v3013
    %s3898 = scalar_lea.vmem [#allocation1], 4
    %3899 = vst [vmem:[%s3898] ss:$9 sm:$0xff] %v3014
    %s3900 = scalar_lea.vmem [#allocation1], 5
    %3901 = vst [vmem:[%s3900] ss:$9 sm:$0xff] %v3015
    %s3902 = scalar_lea.vmem [#allocation1], 6
    %3903 = vst [vmem:[%s3902] ss:$9 sm:$0xff] %v3016
    %s3904 = scalar_lea.vmem [#allocation1], 7
    %3905 = vst [vmem:[%s3904] ss:$9 sm:$0xff] %v3017
    %v3906 = vld [vmem:[#allocation1] sm:$0xff]
    %3907 = vst [vmem:[#allocation1] ss:$9 sm:$0xff] %v3003
    %v3908 = vld [vmem:[#allocation1] sm:$0xff]
    %3909 = vrot.lane.b32.xlu0 %v3906, 48
    %v3910 = vpop.permute.xlu0 %3909
    %3911 = vrot.lane.b32.xlu0 %v3908, 48
    %v3912 = vpop.permute.xlu0 %3911
    %v3915 = vsel %vm699, %v3887, 0
    %v3918 = vsel %vm699, %v3888, 0
    %v3920 = vsel %vm774, %v3912, 0
    %3922 = vmatpush.msra.mxu0 0.0
    %3923 = vmatpush.msra.mxu0 0.0
    %3924 = vmatpush.msra.mxu0 0.0
    %3925 = vmatpush.msra.mxu0 0.0
    %3926 = vmatpush.msra.mxu0 0.0
    %3927 = vmatpush.msra.mxu0 0.0
    %3928 = vmatpush.msra.mxu0 0.0
    %3929 = vmatpush.msra.mxu0 0.0
    %3930 = vmatpush.msra.mxu0 0.0
    %3931 = vmatpush.msra.mxu0 0.0
    %3932 = vmatpush.msra.mxu0 0.0
    %3933 = vmatpush.msra.mxu0 0.0
    %3934 = vmatpush.msra.mxu0 0.0
    %3935 = vmatpush.msra.mxu0 0.0
    %3936 = vmatpush.msra.mxu0 %v3920
    %3937 = vmatpush.msra.mxu0 %v3910
    %3938 = vmatmul.f32.gmra.mxu0 %v3915
    %v3939 = vpop.f32.mrf.mxu0
    %v3940 = vadd.f32 0.0, %v3939
    %3941 = vmatmul.f32.gmra.mxu0 %v3918
    %v3942 = vpop.f32.mrf.mxu0
    %v3943 = vadd.f32 0.0, %v3942
    %3944 = vdwg.mxu0
    %3945 = vst [vmem:[#allocation1] ss:$9 sm:$0xff] %v3018
    %s3946 = scalar_lea.vmem [#allocation1], 1
    %3947 = vst [vmem:[%s3946] ss:$9 sm:$0xff] %v3019
    %s3948 = scalar_lea.vmem [#allocation1], 2
    %3949 = vst [vmem:[%s3948] ss:$9 sm:$0xff] %v3020
    %s3950 = scalar_lea.vmem [#allocation1], 3
    %3951 = vst [vmem:[%s3950] ss:$9 sm:$0xff] %v3021
    %s3952 = scalar_lea.vmem [#allocation1], 4
    %3953 = vst [vmem:[%s3952] ss:$9 sm:$0xff] %v3022
    %s3954 = scalar_lea.vmem [#allocation1], 5
    %3955 = vst [vmem:[%s3954] ss:$9 sm:$0xff] %v3023
    %s3956 = scalar_lea.vmem [#allocation1], 6
    %3957 = vst [vmem:[%s3956] ss:$9 sm:$0xff] %v3024
    %s3958 = scalar_lea.vmem [#allocation1], 7
    %3959 = vst [vmem:[%s3958] ss:$9 sm:$0xff] %v3006
    %v3960 = vld [vmem:[#allocation1] sm:$0xff]
    %3961 = vst [vmem:[#allocation1] ss:$9 sm:$0xff] %v3025
    %v3962 = vld [vmem:[#allocation1] sm:$0xff]
    %3963 = vrot.lane.b32.xlu0 %v3960, 48
    %v3964 = vpop.permute.xlu0 %3963
    %3965 = vrot.lane.b32.xlu0 %v3962, 48
    %v3966 = vpop.permute.xlu0 %3965
    %v3969 = vsel %vm699, %v3889, 0
    %v3972 = vsel %vm699, %v3890, 0
    %v3974 = vsel %vm774, %v3966, 0
    %3976 = vmatpush.msra.mxu0 0.0
    %3977 = vmatpush.msra.mxu0 0.0
    %3978 = vmatpush.msra.mxu0 0.0
    %3979 = vmatpush.msra.mxu0 0.0
    %3980 = vmatpush.msra.mxu0 0.0
    %3981 = vmatpush.msra.mxu0 0.0
    %3982 = vmatpush.msra.mxu0 0.0
    %3983 = vmatpush.msra.mxu0 0.0
    %3984 = vmatpush.msra.mxu0 0.0
    %3985 = vmatpush.msra.mxu0 0.0
    %3986 = vmatpush.msra.mxu0 0.0
    %3987 = vmatpush.msra.mxu0 0.0
    %3988 = vmatpush.msra.mxu0 0.0
    %3989 = vmatpush.msra.mxu0 0.0
    %3990 = vmatpush.msra.mxu0 %v3974
    %3991 = vmatpush.msra.mxu0 %v3964
    %3992 = vmatmul.f32.gmra.mxu0 %v3969
    %v3993 = vpop.f32.mrf.mxu0
    %v3994 = vadd.f32 0.0, %v3993
    %3995 = vmatmul.f32.gmra.mxu0 %v3972
    %v3996 = vpop.f32.mrf.mxu0
    %v3997 = vadd.f32 0.0, %v3996
    %3998 = vdwg.mxu0
    %4003 = vrot.lane.b32.xlu0 %v3940, 16
    %v4004 = vpop.permute.xlu0 %4003
    %4005 = vrot.lane.b32.xlu0 %v3943, 16
    %v4006 = vpop.permute.xlu0 %4005
    %4007 = vrot.lane.b32.xlu0 %v3994, 16
    %v4008 = vpop.permute.xlu0 %4007
    %4009 = vrot.lane.b32.xlu0 %v3997, 16
    %v4010 = vpop.permute.xlu0 %4009
    %4015 = vst.msk [vmem:[#allocation3] sm:$0xff] %vm1501, %v4004
    %4016 = vst.msk [vmem:[#allocation3 + $0x8] sm:$0x1] %vm1503, %v4006
    %4017 = vst.msk [vmem:[#allocation3 + $0x10] sm:$0xff] %vm1501, %v4008
    %4018 = vst.msk [vmem:[#allocation3 + $0x18] sm:$0x1] %vm1503, %v4010
    %4019 = vst [vmem:[#allocation1] ss:$9 sm:$0xff] %v3041
    %s4020 = scalar_lea.vmem [#allocation1], 1
    %4021 = vst [vmem:[%s4020] ss:$9 sm:$0xff] %v3042
    %s4022 = scalar_lea.vmem [#allocation1], 2
    %4023 = vst [vmem:[%s4022] ss:$9 sm:$0xff] %v3043
    %s4024 = scalar_lea.vmem [#allocation1], 3
    %4025 = vst [vmem:[%s4024] ss:$9 sm:$0xff] %v3044
    %s4026 = scalar_lea.vmem [#allocation1], 4
    %4027 = vst [vmem:[%s4026] ss:$9 sm:$0xff] %v3045
    %s4028 = scalar_lea.vmem [#allocation1], 5
    %4029 = vst [vmem:[%s4028] ss:$9 sm:$0xff] %v3046
    %s4030 = scalar_lea.vmem [#allocation1], 6
    %4031 = vst [vmem:[%s4030] ss:$9 sm:$0xff] %v3047
    %s4032 = scalar_lea.vmem [#allocation1], 7
    %4033 = vst [vmem:[%s4032] ss:$9 sm:$0xff] %v3048
    %v4034 = vld [vmem:[#allocation1] sm:$0xff]
    %4035 = vst [vmem:[#allocation1] ss:$9 sm:$0xff] %v3049
    %v4036 = vld [vmem:[#allocation1] sm:$0xff]
    %4037 = vrot.lane.b32.xlu0 %v4034, 104
    %v4038 = vpop.permute.xlu0 %4037
    %4039 = vrot.lane.b32.xlu0 %v4036, 104
    %v4040 = vpop.permute.xlu0 %4039
    %4041 = vst [vmem:[#allocation1] ss:$9 sm:$0xff] %v3000
    %s4042 = scalar_lea.vmem [#allocation1], 1
    %4043 = vst [vmem:[%s4042] ss:$9 sm:$0xff] %v3011
    %s4044 = scalar_lea.vmem [#allocation1], 2
    %4045 = vst [vmem:[%s4044] ss:$9 sm:$0xff] %v3012
    %s4046 = scalar_lea.vmem [#allocation1], 3
    %4047 = vst [vmem:[%s4046] ss:$9 sm:$0xff] %v3013
    %s4048 = scalar_lea.vmem [#allocation1], 4
    %4049 = vst [vmem:[%s4048] ss:$9 sm:$0xff] %v3014
    %s4050 = scalar_lea.vmem [#allocation1], 5
    %4051 = vst [vmem:[%s4050] ss:$9 sm:$0xff] %v3015
    %s4052 = scalar_lea.vmem [#allocation1], 6
    %4053 = vst [vmem:[%s4052] ss:$9 sm:$0xff] %v3016
    %s4054 = scalar_lea.vmem [#allocation1], 7
    %4055 = vst [vmem:[%s4054] ss:$9 sm:$0xff] %v3017
    %v4056 = vld [vmem:[#allocation1] sm:$0xff]
    %4057 = vst [vmem:[#allocation1] ss:$9 sm:$0xff] %v3003
    %v4058 = vld [vmem:[#allocation1] sm:$0xff]
    %4059 = vrot.lane.b32.xlu0 %v4056, 72
    %v4060 = vpop.permute.xlu0 %4059
    %4061 = vrot.lane.b32.xlu0 %v4058, 72
    %v4062 = vpop.permute.xlu0 %4061
    %v4063 = vsel %vm587, %v4038, 0
    %v4065 = vsel %vm587, %v4040, 0
    %v4067 = vsel %vm587, %v4060, 0
    %v4069 = vsel %vm587, %v4062, 0
    %4071 = vmatpush.xpose.msra.mxu0 0.0
    %4072 = vmatpush.xpose.msra.mxu0 0.0
    %4073 = vmatpush.xpose.msra.mxu0 0.0
    %4074 = vmatpush.xpose.msra.mxu0 0.0
    %4075 = vmatpush.xpose.msra.mxu0 0.0
    %4076 = vmatpush.xpose.msra.mxu0 0.0
    %4077 = vmatpush.xpose.msra.mxu0 0.0
    %4078 = vmatpush.xpose.msra.mxu0 0.0
    %4079 = vmatpush.xpose.msra.mxu0 0.0
    %4080 = vmatpush.xpose.msra.mxu0 0.0
    %4081 = vmatpush.xpose.msra.mxu0 0.0
    %4082 = vmatpush.xpose.msra.mxu0 0.0
    %4083 = vmatpush.xpose.msra.mxu0 0.0
    %4084 = vmatpush.xpose.msra.mxu0 0.0
    %4085 = vmatpush.xpose.msra.mxu0 %v4069
    %4086 = vmatpush.xpose.msra.mxu0 %v4067
    %4087 = vmatmul.f32.gmra.mxu0 %v4063
    %v4088 = vpop.f32.mrf.mxu0
    %v4089 = vadd.f32 0.0, %v4088
    %4090 = vmatmul.f32.gmra.mxu0 %v4065
    %v4091 = vpop.f32.mrf.mxu0
    %v4092 = vadd.f32 0.0, %v4091
    %4093 = vdwg.mxu0
    %4094 = vst [vmem:[#allocation1] ss:$9 sm:$0xff] %v3050
    %s4095 = scalar_lea.vmem [#allocation1], 1
    %4096 = vst [vmem:[%s4095] ss:$9 sm:$0xff] %v3051
    %s4097 = scalar_lea.vmem [#allocation1], 2
    %4098 = vst [vmem:[%s4097] ss:$9 sm:$0xff] %v3052
    %s4099 = scalar_lea.vmem [#allocation1], 3
    %4100 = vst [vmem:[%s4099] ss:$9 sm:$0xff] %v3053
    %s4101 = scalar_lea.vmem [#allocation1], 4
    %4102 = vst [vmem:[%s4101] ss:$9 sm:$0xff] %v3054
    %s4103 = scalar_lea.vmem [#allocation1], 5
    %4104 = vst [vmem:[%s4103] ss:$9 sm:$0xff] %v3055
    %s4105 = scalar_lea.vmem [#allocation1], 6
    %4106 = vst [vmem:[%s4105] ss:$9 sm:$0xff] %v3056
    %s4107 = scalar_lea.vmem [#allocation1], 7
    %4108 = vst [vmem:[%s4107] ss:$9 sm:$0xff] %v3057
    %v4109 = vld [vmem:[#allocation1] sm:$0xff]
    %4110 = vst [vmem:[#allocation1] ss:$9 sm:$0xff] %v3058
    %v4111 = vld [vmem:[#allocation1] sm:$0xff]
    %4112 = vrot.lane.b32.xlu0 %v4109, 104
    %v4113 = vpop.permute.xlu0 %4112
    %4114 = vrot.lane.b32.xlu0 %v4111, 104
    %v4115 = vpop.permute.xlu0 %4114
    %4116 = vst [vmem:[#allocation1] ss:$9 sm:$0xff] %v3018
    %s4117 = scalar_lea.vmem [#allocation1], 1
    %4118 = vst [vmem:[%s4117] ss:$9 sm:$0xff] %v3019
    %s4119 = scalar_lea.vmem [#allocation1], 2
    %4120 = vst [vmem:[%s4119] ss:$9 sm:$0xff] %v3020
    %s4121 = scalar_lea.vmem [#allocation1], 3
    %4122 = vst [vmem:[%s4121] ss:$9 sm:$0xff] %v3021
    %s4123 = scalar_lea.vmem [#allocation1], 4
    %4124 = vst [vmem:[%s4123] ss:$9 sm:$0xff] %v3022
    %s4125 = scalar_lea.vmem [#allocation1], 5
    %4126 = vst [vmem:[%s4125] ss:$9 sm:$0xff] %v3023
    %s4127 = scalar_lea.vmem [#allocation1], 6
    %4128 = vst [vmem:[%s4127] ss:$9 sm:$0xff] %v3024
    %s4129 = scalar_lea.vmem [#allocation1], 7
    %4130 = vst [vmem:[%s4129] ss:$9 sm:$0xff] %v3006
    %v4131 = vld [vmem:[#allocation1] sm:$0xff]
    %4132 = vst [vmem:[#allocation1] ss:$9 sm:$0xff] %v3025
    %v4133 = vld [vmem:[#allocation1] sm:$0xff]
    %4134 = vrot.lane.b32.xlu0 %v4131, 72
    %v4135 = vpop.permute.xlu0 %4134
    %4136 = vrot.lane.b32.xlu0 %v4133, 72
    %v4137 = vpop.permute.xlu0 %4136
    %v4138 = vsel %vm587, %v4113, 0
    %v4140 = vsel %vm587, %v4115, 0
    %v4142 = vsel %vm587, %v4135, 0
    %v4144 = vsel %vm587, %v4137, 0
    %4146 = vmatpush.xpose.msra.mxu0 0.0
    %4147 = vmatpush.xpose.msra.mxu0 0.0
    %4148 = vmatpush.xpose.msra.mxu0 0.0
    %4149 = vmatpush.xpose.msra.mxu0 0.0
    %4150 = vmatpush.xpose.msra.mxu0 0.0
    %4151 = vmatpush.xpose.msra.mxu0 0.0
    %4152 = vmatpush.xpose.msra.mxu0 0.0
    %4153 = vmatpush.xpose.msra.mxu0 0.0
    %4154 = vmatpush.xpose.msra.mxu0 0.0
    %4155 = vmatpush.xpose.msra.mxu0 0.0
    %4156 = vmatpush.xpose.msra.mxu0 0.0
    %4157 = vmatpush.xpose.msra.mxu0 0.0
    %4158 = vmatpush.xpose.msra.mxu0 0.0
    %4159 = vmatpush.xpose.msra.mxu0 0.0
    %4160 = vmatpush.xpose.msra.mxu0 %v4144
    %4161 = vmatpush.xpose.msra.mxu0 %v4142
    %4162 = vmatmul.f32.gmra.mxu0 %v4138
    %v4163 = vpop.f32.mrf.mxu0
    %v4164 = vadd.f32 0.0, %v4163
    %4165 = vmatmul.f32.gmra.mxu0 %v4140
    %v4166 = vpop.f32.mrf.mxu0
    %v4167 = vadd.f32 0.0, %v4166
    %4168 = vdwg.mxu0
    %v4169 = vsel %vm699, %v4089, -inf
    %4170 = vmax.xlane.f32.xlu0 %v4169
    %v4171 = vpop.xlane.xlu0 %4170
    %v4172 = vsel %vm703, %v4092, -inf
    %4173 = vmax.xlane.f32.xlu0 %v4172
    %v4174 = vpop.xlane.xlu0 %4173
    %v4175 = vsel %vm699, %v4164, -inf
    %4176 = vmax.xlane.f32.xlu0 %v4175
    %v4177 = vpop.xlane.xlu0 %4176
    %v4178 = vsel %vm703, %v4167, -inf
    %4179 = vmax.xlane.f32.xlu0 %v4178
    %v4180 = vpop.xlane.xlu0 %4179
    %v4181 = vsub.f32 %v4089, %v4171
    %v4182 = vsub.f32 %v4092, %v4174
    %v4183 = vsub.f32 %v4164, %v4177
    %v4184 = vsub.f32 %v4167, %v4180
    %v4185 = vmul.f32 %v4181, 1.442695
    %v4186 = vpow.pop %v4185
    %v4187 = vmul.f32 %v4182, 1.442695
    %v4188 = vpow.pop %v4187
    %v4189 = vmul.f32 %v4183, 1.442695
    %v4190 = vpow.pop %v4189
    %v4191 = vmul.f32 %v4184, 1.442695
    %v4192 = vpow.pop %v4191
    %v4193 = vsel %vm699, %v4186, 0.0
    %4194 = vadd.xlane.f32.xlu0 %v4193
    %v4195 = vpop.xlane.xlu0 %4194
    %v4196 = vsel %vm703, %v4188, 0.0
    %4197 = vadd.xlane.f32.xlu0 %v4196
    %v4198 = vpop.xlane.xlu0 %4197
    %v4199 = vsel %vm699, %v4190, 0.0
    %4200 = vadd.xlane.f32.xlu0 %v4199
    %v4201 = vpop.xlane.xlu0 %4200
    %v4202 = vsel %vm703, %v4192, 0.0
    %4203 = vadd.xlane.f32.xlu0 %v4202
    %v4204 = vpop.xlane.xlu0 %4203
    %v4205 = vrcp.pop %v4195
    %v4206 = vrcp.pop %v4198
    %v4207 = vrcp.pop %v4201
    %v4208 = vrcp.pop %v4204
    %v4209 = vmul.f32 %v4186, %v4205
    %v4210 = vmul.f32 %v4188, %v4206
    %v4211 = vmul.f32 %v4190, %v4207
    %v4212 = vmul.f32 %v4192, %v4208
    %4213 = vst [vmem:[#allocation1] ss:$9 sm:$0xff] %v3000
    %s4214 = scalar_lea.vmem [#allocation1], 1
    %4215 = vst [vmem:[%s4214] ss:$9 sm:$0xff] %v3011
    %s4216 = scalar_lea.vmem [#allocation1], 2
    %4217 = vst [vmem:[%s4216] ss:$9 sm:$0xff] %v3012
    %s4218 = scalar_lea.vmem [#allocation1], 3
    %4219 = vst [vmem:[%s4218] ss:$9 sm:$0xff] %v3013
    %s4220 = scalar_lea.vmem [#allocation1], 4
    %4221 = vst [vmem:[%s4220] ss:$9 sm:$0xff] %v3014
    %s4222 = scalar_lea.vmem [#allocation1], 5
    %4223 = vst [vmem:[%s4222] ss:$9 sm:$0xff] %v3015
    %s4224 = scalar_lea.vmem [#allocation1], 6
    %4225 = vst [vmem:[%s4224] ss:$9 sm:$0xff] %v3016
    %s4226 = scalar_lea.vmem [#allocation1], 7
    %4227 = vst [vmem:[%s4226] ss:$9 sm:$0xff] %v3017
    %v4228 = vld [vmem:[#allocation1] sm:$0xff]
    %4229 = vst [vmem:[#allocation1] ss:$9 sm:$0xff] %v3003
    %v4230 = vld [vmem:[#allocation1] sm:$0xff]
    %4231 = vrot.lane.b32.xlu0 %v4228, 40
    %v4232 = vpop.permute.xlu0 %4231
    %4233 = vrot.lane.b32.xlu0 %v4230, 40
    %v4234 = vpop.permute.xlu0 %4233
    %v4237 = vsel %vm699, %v4209, 0
    %v4240 = vsel %vm699, %v4210, 0
    %v4242 = vsel %vm774, %v4234, 0
    %4244 = vmatpush.msra.mxu0 0.0
    %4245 = vmatpush.msra.mxu0 0.0
    %4246 = vmatpush.msra.mxu0 0.0
    %4247 = vmatpush.msra.mxu0 0.0
    %4248 = vmatpush.msra.mxu0 0.0
    %4249 = vmatpush.msra.mxu0 0.0
    %4250 = vmatpush.msra.mxu0 0.0
    %4251 = vmatpush.msra.mxu0 0.0
    %4252 = vmatpush.msra.mxu0 0.0
    %4253 = vmatpush.msra.mxu0 0.0
    %4254 = vmatpush.msra.mxu0 0.0
    %4255 = vmatpush.msra.mxu0 0.0
    %4256 = vmatpush.msra.mxu0 0.0
    %4257 = vmatpush.msra.mxu0 0.0
    %4258 = vmatpush.msra.mxu0 %v4242
    %4259 = vmatpush.msra.mxu0 %v4232
    %4260 = vmatmul.f32.gmra.mxu0 %v4237
    %v4261 = vpop.f32.mrf.mxu0
    %v4262 = vadd.f32 0.0, %v4261
    %4263 = vmatmul.f32.gmra.mxu0 %v4240
    %v4264 = vpop.f32.mrf.mxu0
    %v4265 = vadd.f32 0.0, %v4264
    %4266 = vdwg.mxu0
    %4267 = vst [vmem:[#allocation1] ss:$9 sm:$0xff] %v3018
    %s4268 = scalar_lea.vmem [#allocation1], 1
    %4269 = vst [vmem:[%s4268] ss:$9 sm:$0xff] %v3019
    %s4270 = scalar_lea.vmem [#allocation1], 2
    %4271 = vst [vmem:[%s4270] ss:$9 sm:$0xff] %v3020
    %s4272 = scalar_lea.vmem [#allocation1], 3
    %4273 = vst [vmem:[%s4272] ss:$9 sm:$0xff] %v3021
    %s4274 = scalar_lea.vmem [#allocation1], 4
    %4275 = vst [vmem:[%s4274] ss:$9 sm:$0xff] %v3022
    %s4276 = scalar_lea.vmem [#allocation1], 5
    %4277 = vst [vmem:[%s4276] ss:$9 sm:$0xff] %v3023
    %s4278 = scalar_lea.vmem [#allocation1], 6
    %4279 = vst [vmem:[%s4278] ss:$9 sm:$0xff] %v3024
    %s4280 = scalar_lea.vmem [#allocation1], 7
    %4281 = vst [vmem:[%s4280] ss:$9 sm:$0xff] %v3006
    %v4282 = vld [vmem:[#allocation1] sm:$0xff]
    %4283 = vst [vmem:[#allocation1] ss:$9 sm:$0xff] %v3025
    %v4284 = vld [vmem:[#allocation1] sm:$0xff]
    %4285 = vrot.lane.b32.xlu0 %v4282, 40
    %v4286 = vpop.permute.xlu0 %4285
    %4287 = vrot.lane.b32.xlu0 %v4284, 40
    %v4288 = vpop.permute.xlu0 %4287
    %v4291 = vsel %vm699, %v4211, 0
    %v4294 = vsel %vm699, %v4212, 0
    %v4296 = vsel %vm774, %v4288, 0
    %4298 = vmatpush.msra.mxu0 0.0
    %4299 = vmatpush.msra.mxu0 0.0
    %4300 = vmatpush.msra.mxu0 0.0
    %4301 = vmatpush.msra.mxu0 0.0
    %4302 = vmatpush.msra.mxu0 0.0
    %4303 = vmatpush.msra.mxu0 0.0
    %4304 = vmatpush.msra.mxu0 0.0
    %4305 = vmatpush.msra.mxu0 0.0
    %4306 = vmatpush.msra.mxu0 0.0
    %4307 = vmatpush.msra.mxu0 0.0
    %4308 = vmatpush.msra.mxu0 0.0
    %4309 = vmatpush.msra.mxu0 0.0
    %4310 = vmatpush.msra.mxu0 0.0
    %4311 = vmatpush.msra.mxu0 0.0
    %4312 = vmatpush.msra.mxu0 %v4296
    %4313 = vmatpush.msra.mxu0 %v4286
    %4314 = vmatmul.f32.gmra.mxu0 %v4291
    %v4315 = vpop.f32.mrf.mxu0
    %v4316 = vadd.f32 0.0, %v4315
    %4317 = vmatmul.f32.gmra.mxu0 %v4294
    %v4318 = vpop.f32.mrf.mxu0
    %v4319 = vadd.f32 0.0, %v4318
    %4320 = vdwg.mxu0
    %4325 = vrot.lane.b32.xlu0 %v4262, 24
    %v4326 = vpop.permute.xlu0 %4325
    %4327 = vrot.lane.b32.xlu0 %v4265, 24
    %v4328 = vpop.permute.xlu0 %4327
    %4329 = vrot.lane.b32.xlu0 %v4316, 24
    %v4330 = vpop.permute.xlu0 %4329
    %4331 = vrot.lane.b32.xlu0 %v4319, 24
    %v4332 = vpop.permute.xlu0 %4331
    %4337 = vst.msk [vmem:[#allocation3] sm:$0xff] %vm1825, %v4326
    %4338 = vst.msk [vmem:[#allocation3 + $0x8] sm:$0x1] %vm1827, %v4328
    %4339 = vst.msk [vmem:[#allocation3 + $0x10] sm:$0xff] %vm1825, %v4330
    %4340 = vst.msk [vmem:[#allocation3 + $0x18] sm:$0x1] %vm1827, %v4332
    %v4341 = vld [vmem:[#allocation3] sm:$0xff]
    %v4342 = vld [vmem:[#allocation3 + $0x8] sm:$0x1]
    %v4343 = vld [vmem:[#allocation3 + $0x10] sm:$0xff]
    %v4344 = vld [vmem:[#allocation3 + $0x18] sm:$0x1]
    %v4349 = vrot.slane %v4341, 1
    %v4350 = vrot.slane %v4341, 2
    %v4351 = vrot.slane %v4341, 3
    %v4352 = vrot.slane %v4341, 4
    %v4353 = vrot.slane %v4341, 5
    %v4354 = vrot.slane %v4341, 6
    %v4355 = vrot.slane %v4341, 7
    %v4356 = vrot.slane %v4343, 1
    %v4357 = vrot.slane %v4343, 2
    %v4358 = vrot.slane %v4343, 3
    %v4359 = vrot.slane %v4343, 4
    %v4360 = vrot.slane %v4343, 5
    %v4361 = vrot.slane %v4343, 6
    %v4362 = vrot.slane %v4343, 7
    %v4364 = vperm.slane %v2900, 0
    %4366 = vst [vmem:[#allocation1] ss:$9 sm:$0xff] %v4341
    %s4367 = scalar_lea.vmem [#allocation1], 1
    %4368 = vst [vmem:[%s4367] ss:$9 sm:$0xff] %v4349
    %s4369 = scalar_lea.vmem [#allocation1], 2
    %4370 = vst [vmem:[%s4369] ss:$9 sm:$0xff] %v4350
    %s4371 = scalar_lea.vmem [#allocation1], 3
    %4372 = vst [vmem:[%s4371] ss:$9 sm:$0xff] %v4351
    %s4373 = scalar_lea.vmem [#allocation1], 4
    %4374 = vst [vmem:[%s4373] ss:$9 sm:$0xff] %v4352
    %s4375 = scalar_lea.vmem [#allocation1], 5
    %4376 = vst [vmem:[%s4375] ss:$9 sm:$0xff] %v4353
    %s4377 = scalar_lea.vmem [#allocation1], 6
    %4378 = vst [vmem:[%s4377] ss:$9 sm:$0xff] %v4354
    %s4379 = scalar_lea.vmem [#allocation1], 7
    %4380 = vst [vmem:[%s4379] ss:$9 sm:$0xff] %v4355
    %v4381 = vld [vmem:[#allocation1] sm:$0xff]
    %4382 = vst [vmem:[#allocation1] ss:$9 sm:$0xff] %v4342
    %4383 = vst [vmem:[%s4367] ss:$9 sm:$0xff] %v4343
    %4384 = vst [vmem:[%s4369] ss:$9 sm:$0xff] %v4356
    %4385 = vst [vmem:[%s4371] ss:$9 sm:$0xff] %v4357
    %4386 = vst [vmem:[%s4373] ss:$9 sm:$0xff] %v4358
    %4387 = vst [vmem:[%s4375] ss:$9 sm:$0xff] %v4359
    %4388 = vst [vmem:[%s4377] ss:$9 sm:$0xff] %v4360
    %4389 = vst [vmem:[%s4379] ss:$9 sm:$0xff] %v4361
    %v4390 = vld [vmem:[#allocation1] sm:$0xff]
    %4391 = vst [vmem:[#allocation1] ss:$9 sm:$0xff] %v4362
    %4392 = vst [vmem:[%s4367] ss:$9 sm:$0xff] %v4344
    %v4393 = vld [vmem:[#allocation1] sm:$0xff]
    %v4394 = vsel %vm232, %v4381, 0
    %v4396 = vsel %vm232, %v4390, 0
    %v4398 = vsel %vm232, %v4393, 0
    %4400 = vmatpush.msra.mxu0 0.0
    %4401 = vmatpush.msra.mxu0 0.0
    %4402 = vmatpush.msra.mxu0 0.0
    %4403 = vmatpush.msra.mxu0 0.0
    %4404 = vmatpush.msra.mxu0 0.0
    %4405 = vmatpush.msra.mxu0 0.0
    %4406 = vmatpush.msra.mxu0 0.0
    %4407 = vmatpush.msra.mxu0 0.0
    %4408 = vmatpush.msra.mxu0 0.0
    %4409 = vmatpush.msra.mxu0 0.0
    %4410 = vmatpush.msra.mxu0 0.0
    %4411 = vmatpush.msra.mxu0 0.0
    %4412 = vmatpush.msra.mxu0 %v2898
    %4413 = vmatpush.msra.mxu0 %v2897
    %4414 = vmatpush.msra.mxu0 %v2896
    %4415 = vmatpush.msra.mxu0 %v2895
    %4416 = vmatmul.f32.gmra.mxu0 %v4394
    %v4417 = vpop.f32.mrf.mxu0
    %v4418 = vadd.f32 %v4364, %v4417
    %4419 = vmatmul.f32.gmra.mxu0 %v4396
    %v4420 = vpop.f32.mrf.mxu0
    %v4421 = vadd.f32 %v4364, %v4420
    %4422 = vmatmul.f32.gmra.mxu0 %v4398
    %v4423 = vpop.f32.mrf.mxu0
    %v4424 = vadd.f32 %v4364, %v4423
    %4425 = vdwg.mxu0
    %v4429 = vrot.slane %v4418, 1
    %v4430 = vrot.slane %v4418, 2
    %v4431 = vrot.slane %v4418, 3
    %v4432 = vrot.slane %v4418, 4
    %v4433 = vrot.slane %v4418, 5
    %v4434 = vrot.slane %v4418, 6
    %v4435 = vrot.slane %v4418, 7
    %v4436 = vrot.slane %v4421, 1
    %v4437 = vrot.slane %v4421, 2
    %v4438 = vrot.slane %v4421, 3
    %v4439 = vrot.slane %v4421, 4
    %v4440 = vrot.slane %v4421, 5
    %v4441 = vrot.slane %v4421, 6
    %v4442 = vrot.slane %v4421, 7
    %v4443 = vrot.slane %v4424, 1
    %v4459 = vadd.f32 %v2869, %v4418
    %v4460 = vadd.f32 %v2870, %v4429
    %v4461 = vadd.f32 %v2871, %v4430
    %v4462 = vadd.f32 %v2872, %v4431
    %v4463 = vadd.f32 %v2873, %v4432
    %v4464 = vadd.f32 %v2874, %v4433
    %v4465 = vadd.f32 %v2875, %v4434
    %v4466 = vadd.f32 %v2876, %v4435
    %v4467 = vadd.f32 %v2877, %v4421
    %v4468 = vadd.f32 %v2878, %v4436
    %v4469 = vadd.f32 %v2879, %v4437
    %v4470 = vadd.f32 %v2880, %v4438
    %v4471 = vadd.f32 %v2881, %v4439
    %v4472 = vadd.f32 %v2882, %v4440
    %v4473 = vadd.f32 %v2883, %v4441
    %v4474 = vadd.f32 %v2884, %v4442
    %v4475 = vadd.f32 %v2885, %v4424
    %v4476 = vadd.f32 %v2886, %v4443
    %4495 = vst [vmem:[#allocation1] ss:$9 sm:$0xff] %v4459
    %s4496 = scalar_lea.vmem [#allocation1], 1
    %4497 = vst [vmem:[%s4496] ss:$9 sm:$0xff] %v4460
    %s4498 = scalar_lea.vmem [#allocation1], 2
    %4499 = vst [vmem:[%s4498] ss:$9 sm:$0xff] %v4461
    %s4500 = scalar_lea.vmem [#allocation1], 3
    %4501 = vst [vmem:[%s4500] ss:$9 sm:$0xff] %v4462
    %s4502 = scalar_lea.vmem [#allocation1], 4
    %4503 = vst [vmem:[%s4502] ss:$9 sm:$0xff] %v4463
    %s4504 = scalar_lea.vmem [#allocation1], 5
    %4505 = vst [vmem:[%s4504] ss:$9 sm:$0xff] %v4464
    %s4506 = scalar_lea.vmem [#allocation1], 6
    %4507 = vst [vmem:[%s4506] ss:$9 sm:$0xff] %v4465
    %s4508 = scalar_lea.vmem [#allocation1], 7
    %4509 = vst [vmem:[%s4508] ss:$9 sm:$0xff] %v4466
    %v4510 = vld [vmem:[#allocation1] sm:$0xff]
    %4511 = vst [vmem:[#allocation1] ss:$9 sm:$0xff] %v4467
    %4512 = vst [vmem:[%s4496] ss:$9 sm:$0xff] %v4468
    %4513 = vst [vmem:[%s4498] ss:$9 sm:$0xff] %v4469
    %4514 = vst [vmem:[%s4500] ss:$9 sm:$0xff] %v4470
    %4515 = vst [vmem:[%s4502] ss:$9 sm:$0xff] %v4471
    %4516 = vst [vmem:[%s4504] ss:$9 sm:$0xff] %v4472
    %4517 = vst [vmem:[%s4506] ss:$9 sm:$0xff] %v4473
    %4518 = vst [vmem:[%s4508] ss:$9 sm:$0xff] %v4474
    %v4519 = vld [vmem:[#allocation1] sm:$0xff]
    %4520 = vst [vmem:[#allocation1] ss:$9 sm:$0xff] %v4475
    %4521 = vst [vmem:[%s4496] ss:$9 sm:$0xff] %v4476
    %v4522 = vld [vmem:[#allocation1] sm:$0xff]
    %v4526 = vsel %vm232, %v4510, 0.0
    %4527 = vadd.xlane.f32.xlu0 %v4526
    %v4528 = vpop.xlane.xlu0 %4527
    %v4529 = vsel %vm232, %v4519, 0.0
    %4530 = vadd.xlane.f32.xlu0 %v4529
    %v4531 = vpop.xlane.xlu0 %4530
    %v4532 = vsel %vm2022, %v4522, 0.0
    %4533 = vadd.xlane.f32.xlu0 %v4532
    %v4534 = vpop.xlane.xlu0 %4533
    %v4535 = vmul.f32 %v4528, %v2032
    %v4536 = vmul.f32 %v4531, %v2032
    %v4537 = vmul.f32 %v4534, %v2032
    %v4541 = vperm.slane %v4535, 0
    %v4542 = vperm.slane %v4535, 1
    %v4543 = vperm.slane %v4535, 2
    %v4544 = vperm.slane %v4535, 3
    %v4545 = vperm.slane %v4535, 4
    %v4546 = vperm.slane %v4535, 5
    %v4547 = vperm.slane %v4535, 6
    %v4548 = vperm.slane %v4535, 7
    %v4549 = vperm.slane %v4536, 0
    %v4550 = vperm.slane %v4536, 1
    %v4551 = vperm.slane %v4536, 2
    %v4552 = vperm.slane %v4536, 3
    %v4553 = vperm.slane %v4536, 4
    %v4554 = vperm.slane %v4536, 5
    %v4555 = vperm.slane %v4536, 6
    %v4556 = vperm.slane %v4536, 7
    %v4557 = vperm.slane %v4537, 0
    %v4558 = vperm.slane %v4537, 1
    %v4577 = vsub.f32 %v4459, %v4541
    %v4578 = vsub.f32 %v4460, %v4542
    %v4579 = vsub.f32 %v4461, %v4543
    %v4580 = vsub.f32 %v4462, %v4544
    %v4581 = vsub.f32 %v4463, %v4545
    %v4582 = vsub.f32 %v4464, %v4546
    %v4583 = vsub.f32 %v4465, %v4547
    %v4584 = vsub.f32 %v4466, %v4548
    %v4585 = vsub.f32 %v4467, %v4549
    %v4586 = vsub.f32 %v4468, %v4550
    %v4587 = vsub.f32 %v4469, %v4551
    %v4588 = vsub.f32 %v4470, %v4552
    %v4589 = vsub.f32 %v4471, %v4553
    %v4590 = vsub.f32 %v4472, %v4554
    %v4591 = vsub.f32 %v4473, %v4555
    %v4592 = vsub.f32 %v4474, %v4556
    %v4593 = vsub.f32 %v4475, %v4557
    %v4594 = vsub.f32 %v4476, %v4558
    %v4595 = vmul.f32 %v4577, %v4577
    %v4596 = vmul.f32 %v4578, %v4578
    %v4597 = vmul.f32 %v4579, %v4579
    %v4598 = vmul.f32 %v4580, %v4580
    %v4599 = vmul.f32 %v4581, %v4581
    %v4600 = vmul.f32 %v4582, %v4582
    %v4601 = vmul.f32 %v4583, %v4583
    %v4602 = vmul.f32 %v4584, %v4584
    %v4603 = vmul.f32 %v4585, %v4585
    %v4604 = vmul.f32 %v4586, %v4586
    %v4605 = vmul.f32 %v4587, %v4587
    %v4606 = vmul.f32 %v4588, %v4588
    %v4607 = vmul.f32 %v4589, %v4589
    %v4608 = vmul.f32 %v4590, %v4590
    %v4609 = vmul.f32 %v4591, %v4591
    %v4610 = vmul.f32 %v4592, %v4592
    %v4611 = vmul.f32 %v4593, %v4593
    %v4612 = vmul.f32 %v4594, %v4594
    %4631 = vst [vmem:[#allocation1] ss:$9 sm:$0xff] %v4595
    %s4632 = scalar_lea.vmem [#allocation1], 1
    %4633 = vst [vmem:[%s4632] ss:$9 sm:$0xff] %v4596
    %s4634 = scalar_lea.vmem [#allocation1], 2
    %4635 = vst [vmem:[%s4634] ss:$9 sm:$0xff] %v4597
    %s4636 = scalar_lea.vmem [#allocation1], 3
    %4637 = vst [vmem:[%s4636] ss:$9 sm:$0xff] %v4598
    %s4638 = scalar_lea.vmem [#allocation1], 4
    %4639 = vst [vmem:[%s4638] ss:$9 sm:$0xff] %v4599
    %s4640 = scalar_lea.vmem [#allocation1], 5
    %4641 = vst [vmem:[%s4640] ss:$9 sm:$0xff] %v4600
    %s4642 = scalar_lea.vmem [#allocation1], 6
    %4643 = vst [vmem:[%s4642] ss:$9 sm:$0xff] %v4601
    %s4644 = scalar_lea.vmem [#allocation1], 7
    %4645 = vst [vmem:[%s4644] ss:$9 sm:$0xff] %v4602
    %v4646 = vld [vmem:[#allocation1] sm:$0xff]
    %4647 = vst [vmem:[#allocation1] ss:$9 sm:$0xff] %v4603
    %4648 = vst [vmem:[%s4632] ss:$9 sm:$0xff] %v4604
    %4649 = vst [vmem:[%s4634] ss:$9 sm:$0xff] %v4605
    %4650 = vst [vmem:[%s4636] ss:$9 sm:$0xff] %v4606
    %4651 = vst [vmem:[%s4638] ss:$9 sm:$0xff] %v4607
    %4652 = vst [vmem:[%s4640] ss:$9 sm:$0xff] %v4608
    %4653 = vst [vmem:[%s4642] ss:$9 sm:$0xff] %v4609
    %4654 = vst [vmem:[%s4644] ss:$9 sm:$0xff] %v4610
    %v4655 = vld [vmem:[#allocation1] sm:$0xff]
    %4656 = vst [vmem:[#allocation1] ss:$9 sm:$0xff] %v4611
    %4657 = vst [vmem:[%s4632] ss:$9 sm:$0xff] %v4612
    %v4658 = vld [vmem:[#allocation1] sm:$0xff]
    %v4662 = vsel %vm232, %v4646, 0.0
    %4663 = vadd.xlane.f32.xlu0 %v4662
    %v4664 = vpop.xlane.xlu0 %4663
    %v4665 = vsel %vm232, %v4655, 0.0
    %4666 = vadd.xlane.f32.xlu0 %v4665
    %v4667 = vpop.xlane.xlu0 %4666
    %v4668 = vsel %vm2022, %v4658, 0.0
    %4669 = vadd.xlane.f32.xlu0 %v4668
    %v4670 = vpop.xlane.xlu0 %4669
    %v4671 = vmul.f32 %v4664, %v2032
    %v4672 = vmul.f32 %v4667, %v2032
    %v4673 = vmul.f32 %v4670, %v2032
    %v4674 = vadd.f32 %v4671, 1e-05
    %v4675 = vadd.f32 %v4672, 1e-05
    %v4676 = vadd.f32 %v4673, 1e-05
    %v4677 = vrsqrt.pop %v4674
    %v4678 = vmul.f32 %v4677, %v4674
    %v4679 = vmul.f32 %v4678, %v4677
    %v4680 = vmul.f32 0.5, %v4679
    %v4681 = vsub.f32 1.5, %v4680
    %v4682 = vmul.f32 %v4677, %v4681
    %vm4683 = vweird.f32 %v4674
    %vm4684 = vweird.f32 %v4677
    %vm4685 = vmor %vm4683, %vm4684
    %v4686 = vsel %vm4685, %v4677, %v4682
    %v4687 = vrsqrt.pop %v4675
    %v4688 = vmul.f32 %v4687, %v4675
    %v4689 = vmul.f32 %v4688, %v4687
    %v4690 = vmul.f32 0.5, %v4689
    %v4691 = vsub.f32 1.5, %v4690
    %v4692 = vmul.f32 %v4687, %v4691
    %vm4693 = vweird.f32 %v4675
    %vm4694 = vweird.f32 %v4687
    %vm4695 = vmor %vm4693, %vm4694
    %v4696 = vsel %vm4695, %v4687, %v4692
    %v4697 = vrsqrt.pop %v4676
    %v4698 = vmul.f32 %v4697, %v4676
    %v4699 = vmul.f32 %v4698, %v4697
    %v4700 = vmul.f32 0.5, %v4699
    %v4701 = vsub.f32 1.5, %v4700
    %v4702 = vmul.f32 %v4697, %v4701
    %vm4703 = vweird.f32 %v4676
    %vm4704 = vweird.f32 %v4697
    %vm4705 = vmor %vm4703, %vm4704
    %v4706 = vsel %vm4705, %v4697, %v4702
    %v4710 = vperm.slane %v4686, 0
    %v4711 = vperm.slane %v4686, 1
    %v4712 = vperm.slane %v4686, 2
    %v4713 = vperm.slane %v4686, 3
    %v4714 = vperm.slane %v4686, 4
    %v4715 = vperm.slane %v4686, 5
    %v4716 = vperm.slane %v4686, 6
    %v4717 = vperm.slane %v4686, 7
    %v4718 = vperm.slane %v4696, 0
    %v4719 = vperm.slane %v4696, 1
    %v4720 = vperm.slane %v4696, 2
    %v4721 = vperm.slane %v4696, 3
    %v4722 = vperm.slane %v4696, 4
    %v4723 = vperm.slane %v4696, 5
    %v4724 = vperm.slane %v4696, 6
    %v4725 = vperm.slane %v4696, 7
    %v4726 = vperm.slane %v4706, 0
    %v4727 = vperm.slane %v4706, 1
    %v4746 = vmul.f32 %v4577, %v4710
    %v4747 = vmul.f32 %v4578, %v4711
    %v4748 = vmul.f32 %v4579, %v4712
    %v4749 = vmul.f32 %v4580, %v4713
    %v4750 = vmul.f32 %v4581, %v4714
    %v4751 = vmul.f32 %v4582, %v4715
    %v4752 = vmul.f32 %v4583, %v4716
    %v4753 = vmul.f32 %v4584, %v4717
    %v4754 = vmul.f32 %v4585, %v4718
    %v4755 = vmul.f32 %v4586, %v4719
    %v4756 = vmul.f32 %v4587, %v4720
    %v4757 = vmul.f32 %v4588, %v4721
    %v4758 = vmul.f32 %v4589, %v4722
    %v4759 = vmul.f32 %v4590, %v4723
    %v4760 = vmul.f32 %v4591, %v4724
    %v4761 = vmul.f32 %v4592, %v4725
    %v4762 = vmul.f32 %v4593, %v4726
    %v4763 = vmul.f32 %v4594, %v4727
    %v4765 = vperm.slane %v2902, 0
    %v4767 = vrot.slane %v4765, 1
    %v4768 = vrot.slane %v4765, 2
    %v4769 = vrot.slane %v4765, 3
    %v4770 = vrot.slane %v4765, 4
    %v4771 = vrot.slane %v4765, 5
    %v4772 = vrot.slane %v4765, 6
    %v4773 = vrot.slane %v4765, 7
    %v4781 = vmul.f32 %v4746, %v4765
    %v4782 = vmul.f32 %v4747, %v4767
    %v4783 = vmul.f32 %v4748, %v4768
    %v4784 = vmul.f32 %v4749, %v4769
    %v4785 = vmul.f32 %v4750, %v4770
    %v4786 = vmul.f32 %v4751, %v4771
    %v4787 = vmul.f32 %v4752, %v4772
    %v4788 = vmul.f32 %v4753, %v4773
    %v4789 = vmul.f32 %v4754, %v4765
    %v4790 = vmul.f32 %v4755, %v4767
    %v4791 = vmul.f32 %v4756, %v4768
    %v4792 = vmul.f32 %v4757, %v4769
    %v4793 = vmul.f32 %v4758, %v4770
    %v4794 = vmul.f32 %v4759, %v4771
    %v4795 = vmul.f32 %v4760, %v4772
    %v4796 = vmul.f32 %v4761, %v4773
    %v4797 = vmul.f32 %v4762, %v4765
    %v4798 = vmul.f32 %v4763, %v4767
    %v4800 = vperm.slane %v2904, 0
    %v4802 = vrot.slane %v4800, 1
    %v4803 = vrot.slane %v4800, 2
    %v4804 = vrot.slane %v4800, 3
    %v4805 = vrot.slane %v4800, 4
    %v4806 = vrot.slane %v4800, 5
    %v4807 = vrot.slane %v4800, 6
    %v4808 = vrot.slane %v4800, 7
    %v4816 = vadd.f32 %v4781, %v4800
    %v4817 = vadd.f32 %v4782, %v4802
    %v4818 = vadd.f32 %v4783, %v4803
    %v4819 = vadd.f32 %v4784, %v4804
    %v4820 = vadd.f32 %v4785, %v4805
    %v4821 = vadd.f32 %v4786, %v4806
    %v4822 = vadd.f32 %v4787, %v4807
    %v4823 = vadd.f32 %v4788, %v4808
    %v4824 = vadd.f32 %v4789, %v4800
    %v4825 = vadd.f32 %v4790, %v4802
    %v4826 = vadd.f32 %v4791, %v4803
    %v4827 = vadd.f32 %v4792, %v4804
    %v4828 = vadd.f32 %v4793, %v4805
    %v4829 = vadd.f32 %v4794, %v4806
    %v4830 = vadd.f32 %v4795, %v4807
    %v4831 = vadd.f32 %v4796, %v4808
    %v4832 = vadd.f32 %v4797, %v4800
    %v4833 = vadd.f32 %v4798, %v4802
    %v4835 = vperm.slane %v2911, 0
    %4855 = vst [vmem:[#allocation1] ss:$9 sm:$0xff] %v4816
    %s4856 = scalar_lea.vmem [#allocation1], 1
    %4857 = vst [vmem:[%s4856] ss:$9 sm:$0xff] %v4817
    %s4858 = scalar_lea.vmem [#allocation1], 2
    %4859 = vst [vmem:[%s4858] ss:$9 sm:$0xff] %v4818
    %s4860 = scalar_lea.vmem [#allocation1], 3
    %4861 = vst [vmem:[%s4860] ss:$9 sm:$0xff] %v4819
    %s4862 = scalar_lea.vmem [#allocation1], 4
    %4863 = vst [vmem:[%s4862] ss:$9 sm:$0xff] %v4820
    %s4864 = scalar_lea.vmem [#allocation1], 5
    %4865 = vst [vmem:[%s4864] ss:$9 sm:$0xff] %v4821
    %s4866 = scalar_lea.vmem [#allocation1], 6
    %4867 = vst [vmem:[%s4866] ss:$9 sm:$0xff] %v4822
    %s4868 = scalar_lea.vmem [#allocation1], 7
    %4869 = vst [vmem:[%s4868] ss:$9 sm:$0xff] %v4823
    %v4870 = vld [vmem:[#allocation1] sm:$0xff]
    %4871 = vst [vmem:[#allocation1] ss:$9 sm:$0xff] %v4824
    %4872 = vst [vmem:[%s4856] ss:$9 sm:$0xff] %v4825
    %4873 = vst [vmem:[%s4858] ss:$9 sm:$0xff] %v4826
    %4874 = vst [vmem:[%s4860] ss:$9 sm:$0xff] %v4827
    %4875 = vst [vmem:[%s4862] ss:$9 sm:$0xff] %v4828
    %4876 = vst [vmem:[%s4864] ss:$9 sm:$0xff] %v4829
    %4877 = vst [vmem:[%s4866] ss:$9 sm:$0xff] %v4830
    %4878 = vst [vmem:[%s4868] ss:$9 sm:$0xff] %v4831
    %v4879 = vld [vmem:[#allocation1] sm:$0xff]
    %4880 = vst [vmem:[#allocation1] ss:$9 sm:$0xff] %v4832
    %4881 = vst [vmem:[%s4856] ss:$9 sm:$0xff] %v4833
    %v4882 = vld [vmem:[#allocation1] sm:$0xff]
    %v4883 = vsel %vm232, %v4870, 0
    %v4885 = vsel %vm232, %v4879, 0
    %v4887 = vsel %vm232, %v4882, 0
    %4889 = vmatpush.msra.mxu0 0.0
    %4890 = vmatpush.msra.mxu0 0.0
    %4891 = vmatpush.msra.mxu0 0.0
    %4892 = vmatpush.msra.mxu0 0.0
    %4893 = vmatpush.msra.mxu0 0.0
    %4894 = vmatpush.msra.mxu0 0.0
    %4895 = vmatpush.msra.mxu0 0.0
    %4896 = vmatpush.msra.mxu0 0.0
    %4897 = vmatpush.msra.mxu0 0.0
    %4898 = vmatpush.msra.mxu0 0.0
    %4899 = vmatpush.msra.mxu0 0.0
    %4900 = vmatpush.msra.mxu0 0.0
    %4901 = vmatpush.msra.mxu0 %v2909
    %4902 = vmatpush.msra.mxu0 %v2908
    %4903 = vmatpush.msra.mxu0 %v2907
    %4904 = vmatpush.msra.mxu0 %v2906
    %4905 = vmatmul.f32.gmra.mxu0 %v4883
    %v4906 = vpop.f32.mrf.mxu0
    %v4907 = vadd.f32 %v4835, %v4906
    %4908 = vmatmul.f32.gmra.mxu0 %v4885
    %v4909 = vpop.f32.mrf.mxu0
    %v4910 = vadd.f32 %v4835, %v4909
    %4911 = vmatmul.f32.gmra.mxu0 %v4887
    %v4912 = vpop.f32.mrf.mxu0
    %v4913 = vadd.f32 %v4835, %v4912
    %4914 = vdwg.mxu0
    %v4915 = vmul.f32 %v4907, 0.5
    %v4916 = vmul.f32 %v4910, 0.5
    %v4917 = vmul.f32 %v4913, 0.5
    %v4918 = vmul.f32 %v4907, 0.044715
    %v4919 = vmul.f32 %v4910, 0.044715
    %v4920 = vmul.f32 %v4913, 0.044715
    %v4921 = vmul.f32 %v4918, %v4907
    %v4922 = vmul.f32 %v4919, %v4910
    %v4923 = vmul.f32 %v4920, %v4913
    %v4924 = vmul.f32 %v4921, %v4907
    %v4925 = vmul.f32 %v4922, %v4910
    %v4926 = vmul.f32 %v4923, %v4913
    %v4927 = vadd.f32 %v4907, %v4924
    %v4928 = vadd.f32 %v4910, %v4925
    %v4929 = vadd.f32 %v4913, %v4926
    %v4930 = vmul.f32 %v4927, 0.7978846
    %v4931 = vmul.f32 %v4928, 0.7978846
    %v4932 = vmul.f32 %v4929, 0.7978846
    %v4933 = vtanh.pop %v4930
    %v4934 = vtanh.pop %v4931
    %v4935 = vtanh.pop %v4932
    %v4936 = vadd.f32 %v4933, 1.0
    %v4937 = vadd.f32 %v4934, 1.0
    %v4938 = vadd.f32 %v4935, 1.0
    %v4939 = vmul.f32 %v4915, %v4936
    %v4940 = vmul.f32 %v4916, %v4937
    %v4941 = vmul.f32 %v4917, %v4938
    %v4943 = vperm.slane %v2922, 0
    %v4946 = vsel %vm2443, %v4939, 0
    %v4949 = vsel %vm2443, %v4940, 0
    %v4952 = vsel %vm2443, %v4941, 0
    %4954 = vmatpush.msra.mxu0 0.0
    %4955 = vmatpush.msra.mxu0 0.0
    %4956 = vmatpush.msra.mxu0 0.0
    %4957 = vmatpush.msra.mxu0 0.0
    %4958 = vmatpush.msra.mxu0 0.0
    %4959 = vmatpush.msra.mxu0 0.0
    %4960 = vmatpush.msra.mxu0 0.0
    %4961 = vmatpush.msra.mxu0 0.0
    %4962 = vmatpush.msra.mxu0 %v2920
    %4963 = vmatpush.msra.mxu0 %v2919
    %4964 = vmatpush.msra.mxu0 %v2918
    %4965 = vmatpush.msra.mxu0 %v2917
    %4966 = vmatpush.msra.mxu0 %v2916
    %4967 = vmatpush.msra.mxu0 %v2915
    %4968 = vmatpush.msra.mxu0 %v2914
    %4969 = vmatpush.msra.mxu0 %v2913
    %4970 = vmatmul.f32.gmra.mxu0 %v4946
    %v4971 = vpop.f32.mrf.mxu0
    %v4972 = vadd.f32 %v4943, %v4971
    %4973 = vmatmul.f32.gmra.mxu0 %v4949
    %v4974 = vpop.f32.mrf.mxu0
    %v4975 = vadd.f32 %v4943, %v4974
    %4976 = vmatmul.f32.gmra.mxu0 %v4952
    %v4977 = vpop.f32.mrf.mxu0
    %v4978 = vadd.f32 %v4943, %v4977
    %4979 = vdwg.mxu0
    %v4983 = vrot.slane %v4972, 1
    %v4984 = vrot.slane %v4972, 2
    %v4985 = vrot.slane %v4972, 3
    %v4986 = vrot.slane %v4972, 4
    %v4987 = vrot.slane %v4972, 5
    %v4988 = vrot.slane %v4972, 6
    %v4989 = vrot.slane %v4972, 7
    %v4990 = vrot.slane %v4975, 1
    %v4991 = vrot.slane %v4975, 2
    %v4992 = vrot.slane %v4975, 3
    %v4993 = vrot.slane %v4975, 4
    %v4994 = vrot.slane %v4975, 5
    %v4995 = vrot.slane %v4975, 6
    %v4996 = vrot.slane %v4975, 7
    %v4997 = vrot.slane %v4978, 1
    %v5013 = vadd.f32 %v4816, %v4972
    %v5014 = vadd.f32 %v4817, %v4983
    %v5015 = vadd.f32 %v4818, %v4984
    %v5016 = vadd.f32 %v4819, %v4985
    %v5017 = vadd.f32 %v4820, %v4986
    %v5018 = vadd.f32 %v4821, %v4987
    %v5019 = vadd.f32 %v4822, %v4988
    %v5020 = vadd.f32 %v4823, %v4989
    %v5021 = vadd.f32 %v4824, %v4975
    %v5022 = vadd.f32 %v4825, %v4990
    %v5023 = vadd.f32 %v4826, %v4991
    %v5024 = vadd.f32 %v4827, %v4992
    %v5025 = vadd.f32 %v4828, %v4993
    %v5026 = vadd.f32 %v4829, %v4994
    %v5027 = vadd.f32 %v4830, %v4995
    %v5028 = vadd.f32 %v4831, %v4996
    %v5029 = vadd.f32 %v4832, %v4978
    %v5030 = vadd.f32 %v4833, %v4997
    %5049 = vst [vmem:[#allocation1] ss:$9 sm:$0xff] %v5013
    %s5050 = scalar_lea.vmem [#allocation1], 1
    %5051 = vst [vmem:[%s5050] ss:$9 sm:$0xff] %v5014
    %s5052 = scalar_lea.vmem [#allocation1], 2
    %5053 = vst [vmem:[%s5052] ss:$9 sm:$0xff] %v5015
    %s5054 = scalar_lea.vmem [#allocation1], 3
    %5055 = vst [vmem:[%s5054] ss:$9 sm:$0xff] %v5016
    %s5056 = scalar_lea.vmem [#allocation1], 4
    %5057 = vst [vmem:[%s5056] ss:$9 sm:$0xff] %v5017
    %s5058 = scalar_lea.vmem [#allocation1], 5
    %5059 = vst [vmem:[%s5058] ss:$9 sm:$0xff] %v5018
    %s5060 = scalar_lea.vmem [#allocation1], 6
    %5061 = vst [vmem:[%s5060] ss:$9 sm:$0xff] %v5019
    %s5062 = scalar_lea.vmem [#allocation1], 7
    %5063 = vst [vmem:[%s5062] ss:$9 sm:$0xff] %v5020
    %v5064 = vld [vmem:[#allocation1] sm:$0xff]
    %5065 = vst [vmem:[#allocation1] ss:$9 sm:$0xff] %v5021
    %5066 = vst [vmem:[%s5050] ss:$9 sm:$0xff] %v5022
    %5067 = vst [vmem:[%s5052] ss:$9 sm:$0xff] %v5023
    %5068 = vst [vmem:[%s5054] ss:$9 sm:$0xff] %v5024
    %5069 = vst [vmem:[%s5056] ss:$9 sm:$0xff] %v5025
    %5070 = vst [vmem:[%s5058] ss:$9 sm:$0xff] %v5026
    %5071 = vst [vmem:[%s5060] ss:$9 sm:$0xff] %v5027
    %5072 = vst [vmem:[%s5062] ss:$9 sm:$0xff] %v5028
    %v5073 = vld [vmem:[#allocation1] sm:$0xff]
    %5074 = vst [vmem:[#allocation1] ss:$9 sm:$0xff] %v5029
    %5075 = vst [vmem:[%s5050] ss:$9 sm:$0xff] %v5030
    %v5076 = vld [vmem:[#allocation1] sm:$0xff]
    %v5080 = vsel %vm232, %v5064, 0.0
    %5081 = vadd.xlane.f32.xlu0 %v5080
    %v5082 = vpop.xlane.xlu0 %5081
    %v5083 = vsel %vm232, %v5073, 0.0
    %5084 = vadd.xlane.f32.xlu0 %v5083
    %v5085 = vpop.xlane.xlu0 %5084
    %v5086 = vsel %vm2022, %v5076, 0.0
    %5087 = vadd.xlane.f32.xlu0 %v5086
    %v5088 = vpop.xlane.xlu0 %5087
    %v5089 = vmul.f32 %v5082, %v2032
    %v5090 = vmul.f32 %v5085, %v2032
    %v5091 = vmul.f32 %v5088, %v2032
    %v5095 = vperm.slane %v5089, 0
    %v5096 = vperm.slane %v5089, 1
    %v5097 = vperm.slane %v5089, 2
    %v5098 = vperm.slane %v5089, 3
    %v5099 = vperm.slane %v5089, 4
    %v5100 = vperm.slane %v5089, 5
    %v5101 = vperm.slane %v5089, 6
    %v5102 = vperm.slane %v5089, 7
    %v5103 = vperm.slane %v5090, 0
    %v5104 = vperm.slane %v5090, 1
    %v5105 = vperm.slane %v5090, 2
    %v5106 = vperm.slane %v5090, 3
    %v5107 = vperm.slane %v5090, 4
    %v5108 = vperm.slane %v5090, 5
    %v5109 = vperm.slane %v5090, 6
    %v5110 = vperm.slane %v5090, 7
    %v5111 = vperm.slane %v5091, 0
    %v5112 = vperm.slane %v5091, 1
    %v5131 = vsub.f32 %v5013, %v5095
    %v5132 = vsub.f32 %v5014, %v5096
    %v5133 = vsub.f32 %v5015, %v5097
    %v5134 = vsub.f32 %v5016, %v5098
    %v5135 = vsub.f32 %v5017, %v5099
    %v5136 = vsub.f32 %v5018, %v5100
    %v5137 = vsub.f32 %v5019, %v5101
    %v5138 = vsub.f32 %v5020, %v5102
    %v5139 = vsub.f32 %v5021, %v5103
    %v5140 = vsub.f32 %v5022, %v5104
    %v5141 = vsub.f32 %v5023, %v5105
    %v5142 = vsub.f32 %v5024, %v5106
    %v5143 = vsub.f32 %v5025, %v5107
    %v5144 = vsub.f32 %v5026, %v5108
    %v5145 = vsub.f32 %v5027, %v5109
    %v5146 = vsub.f32 %v5028, %v5110
    %v5147 = vsub.f32 %v5029, %v5111
    %v5148 = vsub.f32 %v5030, %v5112
    %v5149 = vmul.f32 %v5131, %v5131
    %v5150 = vmul.f32 %v5132, %v5132
    %v5151 = vmul.f32 %v5133, %v5133
    %v5152 = vmul.f32 %v5134, %v5134
    %v5153 = vmul.f32 %v5135, %v5135
    %v5154 = vmul.f32 %v5136, %v5136
    %v5155 = vmul.f32 %v5137, %v5137
    %v5156 = vmul.f32 %v5138, %v5138
    %v5157 = vmul.f32 %v5139, %v5139
    %v5158 = vmul.f32 %v5140, %v5140
    %v5159 = vmul.f32 %v5141, %v5141
    %v5160 = vmul.f32 %v5142, %v5142
    %v5161 = vmul.f32 %v5143, %v5143
    %v5162 = vmul.f32 %v5144, %v5144
    %v5163 = vmul.f32 %v5145, %v5145
    %v5164 = vmul.f32 %v5146, %v5146
    %v5165 = vmul.f32 %v5147, %v5147
    %v5166 = vmul.f32 %v5148, %v5148
    %5185 = vst [vmem:[#allocation1] ss:$9 sm:$0xff] %v5149
    %s5186 = scalar_lea.vmem [#allocation1], 1
    %5187 = vst [vmem:[%s5186] ss:$9 sm:$0xff] %v5150
    %s5188 = scalar_lea.vmem [#allocation1], 2
    %5189 = vst [vmem:[%s5188] ss:$9 sm:$0xff] %v5151
    %s5190 = scalar_lea.vmem [#allocation1], 3
    %5191 = vst [vmem:[%s5190] ss:$9 sm:$0xff] %v5152
    %s5192 = scalar_lea.vmem [#allocation1], 4
    %5193 = vst [vmem:[%s5192] ss:$9 sm:$0xff] %v5153
    %s5194 = scalar_lea.vmem [#allocation1], 5
    %5195 = vst [vmem:[%s5194] ss:$9 sm:$0xff] %v5154
    %s5196 = scalar_lea.vmem [#allocation1], 6
    %5197 = vst [vmem:[%s5196] ss:$9 sm:$0xff] %v5155
    %s5198 = scalar_lea.vmem [#allocation1], 7
    %5199 = vst [vmem:[%s5198] ss:$9 sm:$0xff] %v5156
    %v5200 = vld [vmem:[#allocation1] sm:$0xff]
    %5201 = vst [vmem:[#allocation1] ss:$9 sm:$0xff] %v5157
    %5202 = vst [vmem:[%s5186] ss:$9 sm:$0xff] %v5158
    %5203 = vst [vmem:[%s5188] ss:$9 sm:$0xff] %v5159
    %5204 = vst [vmem:[%s5190] ss:$9 sm:$0xff] %v5160
    %5205 = vst [vmem:[%s5192] ss:$9 sm:$0xff] %v5161
    %5206 = vst [vmem:[%s5194] ss:$9 sm:$0xff] %v5162
    %5207 = vst [vmem:[%s5196] ss:$9 sm:$0xff] %v5163
    %5208 = vst [vmem:[%s5198] ss:$9 sm:$0xff] %v5164
    %v5209 = vld [vmem:[#allocation1] sm:$0xff]
    %5210 = vst [vmem:[#allocation1] ss:$9 sm:$0xff] %v5165
    %5211 = vst [vmem:[%s5186] ss:$9 sm:$0xff] %v5166
    %v5212 = vld [vmem:[#allocation1] sm:$0xff]
    %v5216 = vsel %vm232, %v5200, 0.0
    %5217 = vadd.xlane.f32.xlu0 %v5216
    %v5218 = vpop.xlane.xlu0 %5217
    %v5219 = vsel %vm232, %v5209, 0.0
    %5220 = vadd.xlane.f32.xlu0 %v5219
    %v5221 = vpop.xlane.xlu0 %5220
    %v5222 = vsel %vm2022, %v5212, 0.0
    %5223 = vadd.xlane.f32.xlu0 %v5222
    %v5224 = vpop.xlane.xlu0 %5223
    %v5225 = vmul.f32 %v5218, %v2032
    %v5226 = vmul.f32 %v5221, %v2032
    %v5227 = vmul.f32 %v5224, %v2032
    %v5228 = vadd.f32 %v5225, 1e-05
    %v5229 = vadd.f32 %v5226, 1e-05
    %v5230 = vadd.f32 %v5227, 1e-05
    %v5231 = vrsqrt.pop %v5228
    %v5232 = vmul.f32 %v5231, %v5228
    %v5233 = vmul.f32 %v5232, %v5231
    %v5234 = vmul.f32 0.5, %v5233
    %v5235 = vsub.f32 1.5, %v5234
    %v5236 = vmul.f32 %v5231, %v5235
    %vm5237 = vweird.f32 %v5228
    %vm5238 = vweird.f32 %v5231
    %vm5239 = vmor %vm5237, %vm5238
    %v5240 = vsel %vm5239, %v5231, %v5236
    %v5241 = vrsqrt.pop %v5229
    %v5242 = vmul.f32 %v5241, %v5229
    %v5243 = vmul.f32 %v5242, %v5241
    %v5244 = vmul.f32 0.5, %v5243
    %v5245 = vsub.f32 1.5, %v5244
    %v5246 = vmul.f32 %v5241, %v5245
    %vm5247 = vweird.f32 %v5229
    %vm5248 = vweird.f32 %v5241
    %vm5249 = vmor %vm5247, %vm5248
    %v5250 = vsel %vm5249, %v5241, %v5246
    %v5251 = vrsqrt.pop %v5230
    %v5252 = vmul.f32 %v5251, %v5230
    %v5253 = vmul.f32 %v5252, %v5251
    %v5254 = vmul.f32 0.5, %v5253
    %v5255 = vsub.f32 1.5, %v5254
    %v5256 = vmul.f32 %v5251, %v5255
    %vm5257 = vweird.f32 %v5230
    %vm5258 = vweird.f32 %v5251
    %vm5259 = vmor %vm5257, %vm5258
    %v5260 = vsel %vm5259, %v5251, %v5256
    %v5264 = vperm.slane %v5240, 0
    %v5265 = vperm.slane %v5240, 1
    %v5266 = vperm.slane %v5240, 2
    %v5267 = vperm.slane %v5240, 3
    %v5268 = vperm.slane %v5240, 4
    %v5269 = vperm.slane %v5240, 5
    %v5270 = vperm.slane %v5240, 6
    %v5271 = vperm.slane %v5240, 7
    %v5272 = vperm.slane %v5250, 0
    %v5273 = vperm.slane %v5250, 1
    %v5274 = vperm.slane %v5250, 2
    %v5275 = vperm.slane %v5250, 3
    %v5276 = vperm.slane %v5250, 4
    %v5277 = vperm.slane %v5250, 5
    %v5278 = vperm.slane %v5250, 6
    %v5279 = vperm.slane %v5250, 7
    %v5280 = vperm.slane %v5260, 0
    %v5281 = vperm.slane %v5260, 1
    %v5300 = vmul.f32 %v5131, %v5264
    %v5301 = vmul.f32 %v5132, %v5265
    %v5302 = vmul.f32 %v5133, %v5266
    %v5303 = vmul.f32 %v5134, %v5267
    %v5304 = vmul.f32 %v5135, %v5268
    %v5305 = vmul.f32 %v5136, %v5269
    %v5306 = vmul.f32 %v5137, %v5270
    %v5307 = vmul.f32 %v5138, %v5271
    %v5308 = vmul.f32 %v5139, %v5272
    %v5309 = vmul.f32 %v5140, %v5273
    %v5310 = vmul.f32 %v5141, %v5274
    %v5311 = vmul.f32 %v5142, %v5275
    %v5312 = vmul.f32 %v5143, %v5276
    %v5313 = vmul.f32 %v5144, %v5277
    %v5314 = vmul.f32 %v5145, %v5278
    %v5315 = vmul.f32 %v5146, %v5279
    %v5316 = vmul.f32 %v5147, %v5280
    %v5317 = vmul.f32 %v5148, %v5281
    %v5319 = vperm.slane %v2924, 0
    %v5321 = vrot.slane %v5319, 1
    %v5322 = vrot.slane %v5319, 2
    %v5323 = vrot.slane %v5319, 3
    %v5324 = vrot.slane %v5319, 4
    %v5325 = vrot.slane %v5319, 5
    %v5326 = vrot.slane %v5319, 6
    %v5327 = vrot.slane %v5319, 7
    %v5335 = vmul.f32 %v5300, %v5319
    %v5336 = vmul.f32 %v5301, %v5321
    %v5337 = vmul.f32 %v5302, %v5322
    %v5338 = vmul.f32 %v5303, %v5323
    %v5339 = vmul.f32 %v5304, %v5324
    %v5340 = vmul.f32 %v5305, %v5325
    %v5341 = vmul.f32 %v5306, %v5326
    %v5342 = vmul.f32 %v5307, %v5327
    %v5343 = vmul.f32 %v5308, %v5319
    %v5344 = vmul.f32 %v5309, %v5321
    %v5345 = vmul.f32 %v5310, %v5322
    %v5346 = vmul.f32 %v5311, %v5323
    %v5347 = vmul.f32 %v5312, %v5324
    %v5348 = vmul.f32 %v5313, %v5325
    %v5349 = vmul.f32 %v5314, %v5326
    %v5350 = vmul.f32 %v5315, %v5327
    %v5351 = vmul.f32 %v5316, %v5319
    %v5352 = vmul.f32 %v5317, %v5321
    %v5354 = vperm.slane %v2926, 0
    %v5356 = vrot.slane %v5354, 1
    %v5357 = vrot.slane %v5354, 2
    %v5358 = vrot.slane %v5354, 3
    %v5359 = vrot.slane %v5354, 4
    %v5360 = vrot.slane %v5354, 5
    %v5361 = vrot.slane %v5354, 6
    %v5362 = vrot.slane %v5354, 7
    %v5370 = vadd.f32 %v5335, %v5354
    %v5371 = vadd.f32 %v5336, %v5356
    %v5372 = vadd.f32 %v5337, %v5357
    %v5373 = vadd.f32 %v5338, %v5358
    %v5374 = vadd.f32 %v5339, %v5359
    %v5375 = vadd.f32 %v5340, %v5360
    %v5376 = vadd.f32 %v5341, %v5361
    %v5377 = vadd.f32 %v5342, %v5362
    %v5378 = vadd.f32 %v5343, %v5354
    %v5379 = vadd.f32 %v5344, %v5356
    %v5380 = vadd.f32 %v5345, %v5357
    %v5381 = vadd.f32 %v5346, %v5358
    %v5382 = vadd.f32 %v5347, %v5359
    %v5383 = vadd.f32 %v5348, %v5360
    %v5384 = vadd.f32 %v5349, %v5361
    %v5385 = vadd.f32 %v5350, %v5362
    %v5386 = vadd.f32 %v5351, %v5354
    %v5387 = vadd.f32 %v5352, %v5356
    %v5388 = vld [vmem:[#allocation19] sm:$0xff]
    %v5389 = vld [vmem:[#allocation19 + $0x8] sm:$0xff]
    %v5390 = vld [vmem:[#allocation19 + $0x10] sm:$0xff]
    %v5391 = vld [vmem:[#allocation19 + $0x18] sm:$0xff]
    %v5392 = vld [vmem:[%s22] sm:$0x1]
    %v5394 = vperm.slane %v5392, 0
    %5414 = vst [vmem:[#allocation1] ss:$9 sm:$0xff] %v5370
    %s5415 = scalar_lea.vmem [#allocation1], 1
    %5416 = vst [vmem:[%s5415] ss:$9 sm:$0xff] %v5371
    %s5417 = scalar_lea.vmem [#allocation1], 2
    %5418 = vst [vmem:[%s5417] ss:$9 sm:$0xff] %v5372
    %s5419 = scalar_lea.vmem [#allocation1], 3
    %5420 = vst [vmem:[%s5419] ss:$9 sm:$0xff] %v5373
    %s5421 = scalar_lea.vmem [#allocation1], 4
    %5422 = vst [vmem:[%s5421] ss:$9 sm:$0xff] %v5374
    %s5423 = scalar_lea.vmem [#allocation1], 5
    %5424 = vst [vmem:[%s5423] ss:$9 sm:$0xff] %v5375
    %s5425 = scalar_lea.vmem [#allocation1], 6
    %5426 = vst [vmem:[%s5425] ss:$9 sm:$0xff] %v5376
    %s5427 = scalar_lea.vmem [#allocation1], 7
    %5428 = vst [vmem:[%s5427] ss:$9 sm:$0xff] %v5377
    %v5429 = vld [vmem:[#allocation1] sm:$0xff]
    %5430 = vst [vmem:[#allocation1] ss:$9 sm:$0xff] %v5378
    %5431 = vst [vmem:[%s5415] ss:$9 sm:$0xff] %v5379
    %5432 = vst [vmem:[%s5417] ss:$9 sm:$0xff] %v5380
    %5433 = vst [vmem:[%s5419] ss:$9 sm:$0xff] %v5381
    %5434 = vst [vmem:[%s5421] ss:$9 sm:$0xff] %v5382
    %5435 = vst [vmem:[%s5423] ss:$9 sm:$0xff] %v5383
    %5436 = vst [vmem:[%s5425] ss:$9 sm:$0xff] %v5384
    %5437 = vst [vmem:[%s5427] ss:$9 sm:$0xff] %v5385
    %v5438 = vld [vmem:[#allocation1] sm:$0xff]
    %5439 = vst [vmem:[#allocation1] ss:$9 sm:$0xff] %v5386
    %5440 = vst [vmem:[%s5415] ss:$9 sm:$0xff] %v5387
    %v5441 = vld [vmem:[#allocation1] sm:$0xff]
    %v5442 = vsel %vm232, %v5429, 0
    %v5444 = vsel %vm232, %v5438, 0
    %v5446 = vsel %vm232, %v5441, 0
    %5448 = vmatpush.msra.mxu0 0.0
    %5449 = vmatpush.msra.mxu0 0.0
    %5450 = vmatpush.msra.mxu0 0.0
    %5451 = vmatpush.msra.mxu0 0.0
    %5452 = vmatpush.msra.mxu0 0.0
    %5453 = vmatpush.msra.mxu0 0.0
    %5454 = vmatpush.msra.mxu0 0.0
    %5455 = vmatpush.msra.mxu0 0.0
    %5456 = vmatpush.msra.mxu0 0.0
    %5457 = vmatpush.msra.mxu0 0.0
    %5458 = vmatpush.msra.mxu0 0.0
    %5459 = vmatpush.msra.mxu0 0.0
    %5460 = vmatpush.msra.mxu0 %v5391
    %5461 = vmatpush.msra.mxu0 %v5390
    %5462 = vmatpush.msra.mxu0 %v5389
    %5463 = vmatpush.msra.mxu0 %v5388
    %5464 = vmatmul.f32.gmra.mxu0 %v5442
    %v5465 = vpop.f32.mrf.mxu0
    %v5466 = vadd.f32 %v5394, %v5465
    %5467 = vmatmul.f32.gmra.mxu0 %v5444
    %v5468 = vpop.f32.mrf.mxu0
    %v5469 = vadd.f32 %v5394, %v5468
    %5470 = vmatmul.f32.gmra.mxu0 %v5446
    %v5471 = vpop.f32.mrf.mxu0
    %v5472 = vadd.f32 %v5394, %v5471
    %5473 = vdwg.mxu0
    %v5477 = vrot.slane %v5466, 1
    %v5478 = vrot.slane %v5466, 2
    %v5479 = vrot.slane %v5466, 3
    %v5480 = vrot.slane %v5466, 4
    %v5481 = vrot.slane %v5466, 5
    %v5482 = vrot.slane %v5466, 6
    %v5483 = vrot.slane %v5466, 7
    %v5484 = vrot.slane %v5469, 2
    %v5485 = vrot.slane %v5469, 3
    %v5486 = vrot.slane %v5469, 4
    %v5487 = vrot.slane %v5469, 5
    %v5488 = vrot.slane %v5469, 6
    %v5489 = vrot.slane %v5469, 7
    %v5490 = vrot.slane %v5472, 1
    %5491 = vst [vmem:[#allocation1] ss:$9 sm:$0xff] %v5477
    %s5492 = scalar_lea.vmem [#allocation1], 1
    %5493 = vst [vmem:[%s5492] ss:$9 sm:$0xff] %v5478
    %s5494 = scalar_lea.vmem [#allocation1], 2
    %5495 = vst [vmem:[%s5494] ss:$9 sm:$0xff] %v5479
    %s5496 = scalar_lea.vmem [#allocation1], 3
    %5497 = vst [vmem:[%s5496] ss:$9 sm:$0xff] %v5480
    %s5498 = scalar_lea.vmem [#allocation1], 4
    %5499 = vst [vmem:[%s5498] ss:$9 sm:$0xff] %v5481
    %s5500 = scalar_lea.vmem [#allocation1], 5
    %5501 = vst [vmem:[%s5500] ss:$9 sm:$0xff] %v5482
    %s5502 = scalar_lea.vmem [#allocation1], 6
    %5503 = vst [vmem:[%s5502] ss:$9 sm:$0xff] %v5483
    %s5504 = scalar_lea.vmem [#allocation1], 7
    %5505 = vst [vmem:[%s5504] ss:$9 sm:$0xff] %v5469
    %v5506 = vld [vmem:[#allocation1] sm:$0xff]
    %5507 = vst [vmem:[#allocation1] ss:$9 sm:$0xff] %v5484
    %5508 = vst [vmem:[%s5492] ss:$9 sm:$0xff] %v5485
    %5509 = vst [vmem:[%s5494] ss:$9 sm:$0xff] %v5486
    %5510 = vst [vmem:[%s5496] ss:$9 sm:$0xff] %v5487
    %5511 = vst [vmem:[%s5498] ss:$9 sm:$0xff] %v5488
    %5512 = vst [vmem:[%s5500] ss:$9 sm:$0xff] %v5489
    %5513 = vst [vmem:[%s5502] ss:$9 sm:$0xff] %v5472
    %5514 = vst [vmem:[%s5504] ss:$9 sm:$0xff] %v5490
    %v5515 = vld [vmem:[#allocation1] sm:$0xff]
    %5518 = vst.msk [vmem:[#allocation21] sm:$0xff] %vm232, %v5506
    %5519 = vst.msk [vmem:[#allocation21 + $0x8] sm:$0xff] %vm232, %v5515
    // Predicated region
    $region134: #{tpu_custom_call.1} parent=1 // pred_check
      _
    $region135: #{tpu_custom_call.1} parent=1 // pred_check_branch
      %5521 = sbr.rel (0) target = $region137
    $region136: #{tpu_custom_call.1} parent=1 // pred_region
      %5523 = vsyncadd [#allocation6], 0
      %s5524 = sshll.u32 [#allocation21], 4
      %s5525 = int_to_ptr.vmem [resolvable:$true] %s5524
      %s5526 = sshll.u32 %s23, 4
      %s5527 = int_to_ptr.hbm [resolvable:$true] %s5526
      %5532 = dma.vmem_to_hbm [thread:$0]  %s5525, 256, %s5527, [#allocation6], 128, 128, 8
    $region137: #{tpu_custom_call.1} parent=1 // pred_fallthru
      _
    // Predicated region
    $region138: #{tpu_custom_call.1} parent=1 // pred_check
      _
    $region139: #{tpu_custom_call.1} parent=1 // pred_check_branch
      %5534 = sbr.rel (0) target = $region141
    $region140: #{tpu_custom_call.1} parent=1 // pred_region
      %5536 = dma.done [#allocation6], 256
    $region141: #{tpu_custom_call.1} parent=1 // pred_fallthru
      _
    %5537 = vsyncpa [#allocation5], 1
    %5538 = vsyncpa [#allocation8], 1
    %5539 = vsyncpa [#allocation11], 1
    %5540 = vsyncpa [#allocation14], 1
    %5541 = vsyncpa [#allocation17], 1
    %5542 = vsyncpa [#allocation20], 1
    %5543 = vsyncpa [#allocation6], 1

</llo_original>
